<compile_context>
chip_gen: v7x
topology: tpu7x:2x2x1
jax: 0.10.0
libtpu: 0.0.40
codegen_flags: <defaults>
</compile_context>

<pallas_src>
import math
import functools

import jax
import jax.numpy as jnp
from jax.experimental import pallas as pl
from jax.experimental.pallas import tpu as pltpu


def _round_up(x, m):
    return ((x + m - 1) // m) * m


_GELU_C0 = 0.7978845608028654   # sqrt(2/pi)
_GELU_C1 = 0.044715


def _gelu_tanh(x):
    # tanh-approximate GELU: one EUP-native tanh + a handful of VALU ops per element.
    return 0.5 * x * (1.0 + jnp.tanh(_GELU_C0 * (x + _GELU_C1 * x * x * x)))


def _time_encoding_kernel(t_ref, pe_ref, phase_ref, w1_ref, b1_ref, w2_ref, b2_ref,
                          out_ref, feat_ref):
    f32 = jnp.float32
    H = pe_ref.shape[-1]

    arg = t_ref[...] * pe_ref[...] + phase_ref[...]            # [bt, H] f32 (broadcast)

    # cat([sin, cos], -1) via two lane-aligned stores into a [bt, 2H] bf16 scratch, so the
    # first Linear is a single K=2H matmul (fills the 256-deep MXU on v6e/v7x).
    feat_ref[:, :H] = jnp.sin(arg).astype(feat_ref.dtype)
    feat_ref[:, H:] = jnp.cos(arg).astype(feat_ref.dtype)

    h = jnp.dot(feat_ref[...], w1_ref[...], preferred_element_type=f32) + b1_ref[...]
    h = _gelu_tanh(h)                                           # GELU math kept in f32
    out_ref[...] = (jnp.dot(h.astype(w2_ref.dtype), w2_ref[...],
                            preferred_element_type=f32) + b2_ref[...]).astype(out_ref.dtype)


def time_encoding_forward(t, params, *, block_b=None):
    """t: scalar / [B] / [B, 1] float32. Returns [B, dim] float32."""
    t = jnp.asarray(t, jnp.float32)
    if t.ndim == 0:
        t = t.reshape(1, 1)
    elif t.ndim == 1:
        t = t[:, None]

    B = t.shape[0]
    H = params["pe"].shape[1]
    Hd, D = params["w2"].shape

    # MXU-native bf16 weights (one-time cast outside the kernel); biases / pe / phase f32.
    w1 = params["w1"].astype(jnp.bfloat16)
    w2 = params["w2"].astype(jnp.bfloat16)

    # Batch block: biggest that fits a modest VMEM budget; default to 2 grid steps so the
    # "parallel" batch axis can be sharded across v7x's two TensorCores.
    row_bytes = 4 + 2 * H * 2 + H * 4 + Hd * 4 + D * 4   # t + feat scratch + arg + h + out
    bt_cap = max(8, min(2048, ((8 << 20) // row_bytes) // 8 * 8))
    if block_b is None:
        bt = _round_up(B, 8) if B <= 8 else _round_up(pl.cdiv(B, 2), 8)
    else:
        bt = _round_up(min(block_b, B), 8)
    bt = min(bt, bt_cap)
    grid = (pl.cdiv(B, bt),)   # ragged last block handled by Pallas (no pad / no out[:B])

    row = lambda i: (i, 0)     # activation rows follow the grid
    rep = lambda i: (0, 0)     # weights/biases stay VMEM-resident across grid steps

    in_specs = [
        pl.BlockSpec((bt, 1), row),        # t
        pl.BlockSpec((1, H), rep),         # pe
        pl.BlockSpec((1, H), rep),         # timestep_phase
        pl.BlockSpec((2 * H, Hd), rep),    # W1 (bf16, full [2H, Hd] for the K=2H matmul)
        pl.BlockSpec((1, Hd), rep),        # b1 (f32)
        pl.BlockSpec((Hd, D), rep),        # W2 (bf16)
        pl.BlockSpec((1, D), rep),         # b2 (f32)
    ]
    out_specs = pl.BlockSpec((bt, D), row)

    # Advisory cost estimate so XLA can schedule around this latency-bound call.
    flops = B * (2 * (2 * H) * Hd + 2 * Hd * D + 8 * Hd + 4 * H)
    transcendentals = B * (2 * H + Hd)              # sin+cos per harmonic, tanh per hidden
    bytes_accessed = (4 * B + 2 * (2 * H * Hd + Hd * D)
                      + 4 * (4 * H + Hd + D) + 4 * B * D)
    cost = pl.CostEstimate(flops=flops, transcendentals=transcendentals,
                           bytes_accessed=bytes_accessed)

    # VMEM budget from actual buffer sizes, clamped to 64 MiB so it stays v7x-safe.
    resident = 2 * (2 * H * Hd * 2 + Hd * D * 2 + 4 * (4 * H + Hd + D))  # 2-buffered weights
    act = 2 * (bt * 4 + bt * D * 4) + bt * 2 * H * 2 + 2 * bt * (H + Hd) * 4
    vmem_limit = int(min(64 << 20, max(16 << 20, resident + act + (4 << 20))))

    return pl.pallas_call(
        _time_encoding_kernel,
        grid=grid,
        in_specs=in_specs,
        out_specs=out_specs,
        out_shape=jax.ShapeDtypeStruct((B, D), jnp.float32),
        scratch_shapes=[pltpu.VMEM((bt, 2 * H), jnp.bfloat16)],
        cost_estimate=cost,
        compiler_params=pltpu.CompilerParams(
            dimension_semantics=("parallel",),      # shard batch grid across TCs (v7x)
            vmem_limit_bytes=vmem_limit,
        ),
    )(t, params["pe"], params["phase"], w1, params["b1"], w2, params["b2"])


def init_params(key, harmonics_dim, dim, hidden_dim):
    """Deterministic parameter init mimicking PyTorch nn.Linear / module defaults."""
    def linear(k, fan_in, fan_out):
        bound = 1.0 / math.sqrt(fan_in)
        kw, kb = jax.random.split(k)
        w = jax.random.uniform(kw, (fan_in, fan_out), jnp.float32, -bound, bound)
        b = jax.random.uniform(kb, (1, fan_out), jnp.float32, -bound, bound)
        return w, b

    k1, k2, kp = jax.random.split(key, 3)
    w1, b1 = linear(k1, 2 * harmonics_dim, hidden_dim)   # t_model[0]: Linear(2H, hidden)
    w2, b2 = linear(k2, hidden_dim, dim)                 # t_model[2]: Linear(hidden, dim)
    phase = jax.random.normal(kp, (1, harmonics_dim), jnp.float32)         # timestep_phase
    pe = jnp.linspace(0.1, 100.0, harmonics_dim, dtype=jnp.float32)[None]  # buffer

    return dict(pe=pe, phase=phase, w1=w1, b1=b1, w2=w2, b2=b2)


def reference_forward(t, p):
    """Pure-JAX f32 reference reproducing the PyTorch TimeEncodingPIS forward."""
    gelu = functools.partial(jax.nn.gelu, approximate=False)   # nn.GELU() default (exact)
    arg = t * p["pe"] + p["phase"]
    feat = jnp.concatenate([jnp.sin(arg), jnp.cos(arg)], axis=-1)
    h = gelu(feat @ p["w1"] + p["b1"])
    return h @ p["w2"] + p["b2"]


if __name__ == "__main__":
    # TPU-friendly small shapes: feature dims are multiples of 128 so matmul operands, the
    # feat scratch stores and the output slab are all lane-dense; B=256 -> 2 parallel steps.
    B, harmonics_dim, hidden_dim, dim = 256, 128, 128, 128

    key = jax.random.PRNGKey(0)
    kt, kp = jax.random.split(key)
    t = jax.random.uniform(kt, (B, 1), jnp.float32)      # timesteps in [0, 1)
    params = init_params(kp, harmonics_dim, dim, hidden_dim)

    out = jax.block_until_ready(time_encoding_forward(t, params))
    ref = reference_forward(t, params)

    assert out.shape == (B, dim) and out.dtype == jnp.float32
    max_err = float(jnp.max(jnp.abs(out - ref)))
    # Error budget: bf16 matmul operands (~2^-9 rel) through the K=2H and K=Hd contractions
    # plus the tanh-GELU deviation from exact erf-GELU -> observed ~1e-3; assert < 1e-2.
    assert max_err < 1e-2, f"max abs err = {max_err}"
    print("KERNEL_OK")
</pallas_src>

<mosaic_0001>
module attributes {stable_mosaic.version = 11 : i64} {
  func.func @_time_encoding_kernel(%arg0: i32, %arg1: memref<128x1xf32, #tpu.memory_space<vmem>>, %arg2: memref<1x128xf32, #tpu.memory_space<vmem>>, %arg3: memref<1x128xf32, #tpu.memory_space<vmem>>, %arg4: memref<256x128xbf16, #tpu.memory_space<vmem>>, %arg5: memref<1x128xf32, #tpu.memory_space<vmem>>, %arg6: memref<128x128xbf16, #tpu.memory_space<vmem>>, %arg7: memref<1x128xf32, #tpu.memory_space<vmem>>, %arg8: memref<128x128xf32, #tpu.memory_space<vmem>>, %arg9: memref<128x256xbf16, #tpu.memory_space<vmem>>) attributes {dimension_semantics = [#tpu.dimension_semantics<parallel>], iteration_bounds = array<i64: 2>, scalar_prefetch = 0 : i64, scratch_operands = 1 : i64, tpu.core_type = #tpu.core_type<tc>, window_params = [{transform_indices = @transform_0, window_bounds = array<i64: 128, 1>}, {pipeline_mode = #tpu.pipeline_mode<synchronous>, transform_indices = @transform_1, window_bounds = array<i64: 1, 128>}, {pipeline_mode = #tpu.pipeline_mode<synchronous>, transform_indices = @transform_2, window_bounds = array<i64: 1, 128>}, {pipeline_mode = #tpu.pipeline_mode<synchronous>, transform_indices = @transform_3, window_bounds = array<i64: 256, 128>}, {pipeline_mode = #tpu.pipeline_mode<synchronous>, transform_indices = @transform_4, window_bounds = array<i64: 1, 128>}, {pipeline_mode = #tpu.pipeline_mode<synchronous>, transform_indices = @transform_5, window_bounds = array<i64: 128, 128>}, {pipeline_mode = #tpu.pipeline_mode<synchronous>, transform_indices = @transform_6, window_bounds = array<i64: 1, 128>}, {transform_indices = @transform_7, window_bounds = array<i64: 128, 128>}]} {
    %c0 = arith.constant 0 : index
    %c0_0 = arith.constant 0 : index
    %0 = vector.load %arg1[%c0, %c0_0] : memref<128x1xf32, #tpu.memory_space<vmem>>, vector<128x1xf32>
    %c0_1 = arith.constant 0 : index
    %c0_2 = arith.constant 0 : index
    %1 = vector.load %arg2[%c0_1, %c0_2] : memref<1x128xf32, #tpu.memory_space<vmem>>, vector<1x128xf32>
    %2 = vector.broadcast %0 : vector<128x1xf32> to vector<128x128xf32>
    %3 = vector.broadcast %1 : vector<1x128xf32> to vector<128x128xf32>
    %4 = arith.mulf %2, %3 : vector<128x128xf32>
    %c0_3 = arith.constant 0 : index
    %c0_4 = arith.constant 0 : index
    %5 = vector.load %arg3[%c0_3, %c0_4] : memref<1x128xf32, #tpu.memory_space<vmem>>, vector<1x128xf32>
    %6 = vector.broadcast %5 : vector<1x128xf32> to vector<128x128xf32>
    %7 = arith.addf %4, %6 : vector<128x128xf32>
    %8 = math.sin %7 : vector<128x128xf32>
    %9 = arith.truncf %8 : vector<128x128xf32> to vector<128x128xbf16>
    %c0_5 = arith.constant 0 : index
    %c0_6 = arith.constant 0 : index
    %10 = vector.load %arg9[%c0_5, %c0_6] : memref<128x256xbf16, #tpu.memory_space<vmem>>, vector<128x128xbf16>
    tpu.vector_store %arg9[%c0_5, %c0_6], %9 {strides = array<i32>} : memref<128x256xbf16, #tpu.memory_space<vmem>>, vector<128x128xbf16>,
    %11 = math.cos %7 : vector<128x128xf32>
    %12 = arith.truncf %11 : vector<128x128xf32> to vector<128x128xbf16>
    %c0_7 = arith.constant 0 : index
    %c128 = arith.constant 128 : index
    %13 = vector.load %arg9[%c0_7, %c128] : memref<128x256xbf16, #tpu.memory_space<vmem>>, vector<128x128xbf16>
    tpu.vector_store %arg9[%c0_7, %c128], %12 {strides = array<i32>} : memref<128x256xbf16, #tpu.memory_space<vmem>>, vector<128x128xbf16>,
    %c0_8 = arith.constant 0 : index
    %c0_9 = arith.constant 0 : index
    %14 = vector.load %arg9[%c0_8, %c0_9] : memref<128x256xbf16, #tpu.memory_space<vmem>>, vector<128x256xbf16>
    %c0_10 = arith.constant 0 : index
    %c0_11 = arith.constant 0 : index
    %15 = vector.load %arg4[%c0_10, %c0_11] : memref<256x128xbf16, #tpu.memory_space<vmem>>, vector<256x128xbf16>
    %cst = arith.constant dense<0.000000e+00> : vector<128x128xf32>
    %16 = tpu.matmul %14, %15, %cst {dimension_numbers = #tpu.dot_dimension_numbers<[1], [0], [0], [1], [0, 0, 1, 1], [], []>} : vector<128x256xbf16>, vector<256x128xbf16>, vector<128x128xf32> -> vector<128x128xf32>
    %c0_12 = arith.constant 0 : index
    %c0_13 = arith.constant 0 : index
    %17 = vector.load %arg5[%c0_12, %c0_13] : memref<1x128xf32, #tpu.memory_space<vmem>>, vector<1x128xf32>
    %18 = vector.broadcast %17 : vector<1x128xf32> to vector<128x128xf32>
    %19 = arith.addf %16, %18 : vector<128x128xf32>
    %cst_14 = arith.constant 5.000000e-01 : f32
    %20 = vector.broadcast %cst_14 : f32 to vector<128x128xf32>
    %21 = arith.mulf %20, %19 : vector<128x128xf32>
    %cst_15 = arith.constant 4.471500e-02 : f32
    %22 = vector.broadcast %cst_15 : f32 to vector<128x128xf32>
    %23 = arith.mulf %22, %19 : vector<128x128xf32>
    %24 = arith.mulf %23, %19 : vector<128x128xf32>
    %25 = arith.mulf %24, %19 : vector<128x128xf32>
    %26 = arith.addf %19, %25 : vector<128x128xf32>
    %cst_16 = arith.constant 0.797884583 : f32
    %27 = vector.broadcast %cst_16 : f32 to vector<128x128xf32>
    %28 = arith.mulf %27, %26 : vector<128x128xf32>
    %29 = math.tanh %28 : vector<128x128xf32>
    %cst_17 = arith.constant 1.000000e+00 : f32
    %30 = vector.broadcast %cst_17 : f32 to vector<128x128xf32>
    %31 = arith.addf %30, %29 : vector<128x128xf32>
    %32 = arith.mulf %21, %31 : vector<128x128xf32>
    %33 = arith.truncf %32 : vector<128x128xf32> to vector<128x128xbf16>
    %c0_18 = arith.constant 0 : index
    %c0_19 = arith.constant 0 : index
    %34 = vector.load %arg6[%c0_18, %c0_19] : memref<128x128xbf16, #tpu.memory_space<vmem>>, vector<128x128xbf16>
    %cst_20 = arith.constant dense<0.000000e+00> : vector<128x128xf32>
    %35 = tpu.matmul %33, %34, %cst_20 {dimension_numbers = #tpu.dot_dimension_numbers<[1], [0], [0], [1], [0, 0, 1, 1], [], []>} : vector<128x128xbf16>, vector<128x128xbf16>, vector<128x128xf32> -> vector<128x128xf32>
    %c0_21 = arith.constant 0 : index
    %c0_22 = arith.constant 0 : index
    %36 = vector.load %arg7[%c0_21, %c0_22] : memref<1x128xf32, #tpu.memory_space<vmem>>, vector<1x128xf32>
    %37 = vector.broadcast %36 : vector<1x128xf32> to vector<128x128xf32>
    %38 = arith.addf %35, %37 : vector<128x128xf32>
    %c0_23 = arith.constant 0 : index
    %c0_24 = arith.constant 0 : index
    %39 = vector.load %arg8[%c0_23, %c0_24] : memref<128x128xf32, #tpu.memory_space<vmem>>, vector<128x128xf32>
    tpu.vector_store %arg8[%c0_23, %c0_24], %38 {strides = array<i32>} : memref<128x128xf32, #tpu.memory_space<vmem>>, vector<128x128xf32>,
    return
  }
  func.func @transform_0(%arg0: i32) -> (i32, i32) {
    %c0_i32 = arith.constant 0 : i32
    %c0_i32_0 = arith.constant 0 : i32
    return %arg0, %c0_i32 : i32, i32
  }
  func.func @transform_1(%arg0: i32) -> (i32, i32) {
    %c0_i32 = arith.constant 0 : i32
    %c0_i32_0 = arith.constant 0 : i32
    %c0_i32_1 = arith.constant 0 : i32
    return %c0_i32, %c0_i32_0 : i32, i32
  }
  func.func @transform_2(%arg0: i32) -> (i32, i32) {
    %c0_i32 = arith.constant 0 : i32
    %c0_i32_0 = arith.constant 0 : i32
    %c0_i32_1 = arith.constant 0 : i32
    return %c0_i32, %c0_i32_0 : i32, i32
  }
  func.func @transform_3(%arg0: i32) -> (i32, i32) {
    %c0_i32 = arith.constant 0 : i32
    %c0_i32_0 = arith.constant 0 : i32
    %c0_i32_1 = arith.constant 0 : i32
    return %c0_i32, %c0_i32_0 : i32, i32
  }
  func.func @transform_4(%arg0: i32) -> (i32, i32) {
    %c0_i32 = arith.constant 0 : i32
    %c0_i32_0 = arith.constant 0 : i32
    %c0_i32_1 = arith.constant 0 : i32
    return %c0_i32, %c0_i32_0 : i32, i32
  }
  func.func @transform_5(%arg0: i32) -> (i32, i32) {
    %c0_i32 = arith.constant 0 : i32
    %c0_i32_0 = arith.constant 0 : i32
    %c0_i32_1 = arith.constant 0 : i32
    return %c0_i32, %c0_i32_0 : i32, i32
  }
  func.func @transform_6(%arg0: i32) -> (i32, i32) {
    %c0_i32 = arith.constant 0 : i32
    %c0_i32_0 = arith.constant 0 : i32
    %c0_i32_1 = arith.constant 0 : i32
    return %c0_i32, %c0_i32_0 : i32, i32
  }
  func.func @transform_7(%arg0: i32) -> (i32, i32) {
    %c0_i32 = arith.constant 0 : i32
    %c0_i32_0 = arith.constant 0 : i32
    return %arg0, %c0_i32 : i32, i32
  }
}

</mosaic_0001>

<llo_original>
// kernel: tpu_custom_call.1
$region0: #{tpu_custom_call.1}
  #allocation0 [shape = 'u32[]', space=smem, size = 0x4, offset = 0x4, fixed_abs, tag = 'smem constant byte address 0x4 - core index']
  #allocation1 [shape = 'u32[144,128]{1,0:T(1,128)}', space=vmem, size = 0x12000, scoped, tag = 'internal scratch']
  #allocation2 [shape = 'bf16[128,256]{1,0:T(16,128)(2,1)}', space=vmem, size = 0x10000, scoped, tag = 'scratch operand']
  %s0 = inlined_call_operand.vmem [shape: f32[256,1], index: 0, kind: input, shape index: {}]
  %s1 = inlined_call_operand.vmem [shape: f32[1,128], index: 1, kind: input, shape index: {}]
  %s2 = inlined_call_operand.vmem [shape: f32[1,128], index: 2, kind: input, shape index: {}]
  %s3 = inlined_call_operand.vmem [shape: bf16[256,128], index: 3, kind: input, shape index: {}]
  %s4 = inlined_call_operand.vmem [shape: f32[1,128], index: 4, kind: input, shape index: {}]
  %s5 = inlined_call_operand.vmem [shape: bf16[128,128], index: 5, kind: input, shape index: {}]
  %s6 = inlined_call_operand.vmem [shape: f32[1,128], index: 6, kind: input, shape index: {}]
  %s7 = inlined_call_operand.hbm [shape: f32[256,128], index: 7, kind: output, shape index: {}]
  %s8 = sld [smem:[#allocation0]]
  $region61: #{tpu_custom_call.1} parent=0
    _
  %s10 = ssub.s32 1, %s8
  %s11 = scalar_select 0, %s10, %s8
  $region1: #{tpu_custom_call.1} parent=0
    #allocation3 [shape = 'u8[131072]{0}', space=vmem, size = 0x20000, scoped, tag = 'output window, operand 0']
    #allocation4 [shape = 's32[2]{0}', space=sflag, size = 0x8, scoped, tag = 'scoped memory for tpu_custom_call.1']
    %12 = vsyncpa [#allocation4], 0
    %s13 = scalar_lea.sflag [#allocation4], 1
    %14 = vsyncpa %s13, 0
    loop: start=0, step=1, limit=4
    $region2: #{tpu_custom_call.1} parent=1 // loop_pre_header
      _
    $region3: #{tpu_custom_call.1} parent=1 // loop_header
      %s16 = sphi 0, %s20
      %p17 = scmp.ge.s32.totalorder %s16, 4
      %s26 = sphi 0, %s28
      %s29 = sphi 0, %s26
      %s30 = sphi 0, %s29
      %s46 = sphi 0, %s30
      %s50 = sphi 0, %s50
      %s52 = sphi 0, %s50
      %s53 = sphi 0, %s52
      %s67 = sphi 0, %s53
      %s71 = sphi 0, %s71
      %s73 = sphi 0, %s71
      %s74 = sphi 0, %s73
      %s88 = sphi 0, %s74
      %s92 = sphi 0, %s92
      %s94 = sphi 0, %s92
      %s95 = sphi 0, %s94
      %s109 = sphi 0, %s95
      %s113 = sphi 0, %s113
      %s115 = sphi 0, %s113
      %s116 = sphi 0, %s115
      %s130 = sphi 0, %s116
      %s134 = sphi 0, %s134
      %s136 = sphi 0, %s134
      %s137 = sphi 0, %s136
      %s151 = sphi 0, %s137
      %s155 = sphi 0, %s155
      %s157 = sphi 0, %s155
      %s158 = sphi 0, %s157
      %s172 = sphi 0, %s158
      %s178 = sphi 0, %s180
      %s181 = sphi 0, %s178
      %s182 = sphi 0, %s181
      %s198 = sphi 0, %s182
    $region4: #{tpu_custom_call.1} parent=1 // loop_header_branch
      %19 = sbr.rel (%p17) target = $region8
    $region5: #{tpu_custom_call.1} parent=1 // loop_body
      %s21 = ssub.s32 %s16, 1
      %s22 = ssub.s32 %s16, 2
      %s23 = sadd.s32 %s16, 1
      %s24 = ssub.s32 %s16, %s23
      %p25 = scmp.eq.s32.totalorder %s24, 0
      %s27 = sadd.s32 %s26, 1
      %s28 = scalar_select %p25, %s26, %s27
      %p31 = pneg %p25
      %p32 = scmp.eq.s32.totalorder %s16, 1
      %p33 = por %p31, %p32
      %p34 = scmp.ne.s32.totalorder %s26, %s29
      %p35 = scmp.eq.s32.totalorder %s16, 0
      %p36 = por %p34, %p35
      %p37 = scmp.ne.s32.totalorder %s26, %s29
      %p38 = scmp.eq.s32.totalorder %s21, 1
      %p39 = por %p37, %p38
      %p40 = scmp.ne.s32.totalorder %s29, %s30
      %p41 = scmp.eq.s32.totalorder %s21, 0
      %p42 = por %p40, %p41
      %p43 = scmp.ne.s32.totalorder %s29, %s30
      %p44 = scmp.eq.s32.totalorder %s22, 1
      %p45 = por %p43, %p44
      %p47 = scmp.ne.s32.totalorder %s30, %s46
      %p48 = scmp.eq.s32.totalorder %s22, 0
      %p49 = por %p47, %p48
      %s51 = sadd.s32 %s50, 1
      %p54 = scmp.eq.s32.totalorder %s16, 1
      %p55 = scmp.ne.s32.totalorder %s50, %s52
      %p56 = scmp.eq.s32.totalorder %s16, 0
      %p57 = por %p55, %p56
      %p58 = scmp.ne.s32.totalorder %s50, %s52
      %p59 = scmp.eq.s32.totalorder %s21, 1
      %p60 = por %p58, %p59
      %p61 = scmp.ne.s32.totalorder %s52, %s53
      %p62 = scmp.eq.s32.totalorder %s21, 0
      %p63 = por %p61, %p62
      %p64 = scmp.ne.s32.totalorder %s52, %s53
      %p65 = scmp.eq.s32.totalorder %s22, 1
      %p66 = por %p64, %p65
      %p68 = scmp.ne.s32.totalorder %s53, %s67
      %p69 = scmp.eq.s32.totalorder %s22, 0
      %p70 = por %p68, %p69
      %s72 = sadd.s32 %s71, 1
      %p75 = scmp.eq.s32.totalorder %s16, 1
      %p76 = scmp.ne.s32.totalorder %s71, %s73
      %p77 = scmp.eq.s32.totalorder %s16, 0
      %p78 = por %p76, %p77
      %p79 = scmp.ne.s32.totalorder %s71, %s73
      %p80 = scmp.eq.s32.totalorder %s21, 1
      %p81 = por %p79, %p80
      %p82 = scmp.ne.s32.totalorder %s73, %s74
      %p83 = scmp.eq.s32.totalorder %s21, 0
      %p84 = por %p82, %p83
      %p85 = scmp.ne.s32.totalorder %s73, %s74
      %p86 = scmp.eq.s32.totalorder %s22, 1
      %p87 = por %p85, %p86
      %p89 = scmp.ne.s32.totalorder %s74, %s88
      %p90 = scmp.eq.s32.totalorder %s22, 0
      %p91 = por %p89, %p90
      %s93 = sadd.s32 %s92, 1
      %p96 = scmp.eq.s32.totalorder %s16, 1
      %p97 = scmp.ne.s32.totalorder %s92, %s94
      %p98 = scmp.eq.s32.totalorder %s16, 0
      %p99 = por %p97, %p98
      %p100 = scmp.ne.s32.totalorder %s92, %s94
      %p101 = scmp.eq.s32.totalorder %s21, 1
      %p102 = por %p100, %p101
      %p103 = scmp.ne.s32.totalorder %s94, %s95
      %p104 = scmp.eq.s32.totalorder %s21, 0
      %p105 = por %p103, %p104
      %p106 = scmp.ne.s32.totalorder %s94, %s95
      %p107 = scmp.eq.s32.totalorder %s22, 1
      %p108 = por %p106, %p107
      %p110 = scmp.ne.s32.totalorder %s95, %s109
      %p111 = scmp.eq.s32.totalorder %s22, 0
      %p112 = por %p110, %p111
      %s114 = sadd.s32 %s113, 1
      %p117 = scmp.eq.s32.totalorder %s16, 1
      %p118 = scmp.ne.s32.totalorder %s113, %s115
      %p119 = scmp.eq.s32.totalorder %s16, 0
      %p120 = por %p118, %p119
      %p121 = scmp.ne.s32.totalorder %s113, %s115
      %p122 = scmp.eq.s32.totalorder %s21, 1
      %p123 = por %p121, %p122
      %p124 = scmp.ne.s32.totalorder %s115, %s116
      %p125 = scmp.eq.s32.totalorder %s21, 0
      %p126 = por %p124, %p125
      %p127 = scmp.ne.s32.totalorder %s115, %s116
      %p128 = scmp.eq.s32.totalorder %s22, 1
      %p129 = por %p127, %p128
      %p131 = scmp.ne.s32.totalorder %s116, %s130
      %p132 = scmp.eq.s32.totalorder %s22, 0
      %p133 = por %p131, %p132
      %s135 = sadd.s32 %s134, 1
      %p138 = scmp.eq.s32.totalorder %s16, 1
      %p139 = scmp.ne.s32.totalorder %s134, %s136
      %p140 = scmp.eq.s32.totalorder %s16, 0
      %p141 = por %p139, %p140
      %p142 = scmp.ne.s32.totalorder %s134, %s136
      %p143 = scmp.eq.s32.totalorder %s21, 1
      %p144 = por %p142, %p143
      %p145 = scmp.ne.s32.totalorder %s136, %s137
      %p146 = scmp.eq.s32.totalorder %s21, 0
      %p147 = por %p145, %p146
      %p148 = scmp.ne.s32.totalorder %s136, %s137
      %p149 = scmp.eq.s32.totalorder %s22, 1
      %p150 = por %p148, %p149
      %p152 = scmp.ne.s32.totalorder %s137, %s151
      %p153 = scmp.eq.s32.totalorder %s22, 0
      %p154 = por %p152, %p153
      %s156 = sadd.s32 %s155, 1
      %p159 = scmp.eq.s32.totalorder %s16, 1
      %p160 = scmp.ne.s32.totalorder %s155, %s157
      %p161 = scmp.eq.s32.totalorder %s16, 0
      %p162 = por %p160, %p161
      %p163 = scmp.ne.s32.totalorder %s155, %s157
      %p164 = scmp.eq.s32.totalorder %s21, 1
      %p165 = por %p163, %p164
      %p166 = scmp.ne.s32.totalorder %s157, %s158
      %p167 = scmp.eq.s32.totalorder %s21, 0
      %p168 = por %p166, %p167
      %p169 = scmp.ne.s32.totalorder %s157, %s158
      %p170 = scmp.eq.s32.totalorder %s22, 1
      %p171 = por %p169, %p170
      %p173 = scmp.ne.s32.totalorder %s158, %s172
      %p174 = scmp.eq.s32.totalorder %s22, 0
      %p175 = por %p173, %p174
      %s176 = ssub.s32 %s16, %s23
      %p177 = scmp.eq.s32.totalorder %s176, 0
      %s179 = sadd.s32 %s178, 1
      %s180 = scalar_select %p177, %s178, %s179
      %p183 = pneg %p177
      %p184 = scmp.eq.s32.totalorder %s16, 1
      %p185 = por %p183, %p184
      %p186 = scmp.ne.s32.totalorder %s178, %s181
      %p187 = scmp.eq.s32.totalorder %s16, 0
      %p188 = por %p186, %p187
      %p189 = scmp.ne.s32.totalorder %s178, %s181
      %p190 = scmp.eq.s32.totalorder %s21, 1
      %p191 = por %p189, %p190
      %p192 = scmp.ne.s32.totalorder %s181, %s182
      %p193 = scmp.eq.s32.totalorder %s21, 0
      %p194 = por %p192, %p193
      %p195 = scmp.ne.s32.totalorder %s181, %s182
      %p196 = scmp.eq.s32.totalorder %s22, 1
      %p197 = por %p195, %p196
      %p199 = scmp.ne.s32.totalorder %s182, %s198
      %p200 = scmp.eq.s32.totalorder %s22, 0
      %p201 = por %p199, %p200
      %p202 = scmp.le.s32.totalorder 1, %s16
      %p203 = scmp.lt.s32.totalorder %s16, 3
      %p204 = pnand %p202, %p203
      %p205 = pneg %p204
      // Predicated region
      $region9: #{tpu_custom_call.1} parent=5 // pred_check
        _
      $region10: #{tpu_custom_call.1} parent=5 // pred_check_branch
        %207 = sbr.rel (%p204) target = $region12
      $region11: #{tpu_custom_call.1} parent=5 // pred_region
        %s208 = ssub.s32 %s16, 1
        // Predicated region
        $region13: #{tpu_custom_call.1} parent=11 // pred_check
          %p209 = pneg %p63
        $region14: #{tpu_custom_call.1} parent=11 // pred_check_branch
          %211 = sbr.rel (%p209) target = $region16
        $region15: #{tpu_custom_call.1} parent=11 // pred_region
          _
        $region16: #{tpu_custom_call.1} parent=11 // pred_fallthru
          _
        // Predicated region
        $region17: #{tpu_custom_call.1} parent=11 // pred_check
          %p212 = pneg %p84
        $region18: #{tpu_custom_call.1} parent=11 // pred_check_branch
          %214 = sbr.rel (%p212) target = $region20
        $region19: #{tpu_custom_call.1} parent=11 // pred_region
          _
        $region20: #{tpu_custom_call.1} parent=11 // pred_fallthru
          _
        // Predicated region
        $region21: #{tpu_custom_call.1} parent=11 // pred_check
          %p215 = pneg %p105
        $region22: #{tpu_custom_call.1} parent=11 // pred_check_branch
          %217 = sbr.rel (%p215) target = $region24
        $region23: #{tpu_custom_call.1} parent=11 // pred_region
          _
        $region24: #{tpu_custom_call.1} parent=11 // pred_fallthru
          _
        // Predicated region
        $region25: #{tpu_custom_call.1} parent=11 // pred_check
          %p218 = pneg %p126
        $region26: #{tpu_custom_call.1} parent=11 // pred_check_branch
          %220 = sbr.rel (%p218) target = $region28
        $region27: #{tpu_custom_call.1} parent=11 // pred_region
          _
        $region28: #{tpu_custom_call.1} parent=11 // pred_fallthru
          _
        // Predicated region
        $region29: #{tpu_custom_call.1} parent=11 // pred_check
          %p221 = pneg %p147
        $region30: #{tpu_custom_call.1} parent=11 // pred_check_branch
          %223 = sbr.rel (%p221) target = $region32
        $region31: #{tpu_custom_call.1} parent=11 // pred_region
          _
        $region32: #{tpu_custom_call.1} parent=11 // pred_fallthru
          _
        // Predicated region
        $region33: #{tpu_custom_call.1} parent=11 // pred_check
          %p224 = pneg %p168
        $region34: #{tpu_custom_call.1} parent=11 // pred_check_branch
          %226 = sbr.rel (%p224) target = $region36
        $region35: #{tpu_custom_call.1} parent=11 // pred_region
          _
        $region36: #{tpu_custom_call.1} parent=11 // pred_fallthru
          _
      $region12: #{tpu_custom_call.1} parent=5 // pred_fallthru
        _
      %p227 = scmp.lt.s32.totalorder %s16, 2
      // Predicated region
      $region37: #{tpu_custom_call.1} parent=5 // pred_check
        %p228 = pneg %p227
      $region38: #{tpu_custom_call.1} parent=5 // pred_check_branch
        %230 = sbr.rel (%p228) target = $region40
      $region39: #{tpu_custom_call.1} parent=5 // pred_region
        // Predicated region
        $region41: #{tpu_custom_call.1} parent=39 // pred_check
          %p231 = pneg %p36
        $region42: #{tpu_custom_call.1} parent=39 // pred_check_branch
          %233 = sbr.rel (%p231) target = $region44
        $region43: #{tpu_custom_call.1} parent=39 // pred_region
          %s234 = smul.u32 16, %s16
          %p235 = scmp.lt.s32.totalorder %s234, 31
          %s236 = scalar_select %p235, %s234, 31
          %s237 = smul.addr %s236, 8
          %s238 = scalar_lea.vmem %s0, %s237
          %s239 = smul.u32 16, %s16
        $region44: #{tpu_custom_call.1} parent=39 // pred_fallthru
          _
      $region40: #{tpu_custom_call.1} parent=5 // pred_fallthru
        _
      %p240 = scmp.le.s32.totalorder 1, %s16
      %p241 = scmp.lt.s32.totalorder %s16, 3
      %p242 = pnand %p240, %p241
      %p243 = pneg %p242
      // Predicated region
      $region45: #{tpu_custom_call.1} parent=5 // pred_check
        _
      $region46: #{tpu_custom_call.1} parent=5 // pred_check_branch
        %245 = sbr.rel (%p242) target = $region48
      $region47: #{tpu_custom_call.1} parent=5 // pred_region
        %s246 = ssub.s32 %s16, 1
        %s247 = smul.u32 16, %s21
        %p248 = scmp.lt.s32.totalorder %s247, 31
        %s249 = scalar_select %p248, %s247, 31
        %s250 = smul.addr %s249, 8
        %s251 = scalar_lea.vmem %s0, %s250
        %p252 = pneg %p42
        %p253 = pneg %p39
        %p254 = pneg %p63
        %p255 = pneg %p60
        %p256 = pneg %p84
        %p257 = pneg %p81
        %p258 = pneg %p105
        %p259 = pneg %p102
        %p260 = pneg %p126
        %p261 = pneg %p123
        %p262 = pneg %p147
        %p263 = pneg %p144
        %p264 = pneg %p168
        %p265 = pneg %p165
        %p266 = pneg %p194
        %p267 = pneg %p191
        %s268 = sand.u32 %s181, 1
        %s269 = scalar_lea.sflag [#allocation4], %s268
        %s270 = sand.u32 %s181, 1
        %s271 = smul.addr %s270, 128
        %s272 = scalar_lea.vmem [#allocation3], %s271
        %s273 = smul.u32 16, %s21
        %p274 = scmp.lt.s32.totalorder %s273, 31
        %s275 = scalar_select %p274, %s273, 31
        %s276 = smul.addr %s275, 8
        %s277 = scalar_lea.vmem %s0, %s276
        %s278 = smul.u32 16, %s21
        %s279 = smul.u32 16, %s21
        %v281 = vld [vmem:[%s277] sm:$0xff]
        %v282 = vld [vmem:[%s277 + $0x8] sm:$0xff]
        %v283 = vld [vmem:[%s277 + $0x10] sm:$0xff]
        %v284 = vld [vmem:[%s277 + $0x18] sm:$0xff]
        %v285 = vld [vmem:[%s277 + $0x20] sm:$0xff]
        %v286 = vld [vmem:[%s277 + $0x28] sm:$0xff]
        %v287 = vld [vmem:[%s277 + $0x30] sm:$0xff]
        %v288 = vld [vmem:[%s277 + $0x38] sm:$0xff]
        %v289 = vld [vmem:[%s277 + $0x40] sm:$0xff]
        %v290 = vld [vmem:[%s277 + $0x48] sm:$0xff]
        %v291 = vld [vmem:[%s277 + $0x50] sm:$0xff]
        %v292 = vld [vmem:[%s277 + $0x58] sm:$0xff]
        %v293 = vld [vmem:[%s277 + $0x60] sm:$0xff]
        %v294 = vld [vmem:[%s277 + $0x68] sm:$0xff]
        %v295 = vld [vmem:[%s277 + $0x70] sm:$0xff]
        %v296 = vld [vmem:[%s277 + $0x78] sm:$0xff]
        %v297 = vld [vmem:[%s1] sm:$0x1]
        %299 = vset.pattern.permute.xlu0 0
        %300 = vperm.xlu0 %299, %v281
        %v301 = vpop.permute.xlu0 %300
        %304 = vset.pattern.permute.xlu0 0
        %305 = vperm.xlu0 %304, %v282
        %v306 = vpop.permute.xlu0 %305
        %309 = vset.pattern.permute.xlu0 0
        %310 = vperm.xlu0 %309, %v283
        %v311 = vpop.permute.xlu0 %310
        %314 = vset.pattern.permute.xlu0 0
        %315 = vperm.xlu0 %314, %v284
        %v316 = vpop.permute.xlu0 %315
        %319 = vset.pattern.permute.xlu0 0
        %320 = vperm.xlu0 %319, %v285
        %v321 = vpop.permute.xlu0 %320
        %324 = vset.pattern.permute.xlu0 0
        %325 = vperm.xlu0 %324, %v286
        %v326 = vpop.permute.xlu0 %325
        %329 = vset.pattern.permute.xlu0 0
        %330 = vperm.xlu0 %329, %v287
        %v331 = vpop.permute.xlu0 %330
        %334 = vset.pattern.permute.xlu0 0
        %335 = vperm.xlu0 %334, %v288
        %v336 = vpop.permute.xlu0 %335
        %339 = vset.pattern.permute.xlu0 0
        %340 = vperm.xlu0 %339, %v289
        %v341 = vpop.permute.xlu0 %340
        %344 = vset.pattern.permute.xlu0 0
        %345 = vperm.xlu0 %344, %v290
        %v346 = vpop.permute.xlu0 %345
        %349 = vset.pattern.permute.xlu0 0
        %350 = vperm.xlu0 %349, %v291
        %v351 = vpop.permute.xlu0 %350
        %354 = vset.pattern.permute.xlu0 0
        %355 = vperm.xlu0 %354, %v292
        %v356 = vpop.permute.xlu0 %355
        %359 = vset.pattern.permute.xlu0 0
        %360 = vperm.xlu0 %359, %v293
        %v361 = vpop.permute.xlu0 %360
        %364 = vset.pattern.permute.xlu0 0
        %365 = vperm.xlu0 %364, %v294
        %v366 = vpop.permute.xlu0 %365
        %369 = vset.pattern.permute.xlu0 0
        %370 = vperm.xlu0 %369, %v295
        %v371 = vpop.permute.xlu0 %370
        %374 = vset.pattern.permute.xlu0 0
        %375 = vperm.xlu0 %374, %v296
        %v376 = vpop.permute.xlu0 %375
        %v379 = vlaneseq
        %v380 = vshrl.u32 %v379, 7
        %v381 = vsub.s32 0, %v380
        %v382 = vrot.slane %v297, %v381
        %v384 = vmul.f32 %v301, %v382
        %v385 = vmul.f32 %v306, %v382
        %v386 = vmul.f32 %v311, %v382
        %v387 = vmul.f32 %v316, %v382
        %v388 = vmul.f32 %v321, %v382
        %v389 = vmul.f32 %v326, %v382
        %v390 = vmul.f32 %v331, %v382
        %v391 = vmul.f32 %v336, %v382
        %v392 = vmul.f32 %v341, %v382
        %v393 = vmul.f32 %v346, %v382
        %v394 = vmul.f32 %v351, %v382
        %v395 = vmul.f32 %v356, %v382
        %v396 = vmul.f32 %v361, %v382
        %v397 = vmul.f32 %v366, %v382
        %v398 = vmul.f32 %v371, %v382
        %v399 = vmul.f32 %v376, %v382
        %v400 = vld [vmem:[%s2] sm:$0x1]
        %v402 = vlaneseq
        %v403 = vshrl.u32 %v402, 7
        %v404 = vsub.s32 0, %v403
        %v405 = vrot.slane %v400, %v404
        %v407 = vadd.f32 %v384, %v405
        %v408 = vadd.f32 %v385, %v405
        %v409 = vadd.f32 %v386, %v405
        %v410 = vadd.f32 %v387, %v405
        %v411 = vadd.f32 %v388, %v405
        %v412 = vadd.f32 %v389, %v405
        %v413 = vadd.f32 %v390, %v405
        %v414 = vadd.f32 %v391, %v405
        %v415 = vadd.f32 %v392, %v405
        %v416 = vadd.f32 %v393, %v405
        %v417 = vadd.f32 %v394, %v405
        %v418 = vadd.f32 %v395, %v405
        %v419 = vadd.f32 %v396, %v405
        %v420 = vadd.f32 %v397, %v405
        %v421 = vadd.f32 %v398, %v405
        %v422 = vadd.f32 %v399, %v405
        %v423 = vand.u32 2147483647, %v407
        %vm424 = vcmp.le.f32.partialorder %v423, 0.7853982
        %vm425 = vcmp.lt.s32.totalorder %v407, 0
        %v426 = vand.u32 %v407, 2139095040
        %v427 = vshrl.u32 %v426, 23
        %v428 = vsub.s32 %v427, 127
        %v429 = vand.u32 2147483647, %v407
        %v430 = vand.u32 %v429, 8388607
        %v431 = vor.u32 %v430, 8388608
        %v432 = vsub.s32 0, %v431
        %v433 = vadd.s32 %v428, 1
        %vm434 = vcmp.gt.s32.totalorder %v433, 0
        %v435 = vsel %vm434, %v433, 0
        %v436 = vshrl.u32 %v435, 5
        %v437 = vand.u32 %v435, 31
        %v438 = vsub.s32 32, %v437
        %v439 = vshrl.u32 683565275, %v438
        %v440 = vshll.u32 683565275, %v437
        %v441 = vshrl.u32 2475754826, %v438
        %v442 = vor.u32 %v440, %v441
        %v443 = vshll.u32 2475754826, %v437
        %v444 = vshrl.u32 2131351028, %v438
        %v445 = vor.u32 %v443, %v444
        %v446 = vshll.u32 2131351028, %v437
        %v447 = vshrl.u32 2102212464, %v438
        %v448 = vor.u32 %v446, %v447
        %v449 = vshll.u32 2102212464, %v437
        %v450 = vshrl.u32 920167782, %v438
        %v451 = vor.u32 %v449, %v450
        %v452 = vshll.u32 920167782, %v437
        %v453 = vshrl.u32 1326507024, %v438
        %v454 = vor.u32 %v452, %v453
        %vm455 = vcmp.lt.s32.totalorder %v436, 1
        %vm456 = vcmp.lt.s32.totalorder %v436, 2
        %vm457 = vcmp.lt.s32.totalorder %v436, 3
        %vm458 = vcmp.lt.s32.totalorder %v436, 4
        %v459 = vsel %vm455, %v439, %v442
        %v460 = vsel %vm458, %v448, 2102212464
        %v461 = vsel %vm457, %v445, %v460
        %v462 = vsel %vm456, %v459, %v461
        %v463 = vsel %vm455, %v442, %v445
        %v464 = vsel %vm458, %v451, 920167782
        %v465 = vsel %vm457, %v448, %v464
        %v466 = vsel %vm456, %v463, %v465
        %v467 = vsel %vm455, %v445, %v448
        %v468 = vsel %vm458, %v454, 1326507024
        %v469 = vsel %vm457, %v451, %v468
        %v470 = vsel %vm456, %v467, %v469
        %v471 = vshll.u32 %v431, 8
        %v472 = vmul.u32.u64.compose %v471, %v470
        %v473 = vextract.low.u32 %v472
        %v474 = vextract.high.u32 %v472
        %v475 = vmul.u32.u64.compose %v471, %v466
        %v476 = vextract.low.u32 %v475
        %v477 = vextract.high.u32 %v475
        %v478 = vmul.u32 %v471, %v462
        %v479 = vadd.s32 %v474, %v476
        %vm480 = vc.u32 %v474, %v476
        %v481 = vadd.s32 %v477, 1
        %v482 = vsel %vm480, %v481, %v477
        %v483 = vadd.s32 %v478, %v482
        %v484 = vadd.s32 %v483, 536870912
        %v485 = vshrl.u32 %v484, 30
        %v486 = vshll.u32 %v485, 30
        %v487 = vsub.s32 %v483, %v486
        %vm488 = vcmp.lt.s32.totalorder %v487, 0
        %v489 = vsub.s32 0, %v487
        %v490 = vsel %vm488, %v489, %v487
        %v491 = vclz %v490
        %v492 = vsub.s32 %v491, 2
        %vm493 = vcmp.gt.s32.totalorder 0, %v492
        %v494 = vsel %vm493, 0, %v492
        %v495 = vsub.s32 32, %v494
        %v496 = vshll.u32 %v487, %v494
        %v497 = vshrl.u32 %v479, %v495
        %v498 = vor.u32 %v496, %v497
        %v499 = vsub.s32 4294967266, %v494
        %v500 = vadd.s32 %v499, 127
        %v501 = vshll.u32 %v500, 23
        %v502 = vor.u32 4788187, %v501
        %v503 = vand.u32 2147483647, %v502
        %v505 = vcvt.s32.f32 %v498
        %v506 = vmul.f32 %v505, %v503
        %v507 = vxor.u32 %v506, 2147483648
        %v508 = vsel %vm425, %v507, %v506
        %v509 = vsub.s32 4, %v485
        %v510 = vsel %vm425, %v509, %v485
        %v511 = vsel %vm424, %v407, %v508
        %v512 = vsel %vm424, 0, %v510
        %v513 = vcosq.f32.pop %v511
        %v514 = vsinq.f32.pop %v511
        %vm515 = vweird.f32 %v407
        %v516 = vadd.s32 %v512, 3
        %v517 = vand.u32 %v516, 3
        %vm518 = vcmp.lt.s32.totalorder %v517, 2
        %vm519 = vcmp.eq.s32.totalorder %v517, 0
        %v520 = vxor.u32 %v514, 2147483648
        %v521 = vsel %vm519, %v513, %v520
        %vm522 = vcmp.eq.s32.totalorder %v517, 2
        %v523 = vxor.u32 %v513, 2147483648
        %v524 = vsel %vm522, %v523, %v514
        %v525 = vsel %vm518, %v521, %v524
        %v526 = vsel %vm515, nan, %v525
        %v527 = vand.u32 2147483647, %v408
        %vm528 = vcmp.le.f32.partialorder %v527, 0.7853982
        %vm529 = vcmp.lt.s32.totalorder %v408, 0
        %v530 = vand.u32 %v408, 2139095040
        %v531 = vshrl.u32 %v530, 23
        %v532 = vsub.s32 %v531, 127
        %v533 = vand.u32 2147483647, %v408
        %v534 = vand.u32 %v533, 8388607
        %v535 = vor.u32 %v534, 8388608
        %v536 = vsub.s32 0, %v535
        %v537 = vadd.s32 %v532, 1
        %vm538 = vcmp.gt.s32.totalorder %v537, 0
        %v539 = vsel %vm538, %v537, 0
        %v540 = vshrl.u32 %v539, 5
        %v541 = vand.u32 %v539, 31
        %v542 = vsub.s32 32, %v541
        %v543 = vshrl.u32 683565275, %v542
        %v544 = vshll.u32 683565275, %v541
        %v545 = vshrl.u32 2475754826, %v542
        %v546 = vor.u32 %v544, %v545
        %v547 = vshll.u32 2475754826, %v541
        %v548 = vshrl.u32 2131351028, %v542
        %v549 = vor.u32 %v547, %v548
        %v550 = vshll.u32 2131351028, %v541
        %v551 = vshrl.u32 2102212464, %v542
        %v552 = vor.u32 %v550, %v551
        %v553 = vshll.u32 2102212464, %v541
        %v554 = vshrl.u32 920167782, %v542
        %v555 = vor.u32 %v553, %v554
        %v556 = vshll.u32 920167782, %v541
        %v557 = vshrl.u32 1326507024, %v542
        %v558 = vor.u32 %v556, %v557
        %vm559 = vcmp.lt.s32.totalorder %v540, 1
        %vm560 = vcmp.lt.s32.totalorder %v540, 2
        %vm561 = vcmp.lt.s32.totalorder %v540, 3
        %vm562 = vcmp.lt.s32.totalorder %v540, 4
        %v563 = vsel %vm559, %v543, %v546
        %v564 = vsel %vm562, %v552, 2102212464
        %v565 = vsel %vm561, %v549, %v564
        %v566 = vsel %vm560, %v563, %v565
        %v567 = vsel %vm559, %v546, %v549
        %v568 = vsel %vm562, %v555, 920167782
        %v569 = vsel %vm561, %v552, %v568
        %v570 = vsel %vm560, %v567, %v569
        %v571 = vsel %vm559, %v549, %v552
        %v572 = vsel %vm562, %v558, 1326507024
        %v573 = vsel %vm561, %v555, %v572
        %v574 = vsel %vm560, %v571, %v573
        %v575 = vshll.u32 %v535, 8
        %v576 = vmul.u32.u64.compose %v575, %v574
        %v577 = vextract.low.u32 %v576
        %v578 = vextract.high.u32 %v576
        %v579 = vmul.u32.u64.compose %v575, %v570
        %v580 = vextract.low.u32 %v579
        %v581 = vextract.high.u32 %v579
        %v582 = vmul.u32 %v575, %v566
        %v583 = vadd.s32 %v578, %v580
        %vm584 = vc.u32 %v578, %v580
        %v585 = vadd.s32 %v581, 1
        %v586 = vsel %vm584, %v585, %v581
        %v587 = vadd.s32 %v582, %v586
        %v588 = vadd.s32 %v587, 536870912
        %v589 = vshrl.u32 %v588, 30
        %v590 = vshll.u32 %v589, 30
        %v591 = vsub.s32 %v587, %v590
        %vm592 = vcmp.lt.s32.totalorder %v591, 0
        %v593 = vsub.s32 0, %v591
        %v594 = vsel %vm592, %v593, %v591
        %v595 = vclz %v594
        %v596 = vsub.s32 %v595, 2
        %vm597 = vcmp.gt.s32.totalorder 0, %v596
        %v598 = vsel %vm597, 0, %v596
        %v599 = vsub.s32 32, %v598
        %v600 = vshll.u32 %v591, %v598
        %v601 = vshrl.u32 %v583, %v599
        %v602 = vor.u32 %v600, %v601
        %v603 = vsub.s32 4294967266, %v598
        %v604 = vadd.s32 %v603, 127
        %v605 = vshll.u32 %v604, 23
        %v606 = vor.u32 4788187, %v605
        %v607 = vand.u32 2147483647, %v606
        %v609 = vcvt.s32.f32 %v602
        %v610 = vmul.f32 %v609, %v607
        %v611 = vxor.u32 %v610, 2147483648
        %v612 = vsel %vm529, %v611, %v610
        %v613 = vsub.s32 4, %v589
        %v614 = vsel %vm529, %v613, %v589
        %v615 = vsel %vm528, %v408, %v612
        %v616 = vsel %vm528, 0, %v614
        %v617 = vcosq.f32.pop %v615
        %v618 = vsinq.f32.pop %v615
        %vm619 = vweird.f32 %v408
        %v620 = vadd.s32 %v616, 3
        %v621 = vand.u32 %v620, 3
        %vm622 = vcmp.lt.s32.totalorder %v621, 2
        %vm623 = vcmp.eq.s32.totalorder %v621, 0
        %v624 = vxor.u32 %v618, 2147483648
        %v625 = vsel %vm623, %v617, %v624
        %vm626 = vcmp.eq.s32.totalorder %v621, 2
        %v627 = vxor.u32 %v617, 2147483648
        %v628 = vsel %vm626, %v627, %v618
        %v629 = vsel %vm622, %v625, %v628
        %v630 = vsel %vm619, nan, %v629
        %v631 = vand.u32 2147483647, %v409
        %vm632 = vcmp.le.f32.partialorder %v631, 0.7853982
        %vm633 = vcmp.lt.s32.totalorder %v409, 0
        %v634 = vand.u32 %v409, 2139095040
        %v635 = vshrl.u32 %v634, 23
        %v636 = vsub.s32 %v635, 127
        %v637 = vand.u32 2147483647, %v409
        %v638 = vand.u32 %v637, 8388607
        %v639 = vor.u32 %v638, 8388608
        %v640 = vsub.s32 0, %v639
        %v641 = vadd.s32 %v636, 1
        %vm642 = vcmp.gt.s32.totalorder %v641, 0
        %v643 = vsel %vm642, %v641, 0
        %v644 = vshrl.u32 %v643, 5
        %v645 = vand.u32 %v643, 31
        %v646 = vsub.s32 32, %v645
        %v647 = vshrl.u32 683565275, %v646
        %v648 = vshll.u32 683565275, %v645
        %v649 = vshrl.u32 2475754826, %v646
        %v650 = vor.u32 %v648, %v649
        %v651 = vshll.u32 2475754826, %v645
        %v652 = vshrl.u32 2131351028, %v646
        %v653 = vor.u32 %v651, %v652
        %v654 = vshll.u32 2131351028, %v645
        %v655 = vshrl.u32 2102212464, %v646
        %v656 = vor.u32 %v654, %v655
        %v657 = vshll.u32 2102212464, %v645
        %v658 = vshrl.u32 920167782, %v646
        %v659 = vor.u32 %v657, %v658
        %v660 = vshll.u32 920167782, %v645
        %v661 = vshrl.u32 1326507024, %v646
        %v662 = vor.u32 %v660, %v661
        %vm663 = vcmp.lt.s32.totalorder %v644, 1
        %vm664 = vcmp.lt.s32.totalorder %v644, 2
        %vm665 = vcmp.lt.s32.totalorder %v644, 3
        %vm666 = vcmp.lt.s32.totalorder %v644, 4
        %v667 = vsel %vm663, %v647, %v650
        %v668 = vsel %vm666, %v656, 2102212464
        %v669 = vsel %vm665, %v653, %v668
        %v670 = vsel %vm664, %v667, %v669
        %v671 = vsel %vm663, %v650, %v653
        %v672 = vsel %vm666, %v659, 920167782
        %v673 = vsel %vm665, %v656, %v672
        %v674 = vsel %vm664, %v671, %v673
        %v675 = vsel %vm663, %v653, %v656
        %v676 = vsel %vm666, %v662, 1326507024
        %v677 = vsel %vm665, %v659, %v676
        %v678 = vsel %vm664, %v675, %v677
        %v679 = vshll.u32 %v639, 8
        %v680 = vmul.u32.u64.compose %v679, %v678
        %v681 = vextract.low.u32 %v680
        %v682 = vextract.high.u32 %v680
        %v683 = vmul.u32.u64.compose %v679, %v674
        %v684 = vextract.low.u32 %v683
        %v685 = vextract.high.u32 %v683
        %v686 = vmul.u32 %v679, %v670
        %v687 = vadd.s32 %v682, %v684
        %vm688 = vc.u32 %v682, %v684
        %v689 = vadd.s32 %v685, 1
        %v690 = vsel %vm688, %v689, %v685
        %v691 = vadd.s32 %v686, %v690
        %v692 = vadd.s32 %v691, 536870912
        %v693 = vshrl.u32 %v692, 30
        %v694 = vshll.u32 %v693, 30
        %v695 = vsub.s32 %v691, %v694
        %vm696 = vcmp.lt.s32.totalorder %v695, 0
        %v697 = vsub.s32 0, %v695
        %v698 = vsel %vm696, %v697, %v695
        %v699 = vclz %v698
        %v700 = vsub.s32 %v699, 2
        %vm701 = vcmp.gt.s32.totalorder 0, %v700
        %v702 = vsel %vm701, 0, %v700
        %v703 = vsub.s32 32, %v702
        %v704 = vshll.u32 %v695, %v702
        %v705 = vshrl.u32 %v687, %v703
        %v706 = vor.u32 %v704, %v705
        %v707 = vsub.s32 4294967266, %v702
        %v708 = vadd.s32 %v707, 127
        %v709 = vshll.u32 %v708, 23
        %v710 = vor.u32 4788187, %v709
        %v711 = vand.u32 2147483647, %v710
        %v713 = vcvt.s32.f32 %v706
        %v714 = vmul.f32 %v713, %v711
        %v715 = vxor.u32 %v714, 2147483648
        %v716 = vsel %vm633, %v715, %v714
        %v717 = vsub.s32 4, %v693
        %v718 = vsel %vm633, %v717, %v693
        %v719 = vsel %vm632, %v409, %v716
        %v720 = vsel %vm632, 0, %v718
        %v721 = vcosq.f32.pop %v719
        %v722 = vsinq.f32.pop %v719
        %vm723 = vweird.f32 %v409
        %v724 = vadd.s32 %v720, 3
        %v725 = vand.u32 %v724, 3
        %vm726 = vcmp.lt.s32.totalorder %v725, 2
        %vm727 = vcmp.eq.s32.totalorder %v725, 0
        %v728 = vxor.u32 %v722, 2147483648
        %v729 = vsel %vm727, %v721, %v728
        %vm730 = vcmp.eq.s32.totalorder %v725, 2
        %v731 = vxor.u32 %v721, 2147483648
        %v732 = vsel %vm730, %v731, %v722
        %v733 = vsel %vm726, %v729, %v732
        %v734 = vsel %vm723, nan, %v733
        %v735 = vand.u32 2147483647, %v410
        %vm736 = vcmp.le.f32.partialorder %v735, 0.7853982
        %vm737 = vcmp.lt.s32.totalorder %v410, 0
        %v738 = vand.u32 %v410, 2139095040
        %v739 = vshrl.u32 %v738, 23
        %v740 = vsub.s32 %v739, 127
        %v741 = vand.u32 2147483647, %v410
        %v742 = vand.u32 %v741, 8388607
        %v743 = vor.u32 %v742, 8388608
        %v744 = vsub.s32 0, %v743
        %v745 = vadd.s32 %v740, 1
        %vm746 = vcmp.gt.s32.totalorder %v745, 0
        %v747 = vsel %vm746, %v745, 0
        %v748 = vshrl.u32 %v747, 5
        %v749 = vand.u32 %v747, 31
        %v750 = vsub.s32 32, %v749
        %v751 = vshrl.u32 683565275, %v750
        %v752 = vshll.u32 683565275, %v749
        %v753 = vshrl.u32 2475754826, %v750
        %v754 = vor.u32 %v752, %v753
        %v755 = vshll.u32 2475754826, %v749
        %v756 = vshrl.u32 2131351028, %v750
        %v757 = vor.u32 %v755, %v756
        %v758 = vshll.u32 2131351028, %v749
        %v759 = vshrl.u32 2102212464, %v750
        %v760 = vor.u32 %v758, %v759
        %v761 = vshll.u32 2102212464, %v749
        %v762 = vshrl.u32 920167782, %v750
        %v763 = vor.u32 %v761, %v762
        %v764 = vshll.u32 920167782, %v749
        %v765 = vshrl.u32 1326507024, %v750
        %v766 = vor.u32 %v764, %v765
        %vm767 = vcmp.lt.s32.totalorder %v748, 1
        %vm768 = vcmp.lt.s32.totalorder %v748, 2
        %vm769 = vcmp.lt.s32.totalorder %v748, 3
        %vm770 = vcmp.lt.s32.totalorder %v748, 4
        %v771 = vsel %vm767, %v751, %v754
        %v772 = vsel %vm770, %v760, 2102212464
        %v773 = vsel %vm769, %v757, %v772
        %v774 = vsel %vm768, %v771, %v773
        %v775 = vsel %vm767, %v754, %v757
        %v776 = vsel %vm770, %v763, 920167782
        %v777 = vsel %vm769, %v760, %v776
        %v778 = vsel %vm768, %v775, %v777
        %v779 = vsel %vm767, %v757, %v760
        %v780 = vsel %vm770, %v766, 1326507024
        %v781 = vsel %vm769, %v763, %v780
        %v782 = vsel %vm768, %v779, %v781
        %v783 = vshll.u32 %v743, 8
        %v784 = vmul.u32.u64.compose %v783, %v782
        %v785 = vextract.low.u32 %v784
        %v786 = vextract.high.u32 %v784
        %v787 = vmul.u32.u64.compose %v783, %v778
        %v788 = vextract.low.u32 %v787
        %v789 = vextract.high.u32 %v787
        %v790 = vmul.u32 %v783, %v774
        %v791 = vadd.s32 %v786, %v788
        %vm792 = vc.u32 %v786, %v788
        %v793 = vadd.s32 %v789, 1
        %v794 = vsel %vm792, %v793, %v789
        %v795 = vadd.s32 %v790, %v794
        %v796 = vadd.s32 %v795, 536870912
        %v797 = vshrl.u32 %v796, 30
        %v798 = vshll.u32 %v797, 30
        %v799 = vsub.s32 %v795, %v798
        %vm800 = vcmp.lt.s32.totalorder %v799, 0
        %v801 = vsub.s32 0, %v799
        %v802 = vsel %vm800, %v801, %v799
        %v803 = vclz %v802
        %v804 = vsub.s32 %v803, 2
        %vm805 = vcmp.gt.s32.totalorder 0, %v804
        %v806 = vsel %vm805, 0, %v804
        %v807 = vsub.s32 32, %v806
        %v808 = vshll.u32 %v799, %v806
        %v809 = vshrl.u32 %v791, %v807
        %v810 = vor.u32 %v808, %v809
        %v811 = vsub.s32 4294967266, %v806
        %v812 = vadd.s32 %v811, 127
        %v813 = vshll.u32 %v812, 23
        %v814 = vor.u32 4788187, %v813
        %v815 = vand.u32 2147483647, %v814
        %v817 = vcvt.s32.f32 %v810
        %v818 = vmul.f32 %v817, %v815
        %v819 = vxor.u32 %v818, 2147483648
        %v820 = vsel %vm737, %v819, %v818
        %v821 = vsub.s32 4, %v797
        %v822 = vsel %vm737, %v821, %v797
        %v823 = vsel %vm736, %v410, %v820
        %v824 = vsel %vm736, 0, %v822
        %v825 = vcosq.f32.pop %v823
        %v826 = vsinq.f32.pop %v823
        %vm827 = vweird.f32 %v410
        %v828 = vadd.s32 %v824, 3
        %v829 = vand.u32 %v828, 3
        %vm830 = vcmp.lt.s32.totalorder %v829, 2
        %vm831 = vcmp.eq.s32.totalorder %v829, 0
        %v832 = vxor.u32 %v826, 2147483648
        %v833 = vsel %vm831, %v825, %v832
        %vm834 = vcmp.eq.s32.totalorder %v829, 2
        %v835 = vxor.u32 %v825, 2147483648
        %v836 = vsel %vm834, %v835, %v826
        %v837 = vsel %vm830, %v833, %v836
        %v838 = vsel %vm827, nan, %v837
        %v839 = vand.u32 2147483647, %v411
        %vm840 = vcmp.le.f32.partialorder %v839, 0.7853982
        %vm841 = vcmp.lt.s32.totalorder %v411, 0
        %v842 = vand.u32 %v411, 2139095040
        %v843 = vshrl.u32 %v842, 23
        %v844 = vsub.s32 %v843, 127
        %v845 = vand.u32 2147483647, %v411
        %v846 = vand.u32 %v845, 8388607
        %v847 = vor.u32 %v846, 8388608
        %v848 = vsub.s32 0, %v847
        %v849 = vadd.s32 %v844, 1
        %vm850 = vcmp.gt.s32.totalorder %v849, 0
        %v851 = vsel %vm850, %v849, 0
        %v852 = vshrl.u32 %v851, 5
        %v853 = vand.u32 %v851, 31
        %v854 = vsub.s32 32, %v853
        %v855 = vshrl.u32 683565275, %v854
        %v856 = vshll.u32 683565275, %v853
        %v857 = vshrl.u32 2475754826, %v854
        %v858 = vor.u32 %v856, %v857
        %v859 = vshll.u32 2475754826, %v853
        %v860 = vshrl.u32 2131351028, %v854
        %v861 = vor.u32 %v859, %v860
        %v862 = vshll.u32 2131351028, %v853
        %v863 = vshrl.u32 2102212464, %v854
        %v864 = vor.u32 %v862, %v863
        %v865 = vshll.u32 2102212464, %v853
        %v866 = vshrl.u32 920167782, %v854
        %v867 = vor.u32 %v865, %v866
        %v868 = vshll.u32 920167782, %v853
        %v869 = vshrl.u32 1326507024, %v854
        %v870 = vor.u32 %v868, %v869
        %vm871 = vcmp.lt.s32.totalorder %v852, 1
        %vm872 = vcmp.lt.s32.totalorder %v852, 2
        %vm873 = vcmp.lt.s32.totalorder %v852, 3
        %vm874 = vcmp.lt.s32.totalorder %v852, 4
        %v875 = vsel %vm871, %v855, %v858
        %v876 = vsel %vm874, %v864, 2102212464
        %v877 = vsel %vm873, %v861, %v876
        %v878 = vsel %vm872, %v875, %v877
        %v879 = vsel %vm871, %v858, %v861
        %v880 = vsel %vm874, %v867, 920167782
        %v881 = vsel %vm873, %v864, %v880
        %v882 = vsel %vm872, %v879, %v881
        %v883 = vsel %vm871, %v861, %v864
        %v884 = vsel %vm874, %v870, 1326507024
        %v885 = vsel %vm873, %v867, %v884
        %v886 = vsel %vm872, %v883, %v885
        %v887 = vshll.u32 %v847, 8
        %v888 = vmul.u32.u64.compose %v887, %v886
        %v889 = vextract.low.u32 %v888
        %v890 = vextract.high.u32 %v888
        %v891 = vmul.u32.u64.compose %v887, %v882
        %v892 = vextract.low.u32 %v891
        %v893 = vextract.high.u32 %v891
        %v894 = vmul.u32 %v887, %v878
        %v895 = vadd.s32 %v890, %v892
        %vm896 = vc.u32 %v890, %v892
        %v897 = vadd.s32 %v893, 1
        %v898 = vsel %vm896, %v897, %v893
        %v899 = vadd.s32 %v894, %v898
        %v900 = vadd.s32 %v899, 536870912
        %v901 = vshrl.u32 %v900, 30
        %v902 = vshll.u32 %v901, 30
        %v903 = vsub.s32 %v899, %v902
        %vm904 = vcmp.lt.s32.totalorder %v903, 0
        %v905 = vsub.s32 0, %v903
        %v906 = vsel %vm904, %v905, %v903
        %v907 = vclz %v906
        %v908 = vsub.s32 %v907, 2
        %vm909 = vcmp.gt.s32.totalorder 0, %v908
        %v910 = vsel %vm909, 0, %v908
        %v911 = vsub.s32 32, %v910
        %v912 = vshll.u32 %v903, %v910
        %v913 = vshrl.u32 %v895, %v911
        %v914 = vor.u32 %v912, %v913
        %v915 = vsub.s32 4294967266, %v910
        %v916 = vadd.s32 %v915, 127
        %v917 = vshll.u32 %v916, 23
        %v918 = vor.u32 4788187, %v917
        %v919 = vand.u32 2147483647, %v918
        %v921 = vcvt.s32.f32 %v914
        %v922 = vmul.f32 %v921, %v919
        %v923 = vxor.u32 %v922, 2147483648
        %v924 = vsel %vm841, %v923, %v922
        %v925 = vsub.s32 4, %v901
        %v926 = vsel %vm841, %v925, %v901
        %v927 = vsel %vm840, %v411, %v924
        %v928 = vsel %vm840, 0, %v926
        %v929 = vcosq.f32.pop %v927
        %v930 = vsinq.f32.pop %v927
        %vm931 = vweird.f32 %v411
        %v932 = vadd.s32 %v928, 3
        %v933 = vand.u32 %v932, 3
        %vm934 = vcmp.lt.s32.totalorder %v933, 2
        %vm935 = vcmp.eq.s32.totalorder %v933, 0
        %v936 = vxor.u32 %v930, 2147483648
        %v937 = vsel %vm935, %v929, %v936
        %vm938 = vcmp.eq.s32.totalorder %v933, 2
        %v939 = vxor.u32 %v929, 2147483648
        %v940 = vsel %vm938, %v939, %v930
        %v941 = vsel %vm934, %v937, %v940
        %v942 = vsel %vm931, nan, %v941
        %v943 = vand.u32 2147483647, %v412
        %vm944 = vcmp.le.f32.partialorder %v943, 0.7853982
        %vm945 = vcmp.lt.s32.totalorder %v412, 0
        %v946 = vand.u32 %v412, 2139095040
        %v947 = vshrl.u32 %v946, 23
        %v948 = vsub.s32 %v947, 127
        %v949 = vand.u32 2147483647, %v412
        %v950 = vand.u32 %v949, 8388607
        %v951 = vor.u32 %v950, 8388608
        %v952 = vsub.s32 0, %v951
        %v953 = vadd.s32 %v948, 1
        %vm954 = vcmp.gt.s32.totalorder %v953, 0
        %v955 = vsel %vm954, %v953, 0
        %v956 = vshrl.u32 %v955, 5
        %v957 = vand.u32 %v955, 31
        %v958 = vsub.s32 32, %v957
        %v959 = vshrl.u32 683565275, %v958
        %v960 = vshll.u32 683565275, %v957
        %v961 = vshrl.u32 2475754826, %v958
        %v962 = vor.u32 %v960, %v961
        %v963 = vshll.u32 2475754826, %v957
        %v964 = vshrl.u32 2131351028, %v958
        %v965 = vor.u32 %v963, %v964
        %v966 = vshll.u32 2131351028, %v957
        %v967 = vshrl.u32 2102212464, %v958
        %v968 = vor.u32 %v966, %v967
        %v969 = vshll.u32 2102212464, %v957
        %v970 = vshrl.u32 920167782, %v958
        %v971 = vor.u32 %v969, %v970
        %v972 = vshll.u32 920167782, %v957
        %v973 = vshrl.u32 1326507024, %v958
        %v974 = vor.u32 %v972, %v973
        %vm975 = vcmp.lt.s32.totalorder %v956, 1
        %vm976 = vcmp.lt.s32.totalorder %v956, 2
        %vm977 = vcmp.lt.s32.totalorder %v956, 3
        %vm978 = vcmp.lt.s32.totalorder %v956, 4
        %v979 = vsel %vm975, %v959, %v962
        %v980 = vsel %vm978, %v968, 2102212464
        %v981 = vsel %vm977, %v965, %v980
        %v982 = vsel %vm976, %v979, %v981
        %v983 = vsel %vm975, %v962, %v965
        %v984 = vsel %vm978, %v971, 920167782
        %v985 = vsel %vm977, %v968, %v984
        %v986 = vsel %vm976, %v983, %v985
        %v987 = vsel %vm975, %v965, %v968
        %v988 = vsel %vm978, %v974, 1326507024
        %v989 = vsel %vm977, %v971, %v988
        %v990 = vsel %vm976, %v987, %v989
        %v991 = vshll.u32 %v951, 8
        %v992 = vmul.u32.u64.compose %v991, %v990
        %v993 = vextract.low.u32 %v992
        %v994 = vextract.high.u32 %v992
        %v995 = vmul.u32.u64.compose %v991, %v986
        %v996 = vextract.low.u32 %v995
        %v997 = vextract.high.u32 %v995
        %v998 = vmul.u32 %v991, %v982
        %v999 = vadd.s32 %v994, %v996
        %vm1000 = vc.u32 %v994, %v996
        %v1001 = vadd.s32 %v997, 1
        %v1002 = vsel %vm1000, %v1001, %v997
        %v1003 = vadd.s32 %v998, %v1002
        %v1004 = vadd.s32 %v1003, 536870912
        %v1005 = vshrl.u32 %v1004, 30
        %v1006 = vshll.u32 %v1005, 30
        %v1007 = vsub.s32 %v1003, %v1006
        %vm1008 = vcmp.lt.s32.totalorder %v1007, 0
        %v1009 = vsub.s32 0, %v1007
        %v1010 = vsel %vm1008, %v1009, %v1007
        %v1011 = vclz %v1010
        %v1012 = vsub.s32 %v1011, 2
        %vm1013 = vcmp.gt.s32.totalorder 0, %v1012
        %v1014 = vsel %vm1013, 0, %v1012
        %v1015 = vsub.s32 32, %v1014
        %v1016 = vshll.u32 %v1007, %v1014
        %v1017 = vshrl.u32 %v999, %v1015
        %v1018 = vor.u32 %v1016, %v1017
        %v1019 = vsub.s32 4294967266, %v1014
        %v1020 = vadd.s32 %v1019, 127
        %v1021 = vshll.u32 %v1020, 23
        %v1022 = vor.u32 4788187, %v1021
        %v1023 = vand.u32 2147483647, %v1022
        %v1025 = vcvt.s32.f32 %v1018
        %v1026 = vmul.f32 %v1025, %v1023
        %v1027 = vxor.u32 %v1026, 2147483648
        %v1028 = vsel %vm945, %v1027, %v1026
        %v1029 = vsub.s32 4, %v1005
        %v1030 = vsel %vm945, %v1029, %v1005
        %v1031 = vsel %vm944, %v412, %v1028
        %v1032 = vsel %vm944, 0, %v1030
        %v1033 = vcosq.f32.pop %v1031
        %v1034 = vsinq.f32.pop %v1031
        %vm1035 = vweird.f32 %v412
        %v1036 = vadd.s32 %v1032, 3
        %v1037 = vand.u32 %v1036, 3
        %vm1038 = vcmp.lt.s32.totalorder %v1037, 2
        %vm1039 = vcmp.eq.s32.totalorder %v1037, 0
        %v1040 = vxor.u32 %v1034, 2147483648
        %v1041 = vsel %vm1039, %v1033, %v1040
        %vm1042 = vcmp.eq.s32.totalorder %v1037, 2
        %v1043 = vxor.u32 %v1033, 2147483648
        %v1044 = vsel %vm1042, %v1043, %v1034
        %v1045 = vsel %vm1038, %v1041, %v1044
        %v1046 = vsel %vm1035, nan, %v1045
        %v1047 = vand.u32 2147483647, %v413
        %vm1048 = vcmp.le.f32.partialorder %v1047, 0.7853982
        %vm1049 = vcmp.lt.s32.totalorder %v413, 0
        %v1050 = vand.u32 %v413, 2139095040
        %v1051 = vshrl.u32 %v1050, 23
        %v1052 = vsub.s32 %v1051, 127
        %v1053 = vand.u32 2147483647, %v413
        %v1054 = vand.u32 %v1053, 8388607
        %v1055 = vor.u32 %v1054, 8388608
        %v1056 = vsub.s32 0, %v1055
        %v1057 = vadd.s32 %v1052, 1
        %vm1058 = vcmp.gt.s32.totalorder %v1057, 0
        %v1059 = vsel %vm1058, %v1057, 0
        %v1060 = vshrl.u32 %v1059, 5
        %v1061 = vand.u32 %v1059, 31
        %v1062 = vsub.s32 32, %v1061
        %v1063 = vshrl.u32 683565275, %v1062
        %v1064 = vshll.u32 683565275, %v1061
        %v1065 = vshrl.u32 2475754826, %v1062
        %v1066 = vor.u32 %v1064, %v1065
        %v1067 = vshll.u32 2475754826, %v1061
        %v1068 = vshrl.u32 2131351028, %v1062
        %v1069 = vor.u32 %v1067, %v1068
        %v1070 = vshll.u32 2131351028, %v1061
        %v1071 = vshrl.u32 2102212464, %v1062
        %v1072 = vor.u32 %v1070, %v1071
        %v1073 = vshll.u32 2102212464, %v1061
        %v1074 = vshrl.u32 920167782, %v1062
        %v1075 = vor.u32 %v1073, %v1074
        %v1076 = vshll.u32 920167782, %v1061
        %v1077 = vshrl.u32 1326507024, %v1062
        %v1078 = vor.u32 %v1076, %v1077
        %vm1079 = vcmp.lt.s32.totalorder %v1060, 1
        %vm1080 = vcmp.lt.s32.totalorder %v1060, 2
        %vm1081 = vcmp.lt.s32.totalorder %v1060, 3
        %vm1082 = vcmp.lt.s32.totalorder %v1060, 4
        %v1083 = vsel %vm1079, %v1063, %v1066
        %v1084 = vsel %vm1082, %v1072, 2102212464
        %v1085 = vsel %vm1081, %v1069, %v1084
        %v1086 = vsel %vm1080, %v1083, %v1085
        %v1087 = vsel %vm1079, %v1066, %v1069
        %v1088 = vsel %vm1082, %v1075, 920167782
        %v1089 = vsel %vm1081, %v1072, %v1088
        %v1090 = vsel %vm1080, %v1087, %v1089
        %v1091 = vsel %vm1079, %v1069, %v1072
        %v1092 = vsel %vm1082, %v1078, 1326507024
        %v1093 = vsel %vm1081, %v1075, %v1092
        %v1094 = vsel %vm1080, %v1091, %v1093
        %v1095 = vshll.u32 %v1055, 8
        %v1096 = vmul.u32.u64.compose %v1095, %v1094
        %v1097 = vextract.low.u32 %v1096
        %v1098 = vextract.high.u32 %v1096
        %v1099 = vmul.u32.u64.compose %v1095, %v1090
        %v1100 = vextract.low.u32 %v1099
        %v1101 = vextract.high.u32 %v1099
        %v1102 = vmul.u32 %v1095, %v1086
        %v1103 = vadd.s32 %v1098, %v1100
        %vm1104 = vc.u32 %v1098, %v1100
        %v1105 = vadd.s32 %v1101, 1
        %v1106 = vsel %vm1104, %v1105, %v1101
        %v1107 = vadd.s32 %v1102, %v1106
        %v1108 = vadd.s32 %v1107, 536870912
        %v1109 = vshrl.u32 %v1108, 30
        %v1110 = vshll.u32 %v1109, 30
        %v1111 = vsub.s32 %v1107, %v1110
        %vm1112 = vcmp.lt.s32.totalorder %v1111, 0
        %v1113 = vsub.s32 0, %v1111
        %v1114 = vsel %vm1112, %v1113, %v1111
        %v1115 = vclz %v1114
        %v1116 = vsub.s32 %v1115, 2
        %vm1117 = vcmp.gt.s32.totalorder 0, %v1116
        %v1118 = vsel %vm1117, 0, %v1116
        %v1119 = vsub.s32 32, %v1118
        %v1120 = vshll.u32 %v1111, %v1118
        %v1121 = vshrl.u32 %v1103, %v1119
        %v1122 = vor.u32 %v1120, %v1121
        %v1123 = vsub.s32 4294967266, %v1118
        %v1124 = vadd.s32 %v1123, 127
        %v1125 = vshll.u32 %v1124, 23
        %v1126 = vor.u32 4788187, %v1125
        %v1127 = vand.u32 2147483647, %v1126
        %v1129 = vcvt.s32.f32 %v1122
        %v1130 = vmul.f32 %v1129, %v1127
        %v1131 = vxor.u32 %v1130, 2147483648
        %v1132 = vsel %vm1049, %v1131, %v1130
        %v1133 = vsub.s32 4, %v1109
        %v1134 = vsel %vm1049, %v1133, %v1109
        %v1135 = vsel %vm1048, %v413, %v1132
        %v1136 = vsel %vm1048, 0, %v1134
        %v1137 = vcosq.f32.pop %v1135
        %v1138 = vsinq.f32.pop %v1135
        %vm1139 = vweird.f32 %v413
        %v1140 = vadd.s32 %v1136, 3
        %v1141 = vand.u32 %v1140, 3
        %vm1142 = vcmp.lt.s32.totalorder %v1141, 2
        %vm1143 = vcmp.eq.s32.totalorder %v1141, 0
        %v1144 = vxor.u32 %v1138, 2147483648
        %v1145 = vsel %vm1143, %v1137, %v1144
        %vm1146 = vcmp.eq.s32.totalorder %v1141, 2
        %v1147 = vxor.u32 %v1137, 2147483648
        %v1148 = vsel %vm1146, %v1147, %v1138
        %v1149 = vsel %vm1142, %v1145, %v1148
        %v1150 = vsel %vm1139, nan, %v1149
        %v1151 = vand.u32 2147483647, %v414
        %vm1152 = vcmp.le.f32.partialorder %v1151, 0.7853982
        %vm1153 = vcmp.lt.s32.totalorder %v414, 0
        %v1154 = vand.u32 %v414, 2139095040
        %v1155 = vshrl.u32 %v1154, 23
        %v1156 = vsub.s32 %v1155, 127
        %v1157 = vand.u32 2147483647, %v414
        %v1158 = vand.u32 %v1157, 8388607
        %v1159 = vor.u32 %v1158, 8388608
        %v1160 = vsub.s32 0, %v1159
        %v1161 = vadd.s32 %v1156, 1
        %vm1162 = vcmp.gt.s32.totalorder %v1161, 0
        %v1163 = vsel %vm1162, %v1161, 0
        %v1164 = vshrl.u32 %v1163, 5
        %v1165 = vand.u32 %v1163, 31
        %v1166 = vsub.s32 32, %v1165
        %v1167 = vshrl.u32 683565275, %v1166
        %v1168 = vshll.u32 683565275, %v1165
        %v1169 = vshrl.u32 2475754826, %v1166
        %v1170 = vor.u32 %v1168, %v1169
        %v1171 = vshll.u32 2475754826, %v1165
        %v1172 = vshrl.u32 2131351028, %v1166
        %v1173 = vor.u32 %v1171, %v1172
        %v1174 = vshll.u32 2131351028, %v1165
        %v1175 = vshrl.u32 2102212464, %v1166
        %v1176 = vor.u32 %v1174, %v1175
        %v1177 = vshll.u32 2102212464, %v1165
        %v1178 = vshrl.u32 920167782, %v1166
        %v1179 = vor.u32 %v1177, %v1178
        %v1180 = vshll.u32 920167782, %v1165
        %v1181 = vshrl.u32 1326507024, %v1166
        %v1182 = vor.u32 %v1180, %v1181
        %vm1183 = vcmp.lt.s32.totalorder %v1164, 1
        %vm1184 = vcmp.lt.s32.totalorder %v1164, 2
        %vm1185 = vcmp.lt.s32.totalorder %v1164, 3
        %vm1186 = vcmp.lt.s32.totalorder %v1164, 4
        %v1187 = vsel %vm1183, %v1167, %v1170
        %v1188 = vsel %vm1186, %v1176, 2102212464
        %v1189 = vsel %vm1185, %v1173, %v1188
        %v1190 = vsel %vm1184, %v1187, %v1189
        %v1191 = vsel %vm1183, %v1170, %v1173
        %v1192 = vsel %vm1186, %v1179, 920167782
        %v1193 = vsel %vm1185, %v1176, %v1192
        %v1194 = vsel %vm1184, %v1191, %v1193
        %v1195 = vsel %vm1183, %v1173, %v1176
        %v1196 = vsel %vm1186, %v1182, 1326507024
        %v1197 = vsel %vm1185, %v1179, %v1196
        %v1198 = vsel %vm1184, %v1195, %v1197
        %v1199 = vshll.u32 %v1159, 8
        %v1200 = vmul.u32.u64.compose %v1199, %v1198
        %v1201 = vextract.low.u32 %v1200
        %v1202 = vextract.high.u32 %v1200
        %v1203 = vmul.u32.u64.compose %v1199, %v1194
        %v1204 = vextract.low.u32 %v1203
        %v1205 = vextract.high.u32 %v1203
        %v1206 = vmul.u32 %v1199, %v1190
        %v1207 = vadd.s32 %v1202, %v1204
        %vm1208 = vc.u32 %v1202, %v1204
        %v1209 = vadd.s32 %v1205, 1
        %v1210 = vsel %vm1208, %v1209, %v1205
        %v1211 = vadd.s32 %v1206, %v1210
        %v1212 = vadd.s32 %v1211, 536870912
        %v1213 = vshrl.u32 %v1212, 30
        %v1214 = vshll.u32 %v1213, 30
        %v1215 = vsub.s32 %v1211, %v1214
        %vm1216 = vcmp.lt.s32.totalorder %v1215, 0
        %v1217 = vsub.s32 0, %v1215
        %v1218 = vsel %vm1216, %v1217, %v1215
        %v1219 = vclz %v1218
        %v1220 = vsub.s32 %v1219, 2
        %vm1221 = vcmp.gt.s32.totalorder 0, %v1220
        %v1222 = vsel %vm1221, 0, %v1220
        %v1223 = vsub.s32 32, %v1222
        %v1224 = vshll.u32 %v1215, %v1222
        %v1225 = vshrl.u32 %v1207, %v1223
        %v1226 = vor.u32 %v1224, %v1225
        %v1227 = vsub.s32 4294967266, %v1222
        %v1228 = vadd.s32 %v1227, 127
        %v1229 = vshll.u32 %v1228, 23
        %v1230 = vor.u32 4788187, %v1229
        %v1231 = vand.u32 2147483647, %v1230
        %v1233 = vcvt.s32.f32 %v1226
        %v1234 = vmul.f32 %v1233, %v1231
        %v1235 = vxor.u32 %v1234, 2147483648
        %v1236 = vsel %vm1153, %v1235, %v1234
        %v1237 = vsub.s32 4, %v1213
        %v1238 = vsel %vm1153, %v1237, %v1213
        %v1239 = vsel %vm1152, %v414, %v1236
        %v1240 = vsel %vm1152, 0, %v1238
        %v1241 = vcosq.f32.pop %v1239
        %v1242 = vsinq.f32.pop %v1239
        %vm1243 = vweird.f32 %v414
        %v1244 = vadd.s32 %v1240, 3
        %v1245 = vand.u32 %v1244, 3
        %vm1246 = vcmp.lt.s32.totalorder %v1245, 2
        %vm1247 = vcmp.eq.s32.totalorder %v1245, 0
        %v1248 = vxor.u32 %v1242, 2147483648
        %v1249 = vsel %vm1247, %v1241, %v1248
        %vm1250 = vcmp.eq.s32.totalorder %v1245, 2
        %v1251 = vxor.u32 %v1241, 2147483648
        %v1252 = vsel %vm1250, %v1251, %v1242
        %v1253 = vsel %vm1246, %v1249, %v1252
        %v1254 = vsel %vm1243, nan, %v1253
        %v1255 = vand.u32 2147483647, %v415
        %vm1256 = vcmp.le.f32.partialorder %v1255, 0.7853982
        %vm1257 = vcmp.lt.s32.totalorder %v415, 0
        %v1258 = vand.u32 %v415, 2139095040
        %v1259 = vshrl.u32 %v1258, 23
        %v1260 = vsub.s32 %v1259, 127
        %v1261 = vand.u32 2147483647, %v415
        %v1262 = vand.u32 %v1261, 8388607
        %v1263 = vor.u32 %v1262, 8388608
        %v1264 = vsub.s32 0, %v1263
        %v1265 = vadd.s32 %v1260, 1
        %vm1266 = vcmp.gt.s32.totalorder %v1265, 0
        %v1267 = vsel %vm1266, %v1265, 0
        %v1268 = vshrl.u32 %v1267, 5
        %v1269 = vand.u32 %v1267, 31
        %v1270 = vsub.s32 32, %v1269
        %v1271 = vshrl.u32 683565275, %v1270
        %v1272 = vshll.u32 683565275, %v1269
        %v1273 = vshrl.u32 2475754826, %v1270
        %v1274 = vor.u32 %v1272, %v1273
        %v1275 = vshll.u32 2475754826, %v1269
        %v1276 = vshrl.u32 2131351028, %v1270
        %v1277 = vor.u32 %v1275, %v1276
        %v1278 = vshll.u32 2131351028, %v1269
        %v1279 = vshrl.u32 2102212464, %v1270
        %v1280 = vor.u32 %v1278, %v1279
        %v1281 = vshll.u32 2102212464, %v1269
        %v1282 = vshrl.u32 920167782, %v1270
        %v1283 = vor.u32 %v1281, %v1282
        %v1284 = vshll.u32 920167782, %v1269
        %v1285 = vshrl.u32 1326507024, %v1270
        %v1286 = vor.u32 %v1284, %v1285
        %vm1287 = vcmp.lt.s32.totalorder %v1268, 1
        %vm1288 = vcmp.lt.s32.totalorder %v1268, 2
        %vm1289 = vcmp.lt.s32.totalorder %v1268, 3
        %vm1290 = vcmp.lt.s32.totalorder %v1268, 4
        %v1291 = vsel %vm1287, %v1271, %v1274
        %v1292 = vsel %vm1290, %v1280, 2102212464
        %v1293 = vsel %vm1289, %v1277, %v1292
        %v1294 = vsel %vm1288, %v1291, %v1293
        %v1295 = vsel %vm1287, %v1274, %v1277
        %v1296 = vsel %vm1290, %v1283, 920167782
        %v1297 = vsel %vm1289, %v1280, %v1296
        %v1298 = vsel %vm1288, %v1295, %v1297
        %v1299 = vsel %vm1287, %v1277, %v1280
        %v1300 = vsel %vm1290, %v1286, 1326507024
        %v1301 = vsel %vm1289, %v1283, %v1300
        %v1302 = vsel %vm1288, %v1299, %v1301
        %v1303 = vshll.u32 %v1263, 8
        %v1304 = vmul.u32.u64.compose %v1303, %v1302
        %v1305 = vextract.low.u32 %v1304
        %v1306 = vextract.high.u32 %v1304
        %v1307 = vmul.u32.u64.compose %v1303, %v1298
        %v1308 = vextract.low.u32 %v1307
        %v1309 = vextract.high.u32 %v1307
        %v1310 = vmul.u32 %v1303, %v1294
        %v1311 = vadd.s32 %v1306, %v1308
        %vm1312 = vc.u32 %v1306, %v1308
        %v1313 = vadd.s32 %v1309, 1
        %v1314 = vsel %vm1312, %v1313, %v1309
        %v1315 = vadd.s32 %v1310, %v1314
        %v1316 = vadd.s32 %v1315, 536870912
        %v1317 = vshrl.u32 %v1316, 30
        %v1318 = vshll.u32 %v1317, 30
        %v1319 = vsub.s32 %v1315, %v1318
        %vm1320 = vcmp.lt.s32.totalorder %v1319, 0
        %v1321 = vsub.s32 0, %v1319
        %v1322 = vsel %vm1320, %v1321, %v1319
        %v1323 = vclz %v1322
        %v1324 = vsub.s32 %v1323, 2
        %vm1325 = vcmp.gt.s32.totalorder 0, %v1324
        %v1326 = vsel %vm1325, 0, %v1324
        %v1327 = vsub.s32 32, %v1326
        %v1328 = vshll.u32 %v1319, %v1326
        %v1329 = vshrl.u32 %v1311, %v1327
        %v1330 = vor.u32 %v1328, %v1329
        %v1331 = vsub.s32 4294967266, %v1326
        %v1332 = vadd.s32 %v1331, 127
        %v1333 = vshll.u32 %v1332, 23
        %v1334 = vor.u32 4788187, %v1333
        %v1335 = vand.u32 2147483647, %v1334
        %v1337 = vcvt.s32.f32 %v1330
        %v1338 = vmul.f32 %v1337, %v1335
        %v1339 = vxor.u32 %v1338, 2147483648
        %v1340 = vsel %vm1257, %v1339, %v1338
        %v1341 = vsub.s32 4, %v1317
        %v1342 = vsel %vm1257, %v1341, %v1317
        %v1343 = vsel %vm1256, %v415, %v1340
        %v1344 = vsel %vm1256, 0, %v1342
        %v1345 = vcosq.f32.pop %v1343
        %v1346 = vsinq.f32.pop %v1343
        %vm1347 = vweird.f32 %v415
        %v1348 = vadd.s32 %v1344, 3
        %v1349 = vand.u32 %v1348, 3
        %vm1350 = vcmp.lt.s32.totalorder %v1349, 2
        %vm1351 = vcmp.eq.s32.totalorder %v1349, 0
        %v1352 = vxor.u32 %v1346, 2147483648
        %v1353 = vsel %vm1351, %v1345, %v1352
        %vm1354 = vcmp.eq.s32.totalorder %v1349, 2
        %v1355 = vxor.u32 %v1345, 2147483648
        %v1356 = vsel %vm1354, %v1355, %v1346
        %v1357 = vsel %vm1350, %v1353, %v1356
        %v1358 = vsel %vm1347, nan, %v1357
        %v1359 = vand.u32 2147483647, %v416
        %vm1360 = vcmp.le.f32.partialorder %v1359, 0.7853982
        %vm1361 = vcmp.lt.s32.totalorder %v416, 0
        %v1362 = vand.u32 %v416, 2139095040
        %v1363 = vshrl.u32 %v1362, 23
        %v1364 = vsub.s32 %v1363, 127
        %v1365 = vand.u32 2147483647, %v416
        %v1366 = vand.u32 %v1365, 8388607
        %v1367 = vor.u32 %v1366, 8388608
        %v1368 = vsub.s32 0, %v1367
        %v1369 = vadd.s32 %v1364, 1
        %vm1370 = vcmp.gt.s32.totalorder %v1369, 0
        %v1371 = vsel %vm1370, %v1369, 0
        %v1372 = vshrl.u32 %v1371, 5
        %v1373 = vand.u32 %v1371, 31
        %v1374 = vsub.s32 32, %v1373
        %v1375 = vshrl.u32 683565275, %v1374
        %v1376 = vshll.u32 683565275, %v1373
        %v1377 = vshrl.u32 2475754826, %v1374
        %v1378 = vor.u32 %v1376, %v1377
        %v1379 = vshll.u32 2475754826, %v1373
        %v1380 = vshrl.u32 2131351028, %v1374
        %v1381 = vor.u32 %v1379, %v1380
        %v1382 = vshll.u32 2131351028, %v1373
        %v1383 = vshrl.u32 2102212464, %v1374
        %v1384 = vor.u32 %v1382, %v1383
        %v1385 = vshll.u32 2102212464, %v1373
        %v1386 = vshrl.u32 920167782, %v1374
        %v1387 = vor.u32 %v1385, %v1386
        %v1388 = vshll.u32 920167782, %v1373
        %v1389 = vshrl.u32 1326507024, %v1374
        %v1390 = vor.u32 %v1388, %v1389
        %vm1391 = vcmp.lt.s32.totalorder %v1372, 1
        %vm1392 = vcmp.lt.s32.totalorder %v1372, 2
        %vm1393 = vcmp.lt.s32.totalorder %v1372, 3
        %vm1394 = vcmp.lt.s32.totalorder %v1372, 4
        %v1395 = vsel %vm1391, %v1375, %v1378
        %v1396 = vsel %vm1394, %v1384, 2102212464
        %v1397 = vsel %vm1393, %v1381, %v1396
        %v1398 = vsel %vm1392, %v1395, %v1397
        %v1399 = vsel %vm1391, %v1378, %v1381
        %v1400 = vsel %vm1394, %v1387, 920167782
        %v1401 = vsel %vm1393, %v1384, %v1400
        %v1402 = vsel %vm1392, %v1399, %v1401
        %v1403 = vsel %vm1391, %v1381, %v1384
        %v1404 = vsel %vm1394, %v1390, 1326507024
        %v1405 = vsel %vm1393, %v1387, %v1404
        %v1406 = vsel %vm1392, %v1403, %v1405
        %v1407 = vshll.u32 %v1367, 8
        %v1408 = vmul.u32.u64.compose %v1407, %v1406
        %v1409 = vextract.low.u32 %v1408
        %v1410 = vextract.high.u32 %v1408
        %v1411 = vmul.u32.u64.compose %v1407, %v1402
        %v1412 = vextract.low.u32 %v1411
        %v1413 = vextract.high.u32 %v1411
        %v1414 = vmul.u32 %v1407, %v1398
        %v1415 = vadd.s32 %v1410, %v1412
        %vm1416 = vc.u32 %v1410, %v1412
        %v1417 = vadd.s32 %v1413, 1
        %v1418 = vsel %vm1416, %v1417, %v1413
        %v1419 = vadd.s32 %v1414, %v1418
        %v1420 = vadd.s32 %v1419, 536870912
        %v1421 = vshrl.u32 %v1420, 30
        %v1422 = vshll.u32 %v1421, 30
        %v1423 = vsub.s32 %v1419, %v1422
        %vm1424 = vcmp.lt.s32.totalorder %v1423, 0
        %v1425 = vsub.s32 0, %v1423
        %v1426 = vsel %vm1424, %v1425, %v1423
        %v1427 = vclz %v1426
        %v1428 = vsub.s32 %v1427, 2
        %vm1429 = vcmp.gt.s32.totalorder 0, %v1428
        %v1430 = vsel %vm1429, 0, %v1428
        %v1431 = vsub.s32 32, %v1430
        %v1432 = vshll.u32 %v1423, %v1430
        %v1433 = vshrl.u32 %v1415, %v1431
        %v1434 = vor.u32 %v1432, %v1433
        %v1435 = vsub.s32 4294967266, %v1430
        %v1436 = vadd.s32 %v1435, 127
        %v1437 = vshll.u32 %v1436, 23
        %v1438 = vor.u32 4788187, %v1437
        %v1439 = vand.u32 2147483647, %v1438
        %v1441 = vcvt.s32.f32 %v1434
        %v1442 = vmul.f32 %v1441, %v1439
        %v1443 = vxor.u32 %v1442, 2147483648
        %v1444 = vsel %vm1361, %v1443, %v1442
        %v1445 = vsub.s32 4, %v1421
        %v1446 = vsel %vm1361, %v1445, %v1421
        %v1447 = vsel %vm1360, %v416, %v1444
        %v1448 = vsel %vm1360, 0, %v1446
        %v1449 = vcosq.f32.pop %v1447
        %v1450 = vsinq.f32.pop %v1447
        %vm1451 = vweird.f32 %v416
        %v1452 = vadd.s32 %v1448, 3
        %v1453 = vand.u32 %v1452, 3
        %vm1454 = vcmp.lt.s32.totalorder %v1453, 2
        %vm1455 = vcmp.eq.s32.totalorder %v1453, 0
        %v1456 = vxor.u32 %v1450, 2147483648
        %v1457 = vsel %vm1455, %v1449, %v1456
        %vm1458 = vcmp.eq.s32.totalorder %v1453, 2
        %v1459 = vxor.u32 %v1449, 2147483648
        %v1460 = vsel %vm1458, %v1459, %v1450
        %v1461 = vsel %vm1454, %v1457, %v1460
        %v1462 = vsel %vm1451, nan, %v1461
        %v1463 = vand.u32 2147483647, %v417
        %vm1464 = vcmp.le.f32.partialorder %v1463, 0.7853982
        %vm1465 = vcmp.lt.s32.totalorder %v417, 0
        %v1466 = vand.u32 %v417, 2139095040
        %v1467 = vshrl.u32 %v1466, 23
        %v1468 = vsub.s32 %v1467, 127
        %v1469 = vand.u32 2147483647, %v417
        %v1470 = vand.u32 %v1469, 8388607
        %v1471 = vor.u32 %v1470, 8388608
        %v1472 = vsub.s32 0, %v1471
        %v1473 = vadd.s32 %v1468, 1
        %vm1474 = vcmp.gt.s32.totalorder %v1473, 0
        %v1475 = vsel %vm1474, %v1473, 0
        %v1476 = vshrl.u32 %v1475, 5
        %v1477 = vand.u32 %v1475, 31
        %v1478 = vsub.s32 32, %v1477
        %v1479 = vshrl.u32 683565275, %v1478
        %v1480 = vshll.u32 683565275, %v1477
        %v1481 = vshrl.u32 2475754826, %v1478
        %v1482 = vor.u32 %v1480, %v1481
        %v1483 = vshll.u32 2475754826, %v1477
        %v1484 = vshrl.u32 2131351028, %v1478
        %v1485 = vor.u32 %v1483, %v1484
        %v1486 = vshll.u32 2131351028, %v1477
        %v1487 = vshrl.u32 2102212464, %v1478
        %v1488 = vor.u32 %v1486, %v1487
        %v1489 = vshll.u32 2102212464, %v1477
        %v1490 = vshrl.u32 920167782, %v1478
        %v1491 = vor.u32 %v1489, %v1490
        %v1492 = vshll.u32 920167782, %v1477
        %v1493 = vshrl.u32 1326507024, %v1478
        %v1494 = vor.u32 %v1492, %v1493
        %vm1495 = vcmp.lt.s32.totalorder %v1476, 1
        %vm1496 = vcmp.lt.s32.totalorder %v1476, 2
        %vm1497 = vcmp.lt.s32.totalorder %v1476, 3
        %vm1498 = vcmp.lt.s32.totalorder %v1476, 4
        %v1499 = vsel %vm1495, %v1479, %v1482
        %v1500 = vsel %vm1498, %v1488, 2102212464
        %v1501 = vsel %vm1497, %v1485, %v1500
        %v1502 = vsel %vm1496, %v1499, %v1501
        %v1503 = vsel %vm1495, %v1482, %v1485
        %v1504 = vsel %vm1498, %v1491, 920167782
        %v1505 = vsel %vm1497, %v1488, %v1504
        %v1506 = vsel %vm1496, %v1503, %v1505
        %v1507 = vsel %vm1495, %v1485, %v1488
        %v1508 = vsel %vm1498, %v1494, 1326507024
        %v1509 = vsel %vm1497, %v1491, %v1508
        %v1510 = vsel %vm1496, %v1507, %v1509
        %v1511 = vshll.u32 %v1471, 8
        %v1512 = vmul.u32.u64.compose %v1511, %v1510
        %v1513 = vextract.low.u32 %v1512
        %v1514 = vextract.high.u32 %v1512
        %v1515 = vmul.u32.u64.compose %v1511, %v1506
        %v1516 = vextract.low.u32 %v1515
        %v1517 = vextract.high.u32 %v1515
        %v1518 = vmul.u32 %v1511, %v1502
        %v1519 = vadd.s32 %v1514, %v1516
        %vm1520 = vc.u32 %v1514, %v1516
        %v1521 = vadd.s32 %v1517, 1
        %v1522 = vsel %vm1520, %v1521, %v1517
        %v1523 = vadd.s32 %v1518, %v1522
        %v1524 = vadd.s32 %v1523, 536870912
        %v1525 = vshrl.u32 %v1524, 30
        %v1526 = vshll.u32 %v1525, 30
        %v1527 = vsub.s32 %v1523, %v1526
        %vm1528 = vcmp.lt.s32.totalorder %v1527, 0
        %v1529 = vsub.s32 0, %v1527
        %v1530 = vsel %vm1528, %v1529, %v1527
        %v1531 = vclz %v1530
        %v1532 = vsub.s32 %v1531, 2
        %vm1533 = vcmp.gt.s32.totalorder 0, %v1532
        %v1534 = vsel %vm1533, 0, %v1532
        %v1535 = vsub.s32 32, %v1534
        %v1536 = vshll.u32 %v1527, %v1534
        %v1537 = vshrl.u32 %v1519, %v1535
        %v1538 = vor.u32 %v1536, %v1537
        %v1539 = vsub.s32 4294967266, %v1534
        %v1540 = vadd.s32 %v1539, 127
        %v1541 = vshll.u32 %v1540, 23
        %v1542 = vor.u32 4788187, %v1541
        %v1543 = vand.u32 2147483647, %v1542
        %v1545 = vcvt.s32.f32 %v1538
        %v1546 = vmul.f32 %v1545, %v1543
        %v1547 = vxor.u32 %v1546, 2147483648
        %v1548 = vsel %vm1465, %v1547, %v1546
        %v1549 = vsub.s32 4, %v1525
        %v1550 = vsel %vm1465, %v1549, %v1525
        %v1551 = vsel %vm1464, %v417, %v1548
        %v1552 = vsel %vm1464, 0, %v1550
        %v1553 = vcosq.f32.pop %v1551
        %v1554 = vsinq.f32.pop %v1551
        %vm1555 = vweird.f32 %v417
        %v1556 = vadd.s32 %v1552, 3
        %v1557 = vand.u32 %v1556, 3
        %vm1558 = vcmp.lt.s32.totalorder %v1557, 2
        %vm1559 = vcmp.eq.s32.totalorder %v1557, 0
        %v1560 = vxor.u32 %v1554, 2147483648
        %v1561 = vsel %vm1559, %v1553, %v1560
        %vm1562 = vcmp.eq.s32.totalorder %v1557, 2
        %v1563 = vxor.u32 %v1553, 2147483648
        %v1564 = vsel %vm1562, %v1563, %v1554
        %v1565 = vsel %vm1558, %v1561, %v1564
        %v1566 = vsel %vm1555, nan, %v1565
        %v1567 = vand.u32 2147483647, %v418
        %vm1568 = vcmp.le.f32.partialorder %v1567, 0.7853982
        %vm1569 = vcmp.lt.s32.totalorder %v418, 0
        %v1570 = vand.u32 %v418, 2139095040
        %v1571 = vshrl.u32 %v1570, 23
        %v1572 = vsub.s32 %v1571, 127
        %v1573 = vand.u32 2147483647, %v418
        %v1574 = vand.u32 %v1573, 8388607
        %v1575 = vor.u32 %v1574, 8388608
        %v1576 = vsub.s32 0, %v1575
        %v1577 = vadd.s32 %v1572, 1
        %vm1578 = vcmp.gt.s32.totalorder %v1577, 0
        %v1579 = vsel %vm1578, %v1577, 0
        %v1580 = vshrl.u32 %v1579, 5
        %v1581 = vand.u32 %v1579, 31
        %v1582 = vsub.s32 32, %v1581
        %v1583 = vshrl.u32 683565275, %v1582
        %v1584 = vshll.u32 683565275, %v1581
        %v1585 = vshrl.u32 2475754826, %v1582
        %v1586 = vor.u32 %v1584, %v1585
        %v1587 = vshll.u32 2475754826, %v1581
        %v1588 = vshrl.u32 2131351028, %v1582
        %v1589 = vor.u32 %v1587, %v1588
        %v1590 = vshll.u32 2131351028, %v1581
        %v1591 = vshrl.u32 2102212464, %v1582
        %v1592 = vor.u32 %v1590, %v1591
        %v1593 = vshll.u32 2102212464, %v1581
        %v1594 = vshrl.u32 920167782, %v1582
        %v1595 = vor.u32 %v1593, %v1594
        %v1596 = vshll.u32 920167782, %v1581
        %v1597 = vshrl.u32 1326507024, %v1582
        %v1598 = vor.u32 %v1596, %v1597
        %vm1599 = vcmp.lt.s32.totalorder %v1580, 1
        %vm1600 = vcmp.lt.s32.totalorder %v1580, 2
        %vm1601 = vcmp.lt.s32.totalorder %v1580, 3
        %vm1602 = vcmp.lt.s32.totalorder %v1580, 4
        %v1603 = vsel %vm1599, %v1583, %v1586
        %v1604 = vsel %vm1602, %v1592, 2102212464
        %v1605 = vsel %vm1601, %v1589, %v1604
        %v1606 = vsel %vm1600, %v1603, %v1605
        %v1607 = vsel %vm1599, %v1586, %v1589
        %v1608 = vsel %vm1602, %v1595, 920167782
        %v1609 = vsel %vm1601, %v1592, %v1608
        %v1610 = vsel %vm1600, %v1607, %v1609
        %v1611 = vsel %vm1599, %v1589, %v1592
        %v1612 = vsel %vm1602, %v1598, 1326507024
        %v1613 = vsel %vm1601, %v1595, %v1612
        %v1614 = vsel %vm1600, %v1611, %v1613
        %v1615 = vshll.u32 %v1575, 8
        %v1616 = vmul.u32.u64.compose %v1615, %v1614
        %v1617 = vextract.low.u32 %v1616
        %v1618 = vextract.high.u32 %v1616
        %v1619 = vmul.u32.u64.compose %v1615, %v1610
        %v1620 = vextract.low.u32 %v1619
        %v1621 = vextract.high.u32 %v1619
        %v1622 = vmul.u32 %v1615, %v1606
        %v1623 = vadd.s32 %v1618, %v1620
        %vm1624 = vc.u32 %v1618, %v1620
        %v1625 = vadd.s32 %v1621, 1
        %v1626 = vsel %vm1624, %v1625, %v1621
        %v1627 = vadd.s32 %v1622, %v1626
        %v1628 = vadd.s32 %v1627, 536870912
        %v1629 = vshrl.u32 %v1628, 30
        %v1630 = vshll.u32 %v1629, 30
        %v1631 = vsub.s32 %v1627, %v1630
        %vm1632 = vcmp.lt.s32.totalorder %v1631, 0
        %v1633 = vsub.s32 0, %v1631
        %v1634 = vsel %vm1632, %v1633, %v1631
        %v1635 = vclz %v1634
        %v1636 = vsub.s32 %v1635, 2
        %vm1637 = vcmp.gt.s32.totalorder 0, %v1636
        %v1638 = vsel %vm1637, 0, %v1636
        %v1639 = vsub.s32 32, %v1638
        %v1640 = vshll.u32 %v1631, %v1638
        %v1641 = vshrl.u32 %v1623, %v1639
        %v1642 = vor.u32 %v1640, %v1641
        %v1643 = vsub.s32 4294967266, %v1638
        %v1644 = vadd.s32 %v1643, 127
        %v1645 = vshll.u32 %v1644, 23
        %v1646 = vor.u32 4788187, %v1645
        %v1647 = vand.u32 2147483647, %v1646
        %v1649 = vcvt.s32.f32 %v1642
        %v1650 = vmul.f32 %v1649, %v1647
        %v1651 = vxor.u32 %v1650, 2147483648
        %v1652 = vsel %vm1569, %v1651, %v1650
        %v1653 = vsub.s32 4, %v1629
        %v1654 = vsel %vm1569, %v1653, %v1629
        %v1655 = vsel %vm1568, %v418, %v1652
        %v1656 = vsel %vm1568, 0, %v1654
        %v1657 = vcosq.f32.pop %v1655
        %v1658 = vsinq.f32.pop %v1655
        %vm1659 = vweird.f32 %v418
        %v1660 = vadd.s32 %v1656, 3
        %v1661 = vand.u32 %v1660, 3
        %vm1662 = vcmp.lt.s32.totalorder %v1661, 2
        %vm1663 = vcmp.eq.s32.totalorder %v1661, 0
        %v1664 = vxor.u32 %v1658, 2147483648
        %v1665 = vsel %vm1663, %v1657, %v1664
        %vm1666 = vcmp.eq.s32.totalorder %v1661, 2
        %v1667 = vxor.u32 %v1657, 2147483648
        %v1668 = vsel %vm1666, %v1667, %v1658
        %v1669 = vsel %vm1662, %v1665, %v1668
        %v1670 = vsel %vm1659, nan, %v1669
        %v1671 = vand.u32 2147483647, %v419
        %vm1672 = vcmp.le.f32.partialorder %v1671, 0.7853982
        %vm1673 = vcmp.lt.s32.totalorder %v419, 0
        %v1674 = vand.u32 %v419, 2139095040
        %v1675 = vshrl.u32 %v1674, 23
        %v1676 = vsub.s32 %v1675, 127
        %v1677 = vand.u32 2147483647, %v419
        %v1678 = vand.u32 %v1677, 8388607
        %v1679 = vor.u32 %v1678, 8388608
        %v1680 = vsub.s32 0, %v1679
        %v1681 = vadd.s32 %v1676, 1
        %vm1682 = vcmp.gt.s32.totalorder %v1681, 0
        %v1683 = vsel %vm1682, %v1681, 0
        %v1684 = vshrl.u32 %v1683, 5
        %v1685 = vand.u32 %v1683, 31
        %v1686 = vsub.s32 32, %v1685
        %v1687 = vshrl.u32 683565275, %v1686
        %v1688 = vshll.u32 683565275, %v1685
        %v1689 = vshrl.u32 2475754826, %v1686
        %v1690 = vor.u32 %v1688, %v1689
        %v1691 = vshll.u32 2475754826, %v1685
        %v1692 = vshrl.u32 2131351028, %v1686
        %v1693 = vor.u32 %v1691, %v1692
        %v1694 = vshll.u32 2131351028, %v1685
        %v1695 = vshrl.u32 2102212464, %v1686
        %v1696 = vor.u32 %v1694, %v1695
        %v1697 = vshll.u32 2102212464, %v1685
        %v1698 = vshrl.u32 920167782, %v1686
        %v1699 = vor.u32 %v1697, %v1698
        %v1700 = vshll.u32 920167782, %v1685
        %v1701 = vshrl.u32 1326507024, %v1686
        %v1702 = vor.u32 %v1700, %v1701
        %vm1703 = vcmp.lt.s32.totalorder %v1684, 1
        %vm1704 = vcmp.lt.s32.totalorder %v1684, 2
        %vm1705 = vcmp.lt.s32.totalorder %v1684, 3
        %vm1706 = vcmp.lt.s32.totalorder %v1684, 4
        %v1707 = vsel %vm1703, %v1687, %v1690
        %v1708 = vsel %vm1706, %v1696, 2102212464
        %v1709 = vsel %vm1705, %v1693, %v1708
        %v1710 = vsel %vm1704, %v1707, %v1709
        %v1711 = vsel %vm1703, %v1690, %v1693
        %v1712 = vsel %vm1706, %v1699, 920167782
        %v1713 = vsel %vm1705, %v1696, %v1712
        %v1714 = vsel %vm1704, %v1711, %v1713
        %v1715 = vsel %vm1703, %v1693, %v1696
        %v1716 = vsel %vm1706, %v1702, 1326507024
        %v1717 = vsel %vm1705, %v1699, %v1716
        %v1718 = vsel %vm1704, %v1715, %v1717
        %v1719 = vshll.u32 %v1679, 8
        %v1720 = vmul.u32.u64.compose %v1719, %v1718
        %v1721 = vextract.low.u32 %v1720
        %v1722 = vextract.high.u32 %v1720
        %v1723 = vmul.u32.u64.compose %v1719, %v1714
        %v1724 = vextract.low.u32 %v1723
        %v1725 = vextract.high.u32 %v1723
        %v1726 = vmul.u32 %v1719, %v1710
        %v1727 = vadd.s32 %v1722, %v1724
        %vm1728 = vc.u32 %v1722, %v1724
        %v1729 = vadd.s32 %v1725, 1
        %v1730 = vsel %vm1728, %v1729, %v1725
        %v1731 = vadd.s32 %v1726, %v1730
        %v1732 = vadd.s32 %v1731, 536870912
        %v1733 = vshrl.u32 %v1732, 30
        %v1734 = vshll.u32 %v1733, 30
        %v1735 = vsub.s32 %v1731, %v1734
        %vm1736 = vcmp.lt.s32.totalorder %v1735, 0
        %v1737 = vsub.s32 0, %v1735
        %v1738 = vsel %vm1736, %v1737, %v1735
        %v1739 = vclz %v1738
        %v1740 = vsub.s32 %v1739, 2
        %vm1741 = vcmp.gt.s32.totalorder 0, %v1740
        %v1742 = vsel %vm1741, 0, %v1740
        %v1743 = vsub.s32 32, %v1742
        %v1744 = vshll.u32 %v1735, %v1742
        %v1745 = vshrl.u32 %v1727, %v1743
        %v1746 = vor.u32 %v1744, %v1745
        %v1747 = vsub.s32 4294967266, %v1742
        %v1748 = vadd.s32 %v1747, 127
        %v1749 = vshll.u32 %v1748, 23
        %v1750 = vor.u32 4788187, %v1749
        %v1751 = vand.u32 2147483647, %v1750
        %v1753 = vcvt.s32.f32 %v1746
        %v1754 = vmul.f32 %v1753, %v1751
        %v1755 = vxor.u32 %v1754, 2147483648
        %v1756 = vsel %vm1673, %v1755, %v1754
        %v1757 = vsub.s32 4, %v1733
        %v1758 = vsel %vm1673, %v1757, %v1733
        %v1759 = vsel %vm1672, %v419, %v1756
        %v1760 = vsel %vm1672, 0, %v1758
        %v1761 = vcosq.f32.pop %v1759
        %v1762 = vsinq.f32.pop %v1759
        %vm1763 = vweird.f32 %v419
        %v1764 = vadd.s32 %v1760, 3
        %v1765 = vand.u32 %v1764, 3
        %vm1766 = vcmp.lt.s32.totalorder %v1765, 2
        %vm1767 = vcmp.eq.s32.totalorder %v1765, 0
        %v1768 = vxor.u32 %v1762, 2147483648
        %v1769 = vsel %vm1767, %v1761, %v1768
        %vm1770 = vcmp.eq.s32.totalorder %v1765, 2
        %v1771 = vxor.u32 %v1761, 2147483648
        %v1772 = vsel %vm1770, %v1771, %v1762
        %v1773 = vsel %vm1766, %v1769, %v1772
        %v1774 = vsel %vm1763, nan, %v1773
        %v1775 = vand.u32 2147483647, %v420
        %vm1776 = vcmp.le.f32.partialorder %v1775, 0.7853982
        %vm1777 = vcmp.lt.s32.totalorder %v420, 0
        %v1778 = vand.u32 %v420, 2139095040
        %v1779 = vshrl.u32 %v1778, 23
        %v1780 = vsub.s32 %v1779, 127
        %v1781 = vand.u32 2147483647, %v420
        %v1782 = vand.u32 %v1781, 8388607
        %v1783 = vor.u32 %v1782, 8388608
        %v1784 = vsub.s32 0, %v1783
        %v1785 = vadd.s32 %v1780, 1
        %vm1786 = vcmp.gt.s32.totalorder %v1785, 0
        %v1787 = vsel %vm1786, %v1785, 0
        %v1788 = vshrl.u32 %v1787, 5
        %v1789 = vand.u32 %v1787, 31
        %v1790 = vsub.s32 32, %v1789
        %v1791 = vshrl.u32 683565275, %v1790
        %v1792 = vshll.u32 683565275, %v1789
        %v1793 = vshrl.u32 2475754826, %v1790
        %v1794 = vor.u32 %v1792, %v1793
        %v1795 = vshll.u32 2475754826, %v1789
        %v1796 = vshrl.u32 2131351028, %v1790
        %v1797 = vor.u32 %v1795, %v1796
        %v1798 = vshll.u32 2131351028, %v1789
        %v1799 = vshrl.u32 2102212464, %v1790
        %v1800 = vor.u32 %v1798, %v1799
        %v1801 = vshll.u32 2102212464, %v1789
        %v1802 = vshrl.u32 920167782, %v1790
        %v1803 = vor.u32 %v1801, %v1802
        %v1804 = vshll.u32 920167782, %v1789
        %v1805 = vshrl.u32 1326507024, %v1790
        %v1806 = vor.u32 %v1804, %v1805
        %vm1807 = vcmp.lt.s32.totalorder %v1788, 1
        %vm1808 = vcmp.lt.s32.totalorder %v1788, 2
        %vm1809 = vcmp.lt.s32.totalorder %v1788, 3
        %vm1810 = vcmp.lt.s32.totalorder %v1788, 4
        %v1811 = vsel %vm1807, %v1791, %v1794
        %v1812 = vsel %vm1810, %v1800, 2102212464
        %v1813 = vsel %vm1809, %v1797, %v1812
        %v1814 = vsel %vm1808, %v1811, %v1813
        %v1815 = vsel %vm1807, %v1794, %v1797
        %v1816 = vsel %vm1810, %v1803, 920167782
        %v1817 = vsel %vm1809, %v1800, %v1816
        %v1818 = vsel %vm1808, %v1815, %v1817
        %v1819 = vsel %vm1807, %v1797, %v1800
        %v1820 = vsel %vm1810, %v1806, 1326507024
        %v1821 = vsel %vm1809, %v1803, %v1820
        %v1822 = vsel %vm1808, %v1819, %v1821
        %v1823 = vshll.u32 %v1783, 8
        %v1824 = vmul.u32.u64.compose %v1823, %v1822
        %v1825 = vextract.low.u32 %v1824
        %v1826 = vextract.high.u32 %v1824
        %v1827 = vmul.u32.u64.compose %v1823, %v1818
        %v1828 = vextract.low.u32 %v1827
        %v1829 = vextract.high.u32 %v1827
        %v1830 = vmul.u32 %v1823, %v1814
        %v1831 = vadd.s32 %v1826, %v1828
        %vm1832 = vc.u32 %v1826, %v1828
        %v1833 = vadd.s32 %v1829, 1
        %v1834 = vsel %vm1832, %v1833, %v1829
        %v1835 = vadd.s32 %v1830, %v1834
        %v1836 = vadd.s32 %v1835, 536870912
        %v1837 = vshrl.u32 %v1836, 30
        %v1838 = vshll.u32 %v1837, 30
        %v1839 = vsub.s32 %v1835, %v1838
        %vm1840 = vcmp.lt.s32.totalorder %v1839, 0
        %v1841 = vsub.s32 0, %v1839
        %v1842 = vsel %vm1840, %v1841, %v1839
        %v1843 = vclz %v1842
        %v1844 = vsub.s32 %v1843, 2
        %vm1845 = vcmp.gt.s32.totalorder 0, %v1844
        %v1846 = vsel %vm1845, 0, %v1844
        %v1847 = vsub.s32 32, %v1846
        %v1848 = vshll.u32 %v1839, %v1846
        %v1849 = vshrl.u32 %v1831, %v1847
        %v1850 = vor.u32 %v1848, %v1849
        %v1851 = vsub.s32 4294967266, %v1846
        %v1852 = vadd.s32 %v1851, 127
        %v1853 = vshll.u32 %v1852, 23
        %v1854 = vor.u32 4788187, %v1853
        %v1855 = vand.u32 2147483647, %v1854
        %v1857 = vcvt.s32.f32 %v1850
        %v1858 = vmul.f32 %v1857, %v1855
        %v1859 = vxor.u32 %v1858, 2147483648
        %v1860 = vsel %vm1777, %v1859, %v1858
        %v1861 = vsub.s32 4, %v1837
        %v1862 = vsel %vm1777, %v1861, %v1837
        %v1863 = vsel %vm1776, %v420, %v1860
        %v1864 = vsel %vm1776, 0, %v1862
        %v1865 = vcosq.f32.pop %v1863
        %v1866 = vsinq.f32.pop %v1863
        %vm1867 = vweird.f32 %v420
        %v1868 = vadd.s32 %v1864, 3
        %v1869 = vand.u32 %v1868, 3
        %vm1870 = vcmp.lt.s32.totalorder %v1869, 2
        %vm1871 = vcmp.eq.s32.totalorder %v1869, 0
        %v1872 = vxor.u32 %v1866, 2147483648
        %v1873 = vsel %vm1871, %v1865, %v1872
        %vm1874 = vcmp.eq.s32.totalorder %v1869, 2
        %v1875 = vxor.u32 %v1865, 2147483648
        %v1876 = vsel %vm1874, %v1875, %v1866
        %v1877 = vsel %vm1870, %v1873, %v1876
        %v1878 = vsel %vm1867, nan, %v1877
        %v1879 = vand.u32 2147483647, %v421
        %vm1880 = vcmp.le.f32.partialorder %v1879, 0.7853982
        %vm1881 = vcmp.lt.s32.totalorder %v421, 0
        %v1882 = vand.u32 %v421, 2139095040
        %v1883 = vshrl.u32 %v1882, 23
        %v1884 = vsub.s32 %v1883, 127
        %v1885 = vand.u32 2147483647, %v421
        %v1886 = vand.u32 %v1885, 8388607
        %v1887 = vor.u32 %v1886, 8388608
        %v1888 = vsub.s32 0, %v1887
        %v1889 = vadd.s32 %v1884, 1
        %vm1890 = vcmp.gt.s32.totalorder %v1889, 0
        %v1891 = vsel %vm1890, %v1889, 0
        %v1892 = vshrl.u32 %v1891, 5
        %v1893 = vand.u32 %v1891, 31
        %v1894 = vsub.s32 32, %v1893
        %v1895 = vshrl.u32 683565275, %v1894
        %v1896 = vshll.u32 683565275, %v1893
        %v1897 = vshrl.u32 2475754826, %v1894
        %v1898 = vor.u32 %v1896, %v1897
        %v1899 = vshll.u32 2475754826, %v1893
        %v1900 = vshrl.u32 2131351028, %v1894
        %v1901 = vor.u32 %v1899, %v1900
        %v1902 = vshll.u32 2131351028, %v1893
        %v1903 = vshrl.u32 2102212464, %v1894
        %v1904 = vor.u32 %v1902, %v1903
        %v1905 = vshll.u32 2102212464, %v1893
        %v1906 = vshrl.u32 920167782, %v1894
        %v1907 = vor.u32 %v1905, %v1906
        %v1908 = vshll.u32 920167782, %v1893
        %v1909 = vshrl.u32 1326507024, %v1894
        %v1910 = vor.u32 %v1908, %v1909
        %vm1911 = vcmp.lt.s32.totalorder %v1892, 1
        %vm1912 = vcmp.lt.s32.totalorder %v1892, 2
        %vm1913 = vcmp.lt.s32.totalorder %v1892, 3
        %vm1914 = vcmp.lt.s32.totalorder %v1892, 4
        %v1915 = vsel %vm1911, %v1895, %v1898
        %v1916 = vsel %vm1914, %v1904, 2102212464
        %v1917 = vsel %vm1913, %v1901, %v1916
        %v1918 = vsel %vm1912, %v1915, %v1917
        %v1919 = vsel %vm1911, %v1898, %v1901
        %v1920 = vsel %vm1914, %v1907, 920167782
        %v1921 = vsel %vm1913, %v1904, %v1920
        %v1922 = vsel %vm1912, %v1919, %v1921
        %v1923 = vsel %vm1911, %v1901, %v1904
        %v1924 = vsel %vm1914, %v1910, 1326507024
        %v1925 = vsel %vm1913, %v1907, %v1924
        %v1926 = vsel %vm1912, %v1923, %v1925
        %v1927 = vshll.u32 %v1887, 8
        %v1928 = vmul.u32.u64.compose %v1927, %v1926
        %v1929 = vextract.low.u32 %v1928
        %v1930 = vextract.high.u32 %v1928
        %v1931 = vmul.u32.u64.compose %v1927, %v1922
        %v1932 = vextract.low.u32 %v1931
        %v1933 = vextract.high.u32 %v1931
        %v1934 = vmul.u32 %v1927, %v1918
        %v1935 = vadd.s32 %v1930, %v1932
        %vm1936 = vc.u32 %v1930, %v1932
        %v1937 = vadd.s32 %v1933, 1
        %v1938 = vsel %vm1936, %v1937, %v1933
        %v1939 = vadd.s32 %v1934, %v1938
        %v1940 = vadd.s32 %v1939, 536870912
        %v1941 = vshrl.u32 %v1940, 30
        %v1942 = vshll.u32 %v1941, 30
        %v1943 = vsub.s32 %v1939, %v1942
        %vm1944 = vcmp.lt.s32.totalorder %v1943, 0
        %v1945 = vsub.s32 0, %v1943
        %v1946 = vsel %vm1944, %v1945, %v1943
        %v1947 = vclz %v1946
        %v1948 = vsub.s32 %v1947, 2
        %vm1949 = vcmp.gt.s32.totalorder 0, %v1948
        %v1950 = vsel %vm1949, 0, %v1948
        %v1951 = vsub.s32 32, %v1950
        %v1952 = vshll.u32 %v1943, %v1950
        %v1953 = vshrl.u32 %v1935, %v1951
        %v1954 = vor.u32 %v1952, %v1953
        %v1955 = vsub.s32 4294967266, %v1950
        %v1956 = vadd.s32 %v1955, 127
        %v1957 = vshll.u32 %v1956, 23
        %v1958 = vor.u32 4788187, %v1957
        %v1959 = vand.u32 2147483647, %v1958
        %v1961 = vcvt.s32.f32 %v1954
        %v1962 = vmul.f32 %v1961, %v1959
        %v1963 = vxor.u32 %v1962, 2147483648
        %v1964 = vsel %vm1881, %v1963, %v1962
        %v1965 = vsub.s32 4, %v1941
        %v1966 = vsel %vm1881, %v1965, %v1941
        %v1967 = vsel %vm1880, %v421, %v1964
        %v1968 = vsel %vm1880, 0, %v1966
        %v1969 = vcosq.f32.pop %v1967
        %v1970 = vsinq.f32.pop %v1967
        %vm1971 = vweird.f32 %v421
        %v1972 = vadd.s32 %v1968, 3
        %v1973 = vand.u32 %v1972, 3
        %vm1974 = vcmp.lt.s32.totalorder %v1973, 2
        %vm1975 = vcmp.eq.s32.totalorder %v1973, 0
        %v1976 = vxor.u32 %v1970, 2147483648
        %v1977 = vsel %vm1975, %v1969, %v1976
        %vm1978 = vcmp.eq.s32.totalorder %v1973, 2
        %v1979 = vxor.u32 %v1969, 2147483648
        %v1980 = vsel %vm1978, %v1979, %v1970
        %v1981 = vsel %vm1974, %v1977, %v1980
        %v1982 = vsel %vm1971, nan, %v1981
        %v1983 = vand.u32 2147483647, %v422
        %vm1984 = vcmp.le.f32.partialorder %v1983, 0.7853982
        %vm1985 = vcmp.lt.s32.totalorder %v422, 0
        %v1986 = vand.u32 %v422, 2139095040
        %v1987 = vshrl.u32 %v1986, 23
        %v1988 = vsub.s32 %v1987, 127
        %v1989 = vand.u32 2147483647, %v422
        %v1990 = vand.u32 %v1989, 8388607
        %v1991 = vor.u32 %v1990, 8388608
        %v1992 = vsub.s32 0, %v1991
        %v1993 = vadd.s32 %v1988, 1
        %vm1994 = vcmp.gt.s32.totalorder %v1993, 0
        %v1995 = vsel %vm1994, %v1993, 0
        %v1996 = vshrl.u32 %v1995, 5
        %v1997 = vand.u32 %v1995, 31
        %v1998 = vsub.s32 32, %v1997
        %v1999 = vshrl.u32 683565275, %v1998
        %v2000 = vshll.u32 683565275, %v1997
        %v2001 = vshrl.u32 2475754826, %v1998
        %v2002 = vor.u32 %v2000, %v2001
        %v2003 = vshll.u32 2475754826, %v1997
        %v2004 = vshrl.u32 2131351028, %v1998
        %v2005 = vor.u32 %v2003, %v2004
        %v2006 = vshll.u32 2131351028, %v1997
        %v2007 = vshrl.u32 2102212464, %v1998
        %v2008 = vor.u32 %v2006, %v2007
        %v2009 = vshll.u32 2102212464, %v1997
        %v2010 = vshrl.u32 920167782, %v1998
        %v2011 = vor.u32 %v2009, %v2010
        %v2012 = vshll.u32 920167782, %v1997
        %v2013 = vshrl.u32 1326507024, %v1998
        %v2014 = vor.u32 %v2012, %v2013
        %vm2015 = vcmp.lt.s32.totalorder %v1996, 1
        %vm2016 = vcmp.lt.s32.totalorder %v1996, 2
        %vm2017 = vcmp.lt.s32.totalorder %v1996, 3
        %vm2018 = vcmp.lt.s32.totalorder %v1996, 4
        %v2019 = vsel %vm2015, %v1999, %v2002
        %v2020 = vsel %vm2018, %v2008, 2102212464
        %v2021 = vsel %vm2017, %v2005, %v2020
        %v2022 = vsel %vm2016, %v2019, %v2021
        %v2023 = vsel %vm2015, %v2002, %v2005
        %v2024 = vsel %vm2018, %v2011, 920167782
        %v2025 = vsel %vm2017, %v2008, %v2024
        %v2026 = vsel %vm2016, %v2023, %v2025
        %v2027 = vsel %vm2015, %v2005, %v2008
        %v2028 = vsel %vm2018, %v2014, 1326507024
        %v2029 = vsel %vm2017, %v2011, %v2028
        %v2030 = vsel %vm2016, %v2027, %v2029
        %v2031 = vshll.u32 %v1991, 8
        %v2032 = vmul.u32.u64.compose %v2031, %v2030
        %v2033 = vextract.low.u32 %v2032
        %v2034 = vextract.high.u32 %v2032
        %v2035 = vmul.u32.u64.compose %v2031, %v2026
        %v2036 = vextract.low.u32 %v2035
        %v2037 = vextract.high.u32 %v2035
        %v2038 = vmul.u32 %v2031, %v2022
        %v2039 = vadd.s32 %v2034, %v2036
        %vm2040 = vc.u32 %v2034, %v2036
        %v2041 = vadd.s32 %v2037, 1
        %v2042 = vsel %vm2040, %v2041, %v2037
        %v2043 = vadd.s32 %v2038, %v2042
        %v2044 = vadd.s32 %v2043, 536870912
        %v2045 = vshrl.u32 %v2044, 30
        %v2046 = vshll.u32 %v2045, 30
        %v2047 = vsub.s32 %v2043, %v2046
        %vm2048 = vcmp.lt.s32.totalorder %v2047, 0
        %v2049 = vsub.s32 0, %v2047
        %v2050 = vsel %vm2048, %v2049, %v2047
        %v2051 = vclz %v2050
        %v2052 = vsub.s32 %v2051, 2
        %vm2053 = vcmp.gt.s32.totalorder 0, %v2052
        %v2054 = vsel %vm2053, 0, %v2052
        %v2055 = vsub.s32 32, %v2054
        %v2056 = vshll.u32 %v2047, %v2054
        %v2057 = vshrl.u32 %v2039, %v2055
        %v2058 = vor.u32 %v2056, %v2057
        %v2059 = vsub.s32 4294967266, %v2054
        %v2060 = vadd.s32 %v2059, 127
        %v2061 = vshll.u32 %v2060, 23
        %v2062 = vor.u32 4788187, %v2061
        %v2063 = vand.u32 2147483647, %v2062
        %v2065 = vcvt.s32.f32 %v2058
        %v2066 = vmul.f32 %v2065, %v2063
        %v2067 = vxor.u32 %v2066, 2147483648
        %v2068 = vsel %vm1985, %v2067, %v2066
        %v2069 = vsub.s32 4, %v2045
        %v2070 = vsel %vm1985, %v2069, %v2045
        %v2071 = vsel %vm1984, %v422, %v2068
        %v2072 = vsel %vm1984, 0, %v2070
        %v2073 = vcosq.f32.pop %v2071
        %v2074 = vsinq.f32.pop %v2071
        %vm2075 = vweird.f32 %v422
        %v2076 = vadd.s32 %v2072, 3
        %v2077 = vand.u32 %v2076, 3
        %vm2078 = vcmp.lt.s32.totalorder %v2077, 2
        %vm2079 = vcmp.eq.s32.totalorder %v2077, 0
        %v2080 = vxor.u32 %v2074, 2147483648
        %v2081 = vsel %vm2079, %v2073, %v2080
        %vm2082 = vcmp.eq.s32.totalorder %v2077, 2
        %v2083 = vxor.u32 %v2073, 2147483648
        %v2084 = vsel %vm2082, %v2083, %v2074
        %v2085 = vsel %vm2078, %v2081, %v2084
        %v2086 = vsel %vm2075, nan, %v2085
        %v2087 = vpack.c.bf16 %v630, %v526
        %v2088 = vpack.c.bf16 %v838, %v734
        %v2089 = vpack.c.bf16 %v1046, %v942
        %v2090 = vpack.c.bf16 %v1254, %v1150
        %v2091 = vpack.c.bf16 %v1462, %v1358
        %v2092 = vpack.c.bf16 %v1670, %v1566
        %v2093 = vpack.c.bf16 %v1878, %v1774
        %v2094 = vpack.c.bf16 %v2086, %v1982
        %2095 = vst [vmem:[#allocation2] sm:$0xff] %v2087
        %2096 = vst [vmem:[#allocation2 + $0x10] sm:$0xff] %v2088
        %2097 = vst [vmem:[#allocation2 + $0x20] sm:$0xff] %v2089
        %2098 = vst [vmem:[#allocation2 + $0x30] sm:$0xff] %v2090
        %2099 = vst [vmem:[#allocation2 + $0x40] sm:$0xff] %v2091
        %2100 = vst [vmem:[#allocation2 + $0x50] sm:$0xff] %v2092
        %2101 = vst [vmem:[#allocation2 + $0x60] sm:$0xff] %v2093
        %2102 = vst [vmem:[#allocation2 + $0x70] sm:$0xff] %v2094
        %v2103 = vand.u32 2147483647, %v407
        %vm2104 = vcmp.le.f32.partialorder %v2103, 0.7853982
        %vm2105 = vcmp.lt.s32.totalorder %v407, 0
        %v2106 = vand.u32 %v407, 2139095040
        %v2107 = vshrl.u32 %v2106, 23
        %v2108 = vsub.s32 %v2107, 127
        %v2109 = vand.u32 2147483647, %v407
        %v2110 = vand.u32 %v2109, 8388607
        %v2111 = vor.u32 %v2110, 8388608
        %v2112 = vsub.s32 0, %v2111
        %v2113 = vadd.s32 %v2108, 1
        %vm2114 = vcmp.gt.s32.totalorder %v2113, 0
        %v2115 = vsel %vm2114, %v2113, 0
        %v2116 = vshrl.u32 %v2115, 5
        %v2117 = vand.u32 %v2115, 31
        %v2118 = vsub.s32 32, %v2117
        %v2119 = vshrl.u32 683565275, %v2118
        %v2120 = vshll.u32 683565275, %v2117
        %v2121 = vshrl.u32 2475754826, %v2118
        %v2122 = vor.u32 %v2120, %v2121
        %v2123 = vshll.u32 2475754826, %v2117
        %v2124 = vshrl.u32 2131351028, %v2118
        %v2125 = vor.u32 %v2123, %v2124
        %v2126 = vshll.u32 2131351028, %v2117
        %v2127 = vshrl.u32 2102212464, %v2118
        %v2128 = vor.u32 %v2126, %v2127
        %v2129 = vshll.u32 2102212464, %v2117
        %v2130 = vshrl.u32 920167782, %v2118
        %v2131 = vor.u32 %v2129, %v2130
        %v2132 = vshll.u32 920167782, %v2117
        %v2133 = vshrl.u32 1326507024, %v2118
        %v2134 = vor.u32 %v2132, %v2133
        %vm2135 = vcmp.lt.s32.totalorder %v2116, 1
        %vm2136 = vcmp.lt.s32.totalorder %v2116, 2
        %vm2137 = vcmp.lt.s32.totalorder %v2116, 3
        %vm2138 = vcmp.lt.s32.totalorder %v2116, 4
        %v2139 = vsel %vm2135, %v2119, %v2122
        %v2140 = vsel %vm2138, %v2128, 2102212464
        %v2141 = vsel %vm2137, %v2125, %v2140
        %v2142 = vsel %vm2136, %v2139, %v2141
        %v2143 = vsel %vm2135, %v2122, %v2125
        %v2144 = vsel %vm2138, %v2131, 920167782
        %v2145 = vsel %vm2137, %v2128, %v2144
        %v2146 = vsel %vm2136, %v2143, %v2145
        %v2147 = vsel %vm2135, %v2125, %v2128
        %v2148 = vsel %vm2138, %v2134, 1326507024
        %v2149 = vsel %vm2137, %v2131, %v2148
        %v2150 = vsel %vm2136, %v2147, %v2149
        %v2151 = vshll.u32 %v2111, 8
        %v2152 = vmul.u32.u64.compose %v2151, %v2150
        %v2153 = vextract.low.u32 %v2152
        %v2154 = vextract.high.u32 %v2152
        %v2155 = vmul.u32.u64.compose %v2151, %v2146
        %v2156 = vextract.low.u32 %v2155
        %v2157 = vextract.high.u32 %v2155
        %v2158 = vmul.u32 %v2151, %v2142
        %v2159 = vadd.s32 %v2154, %v2156
        %vm2160 = vc.u32 %v2154, %v2156
        %v2161 = vadd.s32 %v2157, 1
        %v2162 = vsel %vm2160, %v2161, %v2157
        %v2163 = vadd.s32 %v2158, %v2162
        %v2164 = vadd.s32 %v2163, 536870912
        %v2165 = vshrl.u32 %v2164, 30
        %v2166 = vshll.u32 %v2165, 30
        %v2167 = vsub.s32 %v2163, %v2166
        %vm2168 = vcmp.lt.s32.totalorder %v2167, 0
        %v2169 = vsub.s32 0, %v2167
        %v2170 = vsel %vm2168, %v2169, %v2167
        %v2171 = vclz %v2170
        %v2172 = vsub.s32 %v2171, 2
        %vm2173 = vcmp.gt.s32.totalorder 0, %v2172
        %v2174 = vsel %vm2173, 0, %v2172
        %v2175 = vsub.s32 32, %v2174
        %v2176 = vshll.u32 %v2167, %v2174
        %v2177 = vshrl.u32 %v2159, %v2175
        %v2178 = vor.u32 %v2176, %v2177
        %v2179 = vsub.s32 4294967266, %v2174
        %v2180 = vadd.s32 %v2179, 127
        %v2181 = vshll.u32 %v2180, 23
        %v2182 = vor.u32 4788187, %v2181
        %v2183 = vand.u32 2147483647, %v2182
        %v2185 = vcvt.s32.f32 %v2178
        %v2186 = vmul.f32 %v2185, %v2183
        %v2187 = vxor.u32 %v2186, 2147483648
        %v2188 = vsel %vm2105, %v2187, %v2186
        %v2189 = vsub.s32 4, %v2165
        %v2190 = vsel %vm2105, %v2189, %v2165
        %v2191 = vsel %vm2104, %v407, %v2188
        %v2192 = vsel %vm2104, 0, %v2190
        %v2193 = vcosq.f32.pop %v2191
        %v2194 = vsinq.f32.pop %v2191
        %vm2195 = vweird.f32 %v407
        %v2196 = vand.u32 %v2192, 3
        %vm2197 = vcmp.lt.s32.totalorder %v2196, 2
        %vm2198 = vcmp.eq.s32.totalorder %v2196, 0
        %v2199 = vxor.u32 %v2194, 2147483648
        %v2200 = vsel %vm2198, %v2193, %v2199
        %vm2201 = vcmp.eq.s32.totalorder %v2196, 2
        %v2202 = vxor.u32 %v2193, 2147483648
        %v2203 = vsel %vm2201, %v2202, %v2194
        %v2204 = vsel %vm2197, %v2200, %v2203
        %v2205 = vsel %vm2195, nan, %v2204
        %v2206 = vand.u32 2147483647, %v408
        %vm2207 = vcmp.le.f32.partialorder %v2206, 0.7853982
        %vm2208 = vcmp.lt.s32.totalorder %v408, 0
        %v2209 = vand.u32 %v408, 2139095040
        %v2210 = vshrl.u32 %v2209, 23
        %v2211 = vsub.s32 %v2210, 127
        %v2212 = vand.u32 2147483647, %v408
        %v2213 = vand.u32 %v2212, 8388607
        %v2214 = vor.u32 %v2213, 8388608
        %v2215 = vsub.s32 0, %v2214
        %v2216 = vadd.s32 %v2211, 1
        %vm2217 = vcmp.gt.s32.totalorder %v2216, 0
        %v2218 = vsel %vm2217, %v2216, 0
        %v2219 = vshrl.u32 %v2218, 5
        %v2220 = vand.u32 %v2218, 31
        %v2221 = vsub.s32 32, %v2220
        %v2222 = vshrl.u32 683565275, %v2221
        %v2223 = vshll.u32 683565275, %v2220
        %v2224 = vshrl.u32 2475754826, %v2221
        %v2225 = vor.u32 %v2223, %v2224
        %v2226 = vshll.u32 2475754826, %v2220
        %v2227 = vshrl.u32 2131351028, %v2221
        %v2228 = vor.u32 %v2226, %v2227
        %v2229 = vshll.u32 2131351028, %v2220
        %v2230 = vshrl.u32 2102212464, %v2221
        %v2231 = vor.u32 %v2229, %v2230
        %v2232 = vshll.u32 2102212464, %v2220
        %v2233 = vshrl.u32 920167782, %v2221
        %v2234 = vor.u32 %v2232, %v2233
        %v2235 = vshll.u32 920167782, %v2220
        %v2236 = vshrl.u32 1326507024, %v2221
        %v2237 = vor.u32 %v2235, %v2236
        %vm2238 = vcmp.lt.s32.totalorder %v2219, 1
        %vm2239 = vcmp.lt.s32.totalorder %v2219, 2
        %vm2240 = vcmp.lt.s32.totalorder %v2219, 3
        %vm2241 = vcmp.lt.s32.totalorder %v2219, 4
        %v2242 = vsel %vm2238, %v2222, %v2225
        %v2243 = vsel %vm2241, %v2231, 2102212464
        %v2244 = vsel %vm2240, %v2228, %v2243
        %v2245 = vsel %vm2239, %v2242, %v2244
        %v2246 = vsel %vm2238, %v2225, %v2228
        %v2247 = vsel %vm2241, %v2234, 920167782
        %v2248 = vsel %vm2240, %v2231, %v2247
        %v2249 = vsel %vm2239, %v2246, %v2248
        %v2250 = vsel %vm2238, %v2228, %v2231
        %v2251 = vsel %vm2241, %v2237, 1326507024
        %v2252 = vsel %vm2240, %v2234, %v2251
        %v2253 = vsel %vm2239, %v2250, %v2252
        %v2254 = vshll.u32 %v2214, 8
        %v2255 = vmul.u32.u64.compose %v2254, %v2253
        %v2256 = vextract.low.u32 %v2255
        %v2257 = vextract.high.u32 %v2255
        %v2258 = vmul.u32.u64.compose %v2254, %v2249
        %v2259 = vextract.low.u32 %v2258
        %v2260 = vextract.high.u32 %v2258
        %v2261 = vmul.u32 %v2254, %v2245
        %v2262 = vadd.s32 %v2257, %v2259
        %vm2263 = vc.u32 %v2257, %v2259
        %v2264 = vadd.s32 %v2260, 1
        %v2265 = vsel %vm2263, %v2264, %v2260
        %v2266 = vadd.s32 %v2261, %v2265
        %v2267 = vadd.s32 %v2266, 536870912
        %v2268 = vshrl.u32 %v2267, 30
        %v2269 = vshll.u32 %v2268, 30
        %v2270 = vsub.s32 %v2266, %v2269
        %vm2271 = vcmp.lt.s32.totalorder %v2270, 0
        %v2272 = vsub.s32 0, %v2270
        %v2273 = vsel %vm2271, %v2272, %v2270
        %v2274 = vclz %v2273
        %v2275 = vsub.s32 %v2274, 2
        %vm2276 = vcmp.gt.s32.totalorder 0, %v2275
        %v2277 = vsel %vm2276, 0, %v2275
        %v2278 = vsub.s32 32, %v2277
        %v2279 = vshll.u32 %v2270, %v2277
        %v2280 = vshrl.u32 %v2262, %v2278
        %v2281 = vor.u32 %v2279, %v2280
        %v2282 = vsub.s32 4294967266, %v2277
        %v2283 = vadd.s32 %v2282, 127
        %v2284 = vshll.u32 %v2283, 23
        %v2285 = vor.u32 4788187, %v2284
        %v2286 = vand.u32 2147483647, %v2285
        %v2288 = vcvt.s32.f32 %v2281
        %v2289 = vmul.f32 %v2288, %v2286
        %v2290 = vxor.u32 %v2289, 2147483648
        %v2291 = vsel %vm2208, %v2290, %v2289
        %v2292 = vsub.s32 4, %v2268
        %v2293 = vsel %vm2208, %v2292, %v2268
        %v2294 = vsel %vm2207, %v408, %v2291
        %v2295 = vsel %vm2207, 0, %v2293
        %v2296 = vcosq.f32.pop %v2294
        %v2297 = vsinq.f32.pop %v2294
        %vm2298 = vweird.f32 %v408
        %v2299 = vand.u32 %v2295, 3
        %vm2300 = vcmp.lt.s32.totalorder %v2299, 2
        %vm2301 = vcmp.eq.s32.totalorder %v2299, 0
        %v2302 = vxor.u32 %v2297, 2147483648
        %v2303 = vsel %vm2301, %v2296, %v2302
        %vm2304 = vcmp.eq.s32.totalorder %v2299, 2
        %v2305 = vxor.u32 %v2296, 2147483648
        %v2306 = vsel %vm2304, %v2305, %v2297
        %v2307 = vsel %vm2300, %v2303, %v2306
        %v2308 = vsel %vm2298, nan, %v2307
        %v2309 = vand.u32 2147483647, %v409
        %vm2310 = vcmp.le.f32.partialorder %v2309, 0.7853982
        %vm2311 = vcmp.lt.s32.totalorder %v409, 0
        %v2312 = vand.u32 %v409, 2139095040
        %v2313 = vshrl.u32 %v2312, 23
        %v2314 = vsub.s32 %v2313, 127
        %v2315 = vand.u32 2147483647, %v409
        %v2316 = vand.u32 %v2315, 8388607
        %v2317 = vor.u32 %v2316, 8388608
        %v2318 = vsub.s32 0, %v2317
        %v2319 = vadd.s32 %v2314, 1
        %vm2320 = vcmp.gt.s32.totalorder %v2319, 0
        %v2321 = vsel %vm2320, %v2319, 0
        %v2322 = vshrl.u32 %v2321, 5
        %v2323 = vand.u32 %v2321, 31
        %v2324 = vsub.s32 32, %v2323
        %v2325 = vshrl.u32 683565275, %v2324
        %v2326 = vshll.u32 683565275, %v2323
        %v2327 = vshrl.u32 2475754826, %v2324
        %v2328 = vor.u32 %v2326, %v2327
        %v2329 = vshll.u32 2475754826, %v2323
        %v2330 = vshrl.u32 2131351028, %v2324
        %v2331 = vor.u32 %v2329, %v2330
        %v2332 = vshll.u32 2131351028, %v2323
        %v2333 = vshrl.u32 2102212464, %v2324
        %v2334 = vor.u32 %v2332, %v2333
        %v2335 = vshll.u32 2102212464, %v2323
        %v2336 = vshrl.u32 920167782, %v2324
        %v2337 = vor.u32 %v2335, %v2336
        %v2338 = vshll.u32 920167782, %v2323
        %v2339 = vshrl.u32 1326507024, %v2324
        %v2340 = vor.u32 %v2338, %v2339
        %vm2341 = vcmp.lt.s32.totalorder %v2322, 1
        %vm2342 = vcmp.lt.s32.totalorder %v2322, 2
        %vm2343 = vcmp.lt.s32.totalorder %v2322, 3
        %vm2344 = vcmp.lt.s32.totalorder %v2322, 4
        %v2345 = vsel %vm2341, %v2325, %v2328
        %v2346 = vsel %vm2344, %v2334, 2102212464
        %v2347 = vsel %vm2343, %v2331, %v2346
        %v2348 = vsel %vm2342, %v2345, %v2347
        %v2349 = vsel %vm2341, %v2328, %v2331
        %v2350 = vsel %vm2344, %v2337, 920167782
        %v2351 = vsel %vm2343, %v2334, %v2350
        %v2352 = vsel %vm2342, %v2349, %v2351
        %v2353 = vsel %vm2341, %v2331, %v2334
        %v2354 = vsel %vm2344, %v2340, 1326507024
        %v2355 = vsel %vm2343, %v2337, %v2354
        %v2356 = vsel %vm2342, %v2353, %v2355
        %v2357 = vshll.u32 %v2317, 8
        %v2358 = vmul.u32.u64.compose %v2357, %v2356
        %v2359 = vextract.low.u32 %v2358
        %v2360 = vextract.high.u32 %v2358
        %v2361 = vmul.u32.u64.compose %v2357, %v2352
        %v2362 = vextract.low.u32 %v2361
        %v2363 = vextract.high.u32 %v2361
        %v2364 = vmul.u32 %v2357, %v2348
        %v2365 = vadd.s32 %v2360, %v2362
        %vm2366 = vc.u32 %v2360, %v2362
        %v2367 = vadd.s32 %v2363, 1
        %v2368 = vsel %vm2366, %v2367, %v2363
        %v2369 = vadd.s32 %v2364, %v2368
        %v2370 = vadd.s32 %v2369, 536870912
        %v2371 = vshrl.u32 %v2370, 30
        %v2372 = vshll.u32 %v2371, 30
        %v2373 = vsub.s32 %v2369, %v2372
        %vm2374 = vcmp.lt.s32.totalorder %v2373, 0
        %v2375 = vsub.s32 0, %v2373
        %v2376 = vsel %vm2374, %v2375, %v2373
        %v2377 = vclz %v2376
        %v2378 = vsub.s32 %v2377, 2
        %vm2379 = vcmp.gt.s32.totalorder 0, %v2378
        %v2380 = vsel %vm2379, 0, %v2378
        %v2381 = vsub.s32 32, %v2380
        %v2382 = vshll.u32 %v2373, %v2380
        %v2383 = vshrl.u32 %v2365, %v2381
        %v2384 = vor.u32 %v2382, %v2383
        %v2385 = vsub.s32 4294967266, %v2380
        %v2386 = vadd.s32 %v2385, 127
        %v2387 = vshll.u32 %v2386, 23
        %v2388 = vor.u32 4788187, %v2387
        %v2389 = vand.u32 2147483647, %v2388
        %v2391 = vcvt.s32.f32 %v2384
        %v2392 = vmul.f32 %v2391, %v2389
        %v2393 = vxor.u32 %v2392, 2147483648
        %v2394 = vsel %vm2311, %v2393, %v2392
        %v2395 = vsub.s32 4, %v2371
        %v2396 = vsel %vm2311, %v2395, %v2371
        %v2397 = vsel %vm2310, %v409, %v2394
        %v2398 = vsel %vm2310, 0, %v2396
        %v2399 = vcosq.f32.pop %v2397
        %v2400 = vsinq.f32.pop %v2397
        %vm2401 = vweird.f32 %v409
        %v2402 = vand.u32 %v2398, 3
        %vm2403 = vcmp.lt.s32.totalorder %v2402, 2
        %vm2404 = vcmp.eq.s32.totalorder %v2402, 0
        %v2405 = vxor.u32 %v2400, 2147483648
        %v2406 = vsel %vm2404, %v2399, %v2405
        %vm2407 = vcmp.eq.s32.totalorder %v2402, 2
        %v2408 = vxor.u32 %v2399, 2147483648
        %v2409 = vsel %vm2407, %v2408, %v2400
        %v2410 = vsel %vm2403, %v2406, %v2409
        %v2411 = vsel %vm2401, nan, %v2410
        %v2412 = vand.u32 2147483647, %v410
        %vm2413 = vcmp.le.f32.partialorder %v2412, 0.7853982
        %vm2414 = vcmp.lt.s32.totalorder %v410, 0
        %v2415 = vand.u32 %v410, 2139095040
        %v2416 = vshrl.u32 %v2415, 23
        %v2417 = vsub.s32 %v2416, 127
        %v2418 = vand.u32 2147483647, %v410
        %v2419 = vand.u32 %v2418, 8388607
        %v2420 = vor.u32 %v2419, 8388608
        %v2421 = vsub.s32 0, %v2420
        %v2422 = vadd.s32 %v2417, 1
        %vm2423 = vcmp.gt.s32.totalorder %v2422, 0
        %v2424 = vsel %vm2423, %v2422, 0
        %v2425 = vshrl.u32 %v2424, 5
        %v2426 = vand.u32 %v2424, 31
        %v2427 = vsub.s32 32, %v2426
        %v2428 = vshrl.u32 683565275, %v2427
        %v2429 = vshll.u32 683565275, %v2426
        %v2430 = vshrl.u32 2475754826, %v2427
        %v2431 = vor.u32 %v2429, %v2430
        %v2432 = vshll.u32 2475754826, %v2426
        %v2433 = vshrl.u32 2131351028, %v2427
        %v2434 = vor.u32 %v2432, %v2433
        %v2435 = vshll.u32 2131351028, %v2426
        %v2436 = vshrl.u32 2102212464, %v2427
        %v2437 = vor.u32 %v2435, %v2436
        %v2438 = vshll.u32 2102212464, %v2426
        %v2439 = vshrl.u32 920167782, %v2427
        %v2440 = vor.u32 %v2438, %v2439
        %v2441 = vshll.u32 920167782, %v2426
        %v2442 = vshrl.u32 1326507024, %v2427
        %v2443 = vor.u32 %v2441, %v2442
        %vm2444 = vcmp.lt.s32.totalorder %v2425, 1
        %vm2445 = vcmp.lt.s32.totalorder %v2425, 2
        %vm2446 = vcmp.lt.s32.totalorder %v2425, 3
        %vm2447 = vcmp.lt.s32.totalorder %v2425, 4
        %v2448 = vsel %vm2444, %v2428, %v2431
        %v2449 = vsel %vm2447, %v2437, 2102212464
        %v2450 = vsel %vm2446, %v2434, %v2449
        %v2451 = vsel %vm2445, %v2448, %v2450
        %v2452 = vsel %vm2444, %v2431, %v2434
        %v2453 = vsel %vm2447, %v2440, 920167782
        %v2454 = vsel %vm2446, %v2437, %v2453
        %v2455 = vsel %vm2445, %v2452, %v2454
        %v2456 = vsel %vm2444, %v2434, %v2437
        %v2457 = vsel %vm2447, %v2443, 1326507024
        %v2458 = vsel %vm2446, %v2440, %v2457
        %v2459 = vsel %vm2445, %v2456, %v2458
        %v2460 = vshll.u32 %v2420, 8
        %v2461 = vmul.u32.u64.compose %v2460, %v2459
        %v2462 = vextract.low.u32 %v2461
        %v2463 = vextract.high.u32 %v2461
        %v2464 = vmul.u32.u64.compose %v2460, %v2455
        %v2465 = vextract.low.u32 %v2464
        %v2466 = vextract.high.u32 %v2464
        %v2467 = vmul.u32 %v2460, %v2451
        %v2468 = vadd.s32 %v2463, %v2465
        %vm2469 = vc.u32 %v2463, %v2465
        %v2470 = vadd.s32 %v2466, 1
        %v2471 = vsel %vm2469, %v2470, %v2466
        %v2472 = vadd.s32 %v2467, %v2471
        %v2473 = vadd.s32 %v2472, 536870912
        %v2474 = vshrl.u32 %v2473, 30
        %v2475 = vshll.u32 %v2474, 30
        %v2476 = vsub.s32 %v2472, %v2475
        %vm2477 = vcmp.lt.s32.totalorder %v2476, 0
        %v2478 = vsub.s32 0, %v2476
        %v2479 = vsel %vm2477, %v2478, %v2476
        %v2480 = vclz %v2479
        %v2481 = vsub.s32 %v2480, 2
        %vm2482 = vcmp.gt.s32.totalorder 0, %v2481
        %v2483 = vsel %vm2482, 0, %v2481
        %v2484 = vsub.s32 32, %v2483
        %v2485 = vshll.u32 %v2476, %v2483
        %v2486 = vshrl.u32 %v2468, %v2484
        %v2487 = vor.u32 %v2485, %v2486
        %v2488 = vsub.s32 4294967266, %v2483
        %v2489 = vadd.s32 %v2488, 127
        %v2490 = vshll.u32 %v2489, 23
        %v2491 = vor.u32 4788187, %v2490
        %v2492 = vand.u32 2147483647, %v2491
        %v2494 = vcvt.s32.f32 %v2487
        %v2495 = vmul.f32 %v2494, %v2492
        %v2496 = vxor.u32 %v2495, 2147483648
        %v2497 = vsel %vm2414, %v2496, %v2495
        %v2498 = vsub.s32 4, %v2474
        %v2499 = vsel %vm2414, %v2498, %v2474
        %v2500 = vsel %vm2413, %v410, %v2497
        %v2501 = vsel %vm2413, 0, %v2499
        %v2502 = vcosq.f32.pop %v2500
        %v2503 = vsinq.f32.pop %v2500
        %vm2504 = vweird.f32 %v410
        %v2505 = vand.u32 %v2501, 3
        %vm2506 = vcmp.lt.s32.totalorder %v2505, 2
        %vm2507 = vcmp.eq.s32.totalorder %v2505, 0
        %v2508 = vxor.u32 %v2503, 2147483648
        %v2509 = vsel %vm2507, %v2502, %v2508
        %vm2510 = vcmp.eq.s32.totalorder %v2505, 2
        %v2511 = vxor.u32 %v2502, 2147483648
        %v2512 = vsel %vm2510, %v2511, %v2503
        %v2513 = vsel %vm2506, %v2509, %v2512
        %v2514 = vsel %vm2504, nan, %v2513
        %v2515 = vand.u32 2147483647, %v411
        %vm2516 = vcmp.le.f32.partialorder %v2515, 0.7853982
        %vm2517 = vcmp.lt.s32.totalorder %v411, 0
        %v2518 = vand.u32 %v411, 2139095040
        %v2519 = vshrl.u32 %v2518, 23
        %v2520 = vsub.s32 %v2519, 127
        %v2521 = vand.u32 2147483647, %v411
        %v2522 = vand.u32 %v2521, 8388607
        %v2523 = vor.u32 %v2522, 8388608
        %v2524 = vsub.s32 0, %v2523
        %v2525 = vadd.s32 %v2520, 1
        %vm2526 = vcmp.gt.s32.totalorder %v2525, 0
        %v2527 = vsel %vm2526, %v2525, 0
        %v2528 = vshrl.u32 %v2527, 5
        %v2529 = vand.u32 %v2527, 31
        %v2530 = vsub.s32 32, %v2529
        %v2531 = vshrl.u32 683565275, %v2530
        %v2532 = vshll.u32 683565275, %v2529
        %v2533 = vshrl.u32 2475754826, %v2530
        %v2534 = vor.u32 %v2532, %v2533
        %v2535 = vshll.u32 2475754826, %v2529
        %v2536 = vshrl.u32 2131351028, %v2530
        %v2537 = vor.u32 %v2535, %v2536
        %v2538 = vshll.u32 2131351028, %v2529
        %v2539 = vshrl.u32 2102212464, %v2530
        %v2540 = vor.u32 %v2538, %v2539
        %v2541 = vshll.u32 2102212464, %v2529
        %v2542 = vshrl.u32 920167782, %v2530
        %v2543 = vor.u32 %v2541, %v2542
        %v2544 = vshll.u32 920167782, %v2529
        %v2545 = vshrl.u32 1326507024, %v2530
        %v2546 = vor.u32 %v2544, %v2545
        %vm2547 = vcmp.lt.s32.totalorder %v2528, 1
        %vm2548 = vcmp.lt.s32.totalorder %v2528, 2
        %vm2549 = vcmp.lt.s32.totalorder %v2528, 3
        %vm2550 = vcmp.lt.s32.totalorder %v2528, 4
        %v2551 = vsel %vm2547, %v2531, %v2534
        %v2552 = vsel %vm2550, %v2540, 2102212464
        %v2553 = vsel %vm2549, %v2537, %v2552
        %v2554 = vsel %vm2548, %v2551, %v2553
        %v2555 = vsel %vm2547, %v2534, %v2537
        %v2556 = vsel %vm2550, %v2543, 920167782
        %v2557 = vsel %vm2549, %v2540, %v2556
        %v2558 = vsel %vm2548, %v2555, %v2557
        %v2559 = vsel %vm2547, %v2537, %v2540
        %v2560 = vsel %vm2550, %v2546, 1326507024
        %v2561 = vsel %vm2549, %v2543, %v2560
        %v2562 = vsel %vm2548, %v2559, %v2561
        %v2563 = vshll.u32 %v2523, 8
        %v2564 = vmul.u32.u64.compose %v2563, %v2562
        %v2565 = vextract.low.u32 %v2564
        %v2566 = vextract.high.u32 %v2564
        %v2567 = vmul.u32.u64.compose %v2563, %v2558
        %v2568 = vextract.low.u32 %v2567
        %v2569 = vextract.high.u32 %v2567
        %v2570 = vmul.u32 %v2563, %v2554
        %v2571 = vadd.s32 %v2566, %v2568
        %vm2572 = vc.u32 %v2566, %v2568
        %v2573 = vadd.s32 %v2569, 1
        %v2574 = vsel %vm2572, %v2573, %v2569
        %v2575 = vadd.s32 %v2570, %v2574
        %v2576 = vadd.s32 %v2575, 536870912
        %v2577 = vshrl.u32 %v2576, 30
        %v2578 = vshll.u32 %v2577, 30
        %v2579 = vsub.s32 %v2575, %v2578
        %vm2580 = vcmp.lt.s32.totalorder %v2579, 0
        %v2581 = vsub.s32 0, %v2579
        %v2582 = vsel %vm2580, %v2581, %v2579
        %v2583 = vclz %v2582
        %v2584 = vsub.s32 %v2583, 2
        %vm2585 = vcmp.gt.s32.totalorder 0, %v2584
        %v2586 = vsel %vm2585, 0, %v2584
        %v2587 = vsub.s32 32, %v2586
        %v2588 = vshll.u32 %v2579, %v2586
        %v2589 = vshrl.u32 %v2571, %v2587
        %v2590 = vor.u32 %v2588, %v2589
        %v2591 = vsub.s32 4294967266, %v2586
        %v2592 = vadd.s32 %v2591, 127
        %v2593 = vshll.u32 %v2592, 23
        %v2594 = vor.u32 4788187, %v2593
        %v2595 = vand.u32 2147483647, %v2594
        %v2597 = vcvt.s32.f32 %v2590
        %v2598 = vmul.f32 %v2597, %v2595
        %v2599 = vxor.u32 %v2598, 2147483648
        %v2600 = vsel %vm2517, %v2599, %v2598
        %v2601 = vsub.s32 4, %v2577
        %v2602 = vsel %vm2517, %v2601, %v2577
        %v2603 = vsel %vm2516, %v411, %v2600
        %v2604 = vsel %vm2516, 0, %v2602
        %v2605 = vcosq.f32.pop %v2603
        %v2606 = vsinq.f32.pop %v2603
        %vm2607 = vweird.f32 %v411
        %v2608 = vand.u32 %v2604, 3
        %vm2609 = vcmp.lt.s32.totalorder %v2608, 2
        %vm2610 = vcmp.eq.s32.totalorder %v2608, 0
        %v2611 = vxor.u32 %v2606, 2147483648
        %v2612 = vsel %vm2610, %v2605, %v2611
        %vm2613 = vcmp.eq.s32.totalorder %v2608, 2
        %v2614 = vxor.u32 %v2605, 2147483648
        %v2615 = vsel %vm2613, %v2614, %v2606
        %v2616 = vsel %vm2609, %v2612, %v2615
        %v2617 = vsel %vm2607, nan, %v2616
        %v2618 = vand.u32 2147483647, %v412
        %vm2619 = vcmp.le.f32.partialorder %v2618, 0.7853982
        %vm2620 = vcmp.lt.s32.totalorder %v412, 0
        %v2621 = vand.u32 %v412, 2139095040
        %v2622 = vshrl.u32 %v2621, 23
        %v2623 = vsub.s32 %v2622, 127
        %v2624 = vand.u32 2147483647, %v412
        %v2625 = vand.u32 %v2624, 8388607
        %v2626 = vor.u32 %v2625, 8388608
        %v2627 = vsub.s32 0, %v2626
        %v2628 = vadd.s32 %v2623, 1
        %vm2629 = vcmp.gt.s32.totalorder %v2628, 0
        %v2630 = vsel %vm2629, %v2628, 0
        %v2631 = vshrl.u32 %v2630, 5
        %v2632 = vand.u32 %v2630, 31
        %v2633 = vsub.s32 32, %v2632
        %v2634 = vshrl.u32 683565275, %v2633
        %v2635 = vshll.u32 683565275, %v2632
        %v2636 = vshrl.u32 2475754826, %v2633
        %v2637 = vor.u32 %v2635, %v2636
        %v2638 = vshll.u32 2475754826, %v2632
        %v2639 = vshrl.u32 2131351028, %v2633
        %v2640 = vor.u32 %v2638, %v2639
        %v2641 = vshll.u32 2131351028, %v2632
        %v2642 = vshrl.u32 2102212464, %v2633
        %v2643 = vor.u32 %v2641, %v2642
        %v2644 = vshll.u32 2102212464, %v2632
        %v2645 = vshrl.u32 920167782, %v2633
        %v2646 = vor.u32 %v2644, %v2645
        %v2647 = vshll.u32 920167782, %v2632
        %v2648 = vshrl.u32 1326507024, %v2633
        %v2649 = vor.u32 %v2647, %v2648
        %vm2650 = vcmp.lt.s32.totalorder %v2631, 1
        %vm2651 = vcmp.lt.s32.totalorder %v2631, 2
        %vm2652 = vcmp.lt.s32.totalorder %v2631, 3
        %vm2653 = vcmp.lt.s32.totalorder %v2631, 4
        %v2654 = vsel %vm2650, %v2634, %v2637
        %v2655 = vsel %vm2653, %v2643, 2102212464
        %v2656 = vsel %vm2652, %v2640, %v2655
        %v2657 = vsel %vm2651, %v2654, %v2656
        %v2658 = vsel %vm2650, %v2637, %v2640
        %v2659 = vsel %vm2653, %v2646, 920167782
        %v2660 = vsel %vm2652, %v2643, %v2659
        %v2661 = vsel %vm2651, %v2658, %v2660
        %v2662 = vsel %vm2650, %v2640, %v2643
        %v2663 = vsel %vm2653, %v2649, 1326507024
        %v2664 = vsel %vm2652, %v2646, %v2663
        %v2665 = vsel %vm2651, %v2662, %v2664
        %v2666 = vshll.u32 %v2626, 8
        %v2667 = vmul.u32.u64.compose %v2666, %v2665
        %v2668 = vextract.low.u32 %v2667
        %v2669 = vextract.high.u32 %v2667
        %v2670 = vmul.u32.u64.compose %v2666, %v2661
        %v2671 = vextract.low.u32 %v2670
        %v2672 = vextract.high.u32 %v2670
        %v2673 = vmul.u32 %v2666, %v2657
        %v2674 = vadd.s32 %v2669, %v2671
        %vm2675 = vc.u32 %v2669, %v2671
        %v2676 = vadd.s32 %v2672, 1
        %v2677 = vsel %vm2675, %v2676, %v2672
        %v2678 = vadd.s32 %v2673, %v2677
        %v2679 = vadd.s32 %v2678, 536870912
        %v2680 = vshrl.u32 %v2679, 30
        %v2681 = vshll.u32 %v2680, 30
        %v2682 = vsub.s32 %v2678, %v2681
        %vm2683 = vcmp.lt.s32.totalorder %v2682, 0
        %v2684 = vsub.s32 0, %v2682
        %v2685 = vsel %vm2683, %v2684, %v2682
        %v2686 = vclz %v2685
        %v2687 = vsub.s32 %v2686, 2
        %vm2688 = vcmp.gt.s32.totalorder 0, %v2687
        %v2689 = vsel %vm2688, 0, %v2687
        %v2690 = vsub.s32 32, %v2689
        %v2691 = vshll.u32 %v2682, %v2689
        %v2692 = vshrl.u32 %v2674, %v2690
        %v2693 = vor.u32 %v2691, %v2692
        %v2694 = vsub.s32 4294967266, %v2689
        %v2695 = vadd.s32 %v2694, 127
        %v2696 = vshll.u32 %v2695, 23
        %v2697 = vor.u32 4788187, %v2696
        %v2698 = vand.u32 2147483647, %v2697
        %v2700 = vcvt.s32.f32 %v2693
        %v2701 = vmul.f32 %v2700, %v2698
        %v2702 = vxor.u32 %v2701, 2147483648
        %v2703 = vsel %vm2620, %v2702, %v2701
        %v2704 = vsub.s32 4, %v2680
        %v2705 = vsel %vm2620, %v2704, %v2680
        %v2706 = vsel %vm2619, %v412, %v2703
        %v2707 = vsel %vm2619, 0, %v2705
        %v2708 = vcosq.f32.pop %v2706
        %v2709 = vsinq.f32.pop %v2706
        %vm2710 = vweird.f32 %v412
        %v2711 = vand.u32 %v2707, 3
        %vm2712 = vcmp.lt.s32.totalorder %v2711, 2
        %vm2713 = vcmp.eq.s32.totalorder %v2711, 0
        %v2714 = vxor.u32 %v2709, 2147483648
        %v2715 = vsel %vm2713, %v2708, %v2714
        %vm2716 = vcmp.eq.s32.totalorder %v2711, 2
        %v2717 = vxor.u32 %v2708, 2147483648
        %v2718 = vsel %vm2716, %v2717, %v2709
        %v2719 = vsel %vm2712, %v2715, %v2718
        %v2720 = vsel %vm2710, nan, %v2719
        %v2721 = vand.u32 2147483647, %v413
        %vm2722 = vcmp.le.f32.partialorder %v2721, 0.7853982
        %vm2723 = vcmp.lt.s32.totalorder %v413, 0
        %v2724 = vand.u32 %v413, 2139095040
        %v2725 = vshrl.u32 %v2724, 23
        %v2726 = vsub.s32 %v2725, 127
        %v2727 = vand.u32 2147483647, %v413
        %v2728 = vand.u32 %v2727, 8388607
        %v2729 = vor.u32 %v2728, 8388608
        %v2730 = vsub.s32 0, %v2729
        %v2731 = vadd.s32 %v2726, 1
        %vm2732 = vcmp.gt.s32.totalorder %v2731, 0
        %v2733 = vsel %vm2732, %v2731, 0
        %v2734 = vshrl.u32 %v2733, 5
        %v2735 = vand.u32 %v2733, 31
        %v2736 = vsub.s32 32, %v2735
        %v2737 = vshrl.u32 683565275, %v2736
        %v2738 = vshll.u32 683565275, %v2735
        %v2739 = vshrl.u32 2475754826, %v2736
        %v2740 = vor.u32 %v2738, %v2739
        %v2741 = vshll.u32 2475754826, %v2735
        %v2742 = vshrl.u32 2131351028, %v2736
        %v2743 = vor.u32 %v2741, %v2742
        %v2744 = vshll.u32 2131351028, %v2735
        %v2745 = vshrl.u32 2102212464, %v2736
        %v2746 = vor.u32 %v2744, %v2745
        %v2747 = vshll.u32 2102212464, %v2735
        %v2748 = vshrl.u32 920167782, %v2736
        %v2749 = vor.u32 %v2747, %v2748
        %v2750 = vshll.u32 920167782, %v2735
        %v2751 = vshrl.u32 1326507024, %v2736
        %v2752 = vor.u32 %v2750, %v2751
        %vm2753 = vcmp.lt.s32.totalorder %v2734, 1
        %vm2754 = vcmp.lt.s32.totalorder %v2734, 2
        %vm2755 = vcmp.lt.s32.totalorder %v2734, 3
        %vm2756 = vcmp.lt.s32.totalorder %v2734, 4
        %v2757 = vsel %vm2753, %v2737, %v2740
        %v2758 = vsel %vm2756, %v2746, 2102212464
        %v2759 = vsel %vm2755, %v2743, %v2758
        %v2760 = vsel %vm2754, %v2757, %v2759
        %v2761 = vsel %vm2753, %v2740, %v2743
        %v2762 = vsel %vm2756, %v2749, 920167782
        %v2763 = vsel %vm2755, %v2746, %v2762
        %v2764 = vsel %vm2754, %v2761, %v2763
        %v2765 = vsel %vm2753, %v2743, %v2746
        %v2766 = vsel %vm2756, %v2752, 1326507024
        %v2767 = vsel %vm2755, %v2749, %v2766
        %v2768 = vsel %vm2754, %v2765, %v2767
        %v2769 = vshll.u32 %v2729, 8
        %v2770 = vmul.u32.u64.compose %v2769, %v2768
        %v2771 = vextract.low.u32 %v2770
        %v2772 = vextract.high.u32 %v2770
        %v2773 = vmul.u32.u64.compose %v2769, %v2764
        %v2774 = vextract.low.u32 %v2773
        %v2775 = vextract.high.u32 %v2773
        %v2776 = vmul.u32 %v2769, %v2760
        %v2777 = vadd.s32 %v2772, %v2774
        %vm2778 = vc.u32 %v2772, %v2774
        %v2779 = vadd.s32 %v2775, 1
        %v2780 = vsel %vm2778, %v2779, %v2775
        %v2781 = vadd.s32 %v2776, %v2780
        %v2782 = vadd.s32 %v2781, 536870912
        %v2783 = vshrl.u32 %v2782, 30
        %v2784 = vshll.u32 %v2783, 30
        %v2785 = vsub.s32 %v2781, %v2784
        %vm2786 = vcmp.lt.s32.totalorder %v2785, 0
        %v2787 = vsub.s32 0, %v2785
        %v2788 = vsel %vm2786, %v2787, %v2785
        %v2789 = vclz %v2788
        %v2790 = vsub.s32 %v2789, 2
        %vm2791 = vcmp.gt.s32.totalorder 0, %v2790
        %v2792 = vsel %vm2791, 0, %v2790
        %v2793 = vsub.s32 32, %v2792
        %v2794 = vshll.u32 %v2785, %v2792
        %v2795 = vshrl.u32 %v2777, %v2793
        %v2796 = vor.u32 %v2794, %v2795
        %v2797 = vsub.s32 4294967266, %v2792
        %v2798 = vadd.s32 %v2797, 127
        %v2799 = vshll.u32 %v2798, 23
        %v2800 = vor.u32 4788187, %v2799
        %v2801 = vand.u32 2147483647, %v2800
        %v2803 = vcvt.s32.f32 %v2796
        %v2804 = vmul.f32 %v2803, %v2801
        %v2805 = vxor.u32 %v2804, 2147483648
        %v2806 = vsel %vm2723, %v2805, %v2804
        %v2807 = vsub.s32 4, %v2783
        %v2808 = vsel %vm2723, %v2807, %v2783
        %v2809 = vsel %vm2722, %v413, %v2806
        %v2810 = vsel %vm2722, 0, %v2808
        %v2811 = vcosq.f32.pop %v2809
        %v2812 = vsinq.f32.pop %v2809
        %vm2813 = vweird.f32 %v413
        %v2814 = vand.u32 %v2810, 3
        %vm2815 = vcmp.lt.s32.totalorder %v2814, 2
        %vm2816 = vcmp.eq.s32.totalorder %v2814, 0
        %v2817 = vxor.u32 %v2812, 2147483648
        %v2818 = vsel %vm2816, %v2811, %v2817
        %vm2819 = vcmp.eq.s32.totalorder %v2814, 2
        %v2820 = vxor.u32 %v2811, 2147483648
        %v2821 = vsel %vm2819, %v2820, %v2812
        %v2822 = vsel %vm2815, %v2818, %v2821
        %v2823 = vsel %vm2813, nan, %v2822
        %v2824 = vand.u32 2147483647, %v414
        %vm2825 = vcmp.le.f32.partialorder %v2824, 0.7853982
        %vm2826 = vcmp.lt.s32.totalorder %v414, 0
        %v2827 = vand.u32 %v414, 2139095040
        %v2828 = vshrl.u32 %v2827, 23
        %v2829 = vsub.s32 %v2828, 127
        %v2830 = vand.u32 2147483647, %v414
        %v2831 = vand.u32 %v2830, 8388607
        %v2832 = vor.u32 %v2831, 8388608
        %v2833 = vsub.s32 0, %v2832
        %v2834 = vadd.s32 %v2829, 1
        %vm2835 = vcmp.gt.s32.totalorder %v2834, 0
        %v2836 = vsel %vm2835, %v2834, 0
        %v2837 = vshrl.u32 %v2836, 5
        %v2838 = vand.u32 %v2836, 31
        %v2839 = vsub.s32 32, %v2838
        %v2840 = vshrl.u32 683565275, %v2839
        %v2841 = vshll.u32 683565275, %v2838
        %v2842 = vshrl.u32 2475754826, %v2839
        %v2843 = vor.u32 %v2841, %v2842
        %v2844 = vshll.u32 2475754826, %v2838
        %v2845 = vshrl.u32 2131351028, %v2839
        %v2846 = vor.u32 %v2844, %v2845
        %v2847 = vshll.u32 2131351028, %v2838
        %v2848 = vshrl.u32 2102212464, %v2839
        %v2849 = vor.u32 %v2847, %v2848
        %v2850 = vshll.u32 2102212464, %v2838
        %v2851 = vshrl.u32 920167782, %v2839
        %v2852 = vor.u32 %v2850, %v2851
        %v2853 = vshll.u32 920167782, %v2838
        %v2854 = vshrl.u32 1326507024, %v2839
        %v2855 = vor.u32 %v2853, %v2854
        %vm2856 = vcmp.lt.s32.totalorder %v2837, 1
        %vm2857 = vcmp.lt.s32.totalorder %v2837, 2
        %vm2858 = vcmp.lt.s32.totalorder %v2837, 3
        %vm2859 = vcmp.lt.s32.totalorder %v2837, 4
        %v2860 = vsel %vm2856, %v2840, %v2843
        %v2861 = vsel %vm2859, %v2849, 2102212464
        %v2862 = vsel %vm2858, %v2846, %v2861
        %v2863 = vsel %vm2857, %v2860, %v2862
        %v2864 = vsel %vm2856, %v2843, %v2846
        %v2865 = vsel %vm2859, %v2852, 920167782
        %v2866 = vsel %vm2858, %v2849, %v2865
        %v2867 = vsel %vm2857, %v2864, %v2866
        %v2868 = vsel %vm2856, %v2846, %v2849
        %v2869 = vsel %vm2859, %v2855, 1326507024
        %v2870 = vsel %vm2858, %v2852, %v2869
        %v2871 = vsel %vm2857, %v2868, %v2870
        %v2872 = vshll.u32 %v2832, 8
        %v2873 = vmul.u32.u64.compose %v2872, %v2871
        %v2874 = vextract.low.u32 %v2873
        %v2875 = vextract.high.u32 %v2873
        %v2876 = vmul.u32.u64.compose %v2872, %v2867
        %v2877 = vextract.low.u32 %v2876
        %v2878 = vextract.high.u32 %v2876
        %v2879 = vmul.u32 %v2872, %v2863
        %v2880 = vadd.s32 %v2875, %v2877
        %vm2881 = vc.u32 %v2875, %v2877
        %v2882 = vadd.s32 %v2878, 1
        %v2883 = vsel %vm2881, %v2882, %v2878
        %v2884 = vadd.s32 %v2879, %v2883
        %v2885 = vadd.s32 %v2884, 536870912
        %v2886 = vshrl.u32 %v2885, 30
        %v2887 = vshll.u32 %v2886, 30
        %v2888 = vsub.s32 %v2884, %v2887
        %vm2889 = vcmp.lt.s32.totalorder %v2888, 0
        %v2890 = vsub.s32 0, %v2888
        %v2891 = vsel %vm2889, %v2890, %v2888
        %v2892 = vclz %v2891
        %v2893 = vsub.s32 %v2892, 2
        %vm2894 = vcmp.gt.s32.totalorder 0, %v2893
        %v2895 = vsel %vm2894, 0, %v2893
        %v2896 = vsub.s32 32, %v2895
        %v2897 = vshll.u32 %v2888, %v2895
        %v2898 = vshrl.u32 %v2880, %v2896
        %v2899 = vor.u32 %v2897, %v2898
        %v2900 = vsub.s32 4294967266, %v2895
        %v2901 = vadd.s32 %v2900, 127
        %v2902 = vshll.u32 %v2901, 23
        %v2903 = vor.u32 4788187, %v2902
        %v2904 = vand.u32 2147483647, %v2903
        %v2906 = vcvt.s32.f32 %v2899
        %v2907 = vmul.f32 %v2906, %v2904
        %v2908 = vxor.u32 %v2907, 2147483648
        %v2909 = vsel %vm2826, %v2908, %v2907
        %v2910 = vsub.s32 4, %v2886
        %v2911 = vsel %vm2826, %v2910, %v2886
        %v2912 = vsel %vm2825, %v414, %v2909
        %v2913 = vsel %vm2825, 0, %v2911
        %v2914 = vcosq.f32.pop %v2912
        %v2915 = vsinq.f32.pop %v2912
        %vm2916 = vweird.f32 %v414
        %v2917 = vand.u32 %v2913, 3
        %vm2918 = vcmp.lt.s32.totalorder %v2917, 2
        %vm2919 = vcmp.eq.s32.totalorder %v2917, 0
        %v2920 = vxor.u32 %v2915, 2147483648
        %v2921 = vsel %vm2919, %v2914, %v2920
        %vm2922 = vcmp.eq.s32.totalorder %v2917, 2
        %v2923 = vxor.u32 %v2914, 2147483648
        %v2924 = vsel %vm2922, %v2923, %v2915
        %v2925 = vsel %vm2918, %v2921, %v2924
        %v2926 = vsel %vm2916, nan, %v2925
        %v2927 = vand.u32 2147483647, %v415
        %vm2928 = vcmp.le.f32.partialorder %v2927, 0.7853982
        %vm2929 = vcmp.lt.s32.totalorder %v415, 0
        %v2930 = vand.u32 %v415, 2139095040
        %v2931 = vshrl.u32 %v2930, 23
        %v2932 = vsub.s32 %v2931, 127
        %v2933 = vand.u32 2147483647, %v415
        %v2934 = vand.u32 %v2933, 8388607
        %v2935 = vor.u32 %v2934, 8388608
        %v2936 = vsub.s32 0, %v2935
        %v2937 = vadd.s32 %v2932, 1
        %vm2938 = vcmp.gt.s32.totalorder %v2937, 0
        %v2939 = vsel %vm2938, %v2937, 0
        %v2940 = vshrl.u32 %v2939, 5
        %v2941 = vand.u32 %v2939, 31
        %v2942 = vsub.s32 32, %v2941
        %v2943 = vshrl.u32 683565275, %v2942
        %v2944 = vshll.u32 683565275, %v2941
        %v2945 = vshrl.u32 2475754826, %v2942
        %v2946 = vor.u32 %v2944, %v2945
        %v2947 = vshll.u32 2475754826, %v2941
        %v2948 = vshrl.u32 2131351028, %v2942
        %v2949 = vor.u32 %v2947, %v2948
        %v2950 = vshll.u32 2131351028, %v2941
        %v2951 = vshrl.u32 2102212464, %v2942
        %v2952 = vor.u32 %v2950, %v2951
        %v2953 = vshll.u32 2102212464, %v2941
        %v2954 = vshrl.u32 920167782, %v2942
        %v2955 = vor.u32 %v2953, %v2954
        %v2956 = vshll.u32 920167782, %v2941
        %v2957 = vshrl.u32 1326507024, %v2942
        %v2958 = vor.u32 %v2956, %v2957
        %vm2959 = vcmp.lt.s32.totalorder %v2940, 1
        %vm2960 = vcmp.lt.s32.totalorder %v2940, 2
        %vm2961 = vcmp.lt.s32.totalorder %v2940, 3
        %vm2962 = vcmp.lt.s32.totalorder %v2940, 4
        %v2963 = vsel %vm2959, %v2943, %v2946
        %v2964 = vsel %vm2962, %v2952, 2102212464
        %v2965 = vsel %vm2961, %v2949, %v2964
        %v2966 = vsel %vm2960, %v2963, %v2965
        %v2967 = vsel %vm2959, %v2946, %v2949
        %v2968 = vsel %vm2962, %v2955, 920167782
        %v2969 = vsel %vm2961, %v2952, %v2968
        %v2970 = vsel %vm2960, %v2967, %v2969
        %v2971 = vsel %vm2959, %v2949, %v2952
        %v2972 = vsel %vm2962, %v2958, 1326507024
        %v2973 = vsel %vm2961, %v2955, %v2972
        %v2974 = vsel %vm2960, %v2971, %v2973
        %v2975 = vshll.u32 %v2935, 8
        %v2976 = vmul.u32.u64.compose %v2975, %v2974
        %v2977 = vextract.low.u32 %v2976
        %v2978 = vextract.high.u32 %v2976
        %v2979 = vmul.u32.u64.compose %v2975, %v2970
        %v2980 = vextract.low.u32 %v2979
        %v2981 = vextract.high.u32 %v2979
        %v2982 = vmul.u32 %v2975, %v2966
        %v2983 = vadd.s32 %v2978, %v2980
        %vm2984 = vc.u32 %v2978, %v2980
        %v2985 = vadd.s32 %v2981, 1
        %v2986 = vsel %vm2984, %v2985, %v2981
        %v2987 = vadd.s32 %v2982, %v2986
        %v2988 = vadd.s32 %v2987, 536870912
        %v2989 = vshrl.u32 %v2988, 30
        %v2990 = vshll.u32 %v2989, 30
        %v2991 = vsub.s32 %v2987, %v2990
        %vm2992 = vcmp.lt.s32.totalorder %v2991, 0
        %v2993 = vsub.s32 0, %v2991
        %v2994 = vsel %vm2992, %v2993, %v2991
        %v2995 = vclz %v2994
        %v2996 = vsub.s32 %v2995, 2
        %vm2997 = vcmp.gt.s32.totalorder 0, %v2996
        %v2998 = vsel %vm2997, 0, %v2996
        %v2999 = vsub.s32 32, %v2998
        %v3000 = vshll.u32 %v2991, %v2998
        %v3001 = vshrl.u32 %v2983, %v2999
        %v3002 = vor.u32 %v3000, %v3001
        %v3003 = vsub.s32 4294967266, %v2998
        %v3004 = vadd.s32 %v3003, 127
        %v3005 = vshll.u32 %v3004, 23
        %v3006 = vor.u32 4788187, %v3005
        %v3007 = vand.u32 2147483647, %v3006
        %v3009 = vcvt.s32.f32 %v3002
        %v3010 = vmul.f32 %v3009, %v3007
        %v3011 = vxor.u32 %v3010, 2147483648
        %v3012 = vsel %vm2929, %v3011, %v3010
        %v3013 = vsub.s32 4, %v2989
        %v3014 = vsel %vm2929, %v3013, %v2989
        %v3015 = vsel %vm2928, %v415, %v3012
        %v3016 = vsel %vm2928, 0, %v3014
        %v3017 = vcosq.f32.pop %v3015
        %v3018 = vsinq.f32.pop %v3015
        %vm3019 = vweird.f32 %v415
        %v3020 = vand.u32 %v3016, 3
        %vm3021 = vcmp.lt.s32.totalorder %v3020, 2
        %vm3022 = vcmp.eq.s32.totalorder %v3020, 0
        %v3023 = vxor.u32 %v3018, 2147483648
        %v3024 = vsel %vm3022, %v3017, %v3023
        %vm3025 = vcmp.eq.s32.totalorder %v3020, 2
        %v3026 = vxor.u32 %v3017, 2147483648
        %v3027 = vsel %vm3025, %v3026, %v3018
        %v3028 = vsel %vm3021, %v3024, %v3027
        %v3029 = vsel %vm3019, nan, %v3028
        %v3030 = vand.u32 2147483647, %v416
        %vm3031 = vcmp.le.f32.partialorder %v3030, 0.7853982
        %vm3032 = vcmp.lt.s32.totalorder %v416, 0
        %v3033 = vand.u32 %v416, 2139095040
        %v3034 = vshrl.u32 %v3033, 23
        %v3035 = vsub.s32 %v3034, 127
        %v3036 = vand.u32 2147483647, %v416
        %v3037 = vand.u32 %v3036, 8388607
        %v3038 = vor.u32 %v3037, 8388608
        %v3039 = vsub.s32 0, %v3038
        %v3040 = vadd.s32 %v3035, 1
        %vm3041 = vcmp.gt.s32.totalorder %v3040, 0
        %v3042 = vsel %vm3041, %v3040, 0
        %v3043 = vshrl.u32 %v3042, 5
        %v3044 = vand.u32 %v3042, 31
        %v3045 = vsub.s32 32, %v3044
        %v3046 = vshrl.u32 683565275, %v3045
        %v3047 = vshll.u32 683565275, %v3044
        %v3048 = vshrl.u32 2475754826, %v3045
        %v3049 = vor.u32 %v3047, %v3048
        %v3050 = vshll.u32 2475754826, %v3044
        %v3051 = vshrl.u32 2131351028, %v3045
        %v3052 = vor.u32 %v3050, %v3051
        %v3053 = vshll.u32 2131351028, %v3044
        %v3054 = vshrl.u32 2102212464, %v3045
        %v3055 = vor.u32 %v3053, %v3054
        %v3056 = vshll.u32 2102212464, %v3044
        %v3057 = vshrl.u32 920167782, %v3045
        %v3058 = vor.u32 %v3056, %v3057
        %v3059 = vshll.u32 920167782, %v3044
        %v3060 = vshrl.u32 1326507024, %v3045
        %v3061 = vor.u32 %v3059, %v3060
        %vm3062 = vcmp.lt.s32.totalorder %v3043, 1
        %vm3063 = vcmp.lt.s32.totalorder %v3043, 2
        %vm3064 = vcmp.lt.s32.totalorder %v3043, 3
        %vm3065 = vcmp.lt.s32.totalorder %v3043, 4
        %v3066 = vsel %vm3062, %v3046, %v3049
        %v3067 = vsel %vm3065, %v3055, 2102212464
        %v3068 = vsel %vm3064, %v3052, %v3067
        %v3069 = vsel %vm3063, %v3066, %v3068
        %v3070 = vsel %vm3062, %v3049, %v3052
        %v3071 = vsel %vm3065, %v3058, 920167782
        %v3072 = vsel %vm3064, %v3055, %v3071
        %v3073 = vsel %vm3063, %v3070, %v3072
        %v3074 = vsel %vm3062, %v3052, %v3055
        %v3075 = vsel %vm3065, %v3061, 1326507024
        %v3076 = vsel %vm3064, %v3058, %v3075
        %v3077 = vsel %vm3063, %v3074, %v3076
        %v3078 = vshll.u32 %v3038, 8
        %v3079 = vmul.u32.u64.compose %v3078, %v3077
        %v3080 = vextract.low.u32 %v3079
        %v3081 = vextract.high.u32 %v3079
        %v3082 = vmul.u32.u64.compose %v3078, %v3073
        %v3083 = vextract.low.u32 %v3082
        %v3084 = vextract.high.u32 %v3082
        %v3085 = vmul.u32 %v3078, %v3069
        %v3086 = vadd.s32 %v3081, %v3083
        %vm3087 = vc.u32 %v3081, %v3083
        %v3088 = vadd.s32 %v3084, 1
        %v3089 = vsel %vm3087, %v3088, %v3084
        %v3090 = vadd.s32 %v3085, %v3089
        %v3091 = vadd.s32 %v3090, 536870912
        %v3092 = vshrl.u32 %v3091, 30
        %v3093 = vshll.u32 %v3092, 30
        %v3094 = vsub.s32 %v3090, %v3093
        %vm3095 = vcmp.lt.s32.totalorder %v3094, 0
        %v3096 = vsub.s32 0, %v3094
        %v3097 = vsel %vm3095, %v3096, %v3094
        %v3098 = vclz %v3097
        %v3099 = vsub.s32 %v3098, 2
        %vm3100 = vcmp.gt.s32.totalorder 0, %v3099
        %v3101 = vsel %vm3100, 0, %v3099
        %v3102 = vsub.s32 32, %v3101
        %v3103 = vshll.u32 %v3094, %v3101
        %v3104 = vshrl.u32 %v3086, %v3102
        %v3105 = vor.u32 %v3103, %v3104
        %v3106 = vsub.s32 4294967266, %v3101
        %v3107 = vadd.s32 %v3106, 127
        %v3108 = vshll.u32 %v3107, 23
        %v3109 = vor.u32 4788187, %v3108
        %v3110 = vand.u32 2147483647, %v3109
        %v3112 = vcvt.s32.f32 %v3105
        %v3113 = vmul.f32 %v3112, %v3110
        %v3114 = vxor.u32 %v3113, 2147483648
        %v3115 = vsel %vm3032, %v3114, %v3113
        %v3116 = vsub.s32 4, %v3092
        %v3117 = vsel %vm3032, %v3116, %v3092
        %v3118 = vsel %vm3031, %v416, %v3115
        %v3119 = vsel %vm3031, 0, %v3117
        %v3120 = vcosq.f32.pop %v3118
        %v3121 = vsinq.f32.pop %v3118
        %vm3122 = vweird.f32 %v416
        %v3123 = vand.u32 %v3119, 3
        %vm3124 = vcmp.lt.s32.totalorder %v3123, 2
        %vm3125 = vcmp.eq.s32.totalorder %v3123, 0
        %v3126 = vxor.u32 %v3121, 2147483648
        %v3127 = vsel %vm3125, %v3120, %v3126
        %vm3128 = vcmp.eq.s32.totalorder %v3123, 2
        %v3129 = vxor.u32 %v3120, 2147483648
        %v3130 = vsel %vm3128, %v3129, %v3121
        %v3131 = vsel %vm3124, %v3127, %v3130
        %v3132 = vsel %vm3122, nan, %v3131
        %v3133 = vand.u32 2147483647, %v417
        %vm3134 = vcmp.le.f32.partialorder %v3133, 0.7853982
        %vm3135 = vcmp.lt.s32.totalorder %v417, 0
        %v3136 = vand.u32 %v417, 2139095040
        %v3137 = vshrl.u32 %v3136, 23
        %v3138 = vsub.s32 %v3137, 127
        %v3139 = vand.u32 2147483647, %v417
        %v3140 = vand.u32 %v3139, 8388607
        %v3141 = vor.u32 %v3140, 8388608
        %v3142 = vsub.s32 0, %v3141
        %v3143 = vadd.s32 %v3138, 1
        %vm3144 = vcmp.gt.s32.totalorder %v3143, 0
        %v3145 = vsel %vm3144, %v3143, 0
        %v3146 = vshrl.u32 %v3145, 5
        %v3147 = vand.u32 %v3145, 31
        %v3148 = vsub.s32 32, %v3147
        %v3149 = vshrl.u32 683565275, %v3148
        %v3150 = vshll.u32 683565275, %v3147
        %v3151 = vshrl.u32 2475754826, %v3148
        %v3152 = vor.u32 %v3150, %v3151
        %v3153 = vshll.u32 2475754826, %v3147
        %v3154 = vshrl.u32 2131351028, %v3148
        %v3155 = vor.u32 %v3153, %v3154
        %v3156 = vshll.u32 2131351028, %v3147
        %v3157 = vshrl.u32 2102212464, %v3148
        %v3158 = vor.u32 %v3156, %v3157
        %v3159 = vshll.u32 2102212464, %v3147
        %v3160 = vshrl.u32 920167782, %v3148
        %v3161 = vor.u32 %v3159, %v3160
        %v3162 = vshll.u32 920167782, %v3147
        %v3163 = vshrl.u32 1326507024, %v3148
        %v3164 = vor.u32 %v3162, %v3163
        %vm3165 = vcmp.lt.s32.totalorder %v3146, 1
        %vm3166 = vcmp.lt.s32.totalorder %v3146, 2
        %vm3167 = vcmp.lt.s32.totalorder %v3146, 3
        %vm3168 = vcmp.lt.s32.totalorder %v3146, 4
        %v3169 = vsel %vm3165, %v3149, %v3152
        %v3170 = vsel %vm3168, %v3158, 2102212464
        %v3171 = vsel %vm3167, %v3155, %v3170
        %v3172 = vsel %vm3166, %v3169, %v3171
        %v3173 = vsel %vm3165, %v3152, %v3155
        %v3174 = vsel %vm3168, %v3161, 920167782
        %v3175 = vsel %vm3167, %v3158, %v3174
        %v3176 = vsel %vm3166, %v3173, %v3175
        %v3177 = vsel %vm3165, %v3155, %v3158
        %v3178 = vsel %vm3168, %v3164, 1326507024
        %v3179 = vsel %vm3167, %v3161, %v3178
        %v3180 = vsel %vm3166, %v3177, %v3179
        %v3181 = vshll.u32 %v3141, 8
        %v3182 = vmul.u32.u64.compose %v3181, %v3180
        %v3183 = vextract.low.u32 %v3182
        %v3184 = vextract.high.u32 %v3182
        %v3185 = vmul.u32.u64.compose %v3181, %v3176
        %v3186 = vextract.low.u32 %v3185
        %v3187 = vextract.high.u32 %v3185
        %v3188 = vmul.u32 %v3181, %v3172
        %v3189 = vadd.s32 %v3184, %v3186
        %vm3190 = vc.u32 %v3184, %v3186
        %v3191 = vadd.s32 %v3187, 1
        %v3192 = vsel %vm3190, %v3191, %v3187
        %v3193 = vadd.s32 %v3188, %v3192
        %v3194 = vadd.s32 %v3193, 536870912
        %v3195 = vshrl.u32 %v3194, 30
        %v3196 = vshll.u32 %v3195, 30
        %v3197 = vsub.s32 %v3193, %v3196
        %vm3198 = vcmp.lt.s32.totalorder %v3197, 0
        %v3199 = vsub.s32 0, %v3197
        %v3200 = vsel %vm3198, %v3199, %v3197
        %v3201 = vclz %v3200
        %v3202 = vsub.s32 %v3201, 2
        %vm3203 = vcmp.gt.s32.totalorder 0, %v3202
        %v3204 = vsel %vm3203, 0, %v3202
        %v3205 = vsub.s32 32, %v3204
        %v3206 = vshll.u32 %v3197, %v3204
        %v3207 = vshrl.u32 %v3189, %v3205
        %v3208 = vor.u32 %v3206, %v3207
        %v3209 = vsub.s32 4294967266, %v3204
        %v3210 = vadd.s32 %v3209, 127
        %v3211 = vshll.u32 %v3210, 23
        %v3212 = vor.u32 4788187, %v3211
        %v3213 = vand.u32 2147483647, %v3212
        %v3215 = vcvt.s32.f32 %v3208
        %v3216 = vmul.f32 %v3215, %v3213
        %v3217 = vxor.u32 %v3216, 2147483648
        %v3218 = vsel %vm3135, %v3217, %v3216
        %v3219 = vsub.s32 4, %v3195
        %v3220 = vsel %vm3135, %v3219, %v3195
        %v3221 = vsel %vm3134, %v417, %v3218
        %v3222 = vsel %vm3134, 0, %v3220
        %v3223 = vcosq.f32.pop %v3221
        %v3224 = vsinq.f32.pop %v3221
        %vm3225 = vweird.f32 %v417
        %v3226 = vand.u32 %v3222, 3
        %vm3227 = vcmp.lt.s32.totalorder %v3226, 2
        %vm3228 = vcmp.eq.s32.totalorder %v3226, 0
        %v3229 = vxor.u32 %v3224, 2147483648
        %v3230 = vsel %vm3228, %v3223, %v3229
        %vm3231 = vcmp.eq.s32.totalorder %v3226, 2
        %v3232 = vxor.u32 %v3223, 2147483648
        %v3233 = vsel %vm3231, %v3232, %v3224
        %v3234 = vsel %vm3227, %v3230, %v3233
        %v3235 = vsel %vm3225, nan, %v3234
        %v3236 = vand.u32 2147483647, %v418
        %vm3237 = vcmp.le.f32.partialorder %v3236, 0.7853982
        %vm3238 = vcmp.lt.s32.totalorder %v418, 0
        %v3239 = vand.u32 %v418, 2139095040
        %v3240 = vshrl.u32 %v3239, 23
        %v3241 = vsub.s32 %v3240, 127
        %v3242 = vand.u32 2147483647, %v418
        %v3243 = vand.u32 %v3242, 8388607
        %v3244 = vor.u32 %v3243, 8388608
        %v3245 = vsub.s32 0, %v3244
        %v3246 = vadd.s32 %v3241, 1
        %vm3247 = vcmp.gt.s32.totalorder %v3246, 0
        %v3248 = vsel %vm3247, %v3246, 0
        %v3249 = vshrl.u32 %v3248, 5
        %v3250 = vand.u32 %v3248, 31
        %v3251 = vsub.s32 32, %v3250
        %v3252 = vshrl.u32 683565275, %v3251
        %v3253 = vshll.u32 683565275, %v3250
        %v3254 = vshrl.u32 2475754826, %v3251
        %v3255 = vor.u32 %v3253, %v3254
        %v3256 = vshll.u32 2475754826, %v3250
        %v3257 = vshrl.u32 2131351028, %v3251
        %v3258 = vor.u32 %v3256, %v3257
        %v3259 = vshll.u32 2131351028, %v3250
        %v3260 = vshrl.u32 2102212464, %v3251
        %v3261 = vor.u32 %v3259, %v3260
        %v3262 = vshll.u32 2102212464, %v3250
        %v3263 = vshrl.u32 920167782, %v3251
        %v3264 = vor.u32 %v3262, %v3263
        %v3265 = vshll.u32 920167782, %v3250
        %v3266 = vshrl.u32 1326507024, %v3251
        %v3267 = vor.u32 %v3265, %v3266
        %vm3268 = vcmp.lt.s32.totalorder %v3249, 1
        %vm3269 = vcmp.lt.s32.totalorder %v3249, 2
        %vm3270 = vcmp.lt.s32.totalorder %v3249, 3
        %vm3271 = vcmp.lt.s32.totalorder %v3249, 4
        %v3272 = vsel %vm3268, %v3252, %v3255
        %v3273 = vsel %vm3271, %v3261, 2102212464
        %v3274 = vsel %vm3270, %v3258, %v3273
        %v3275 = vsel %vm3269, %v3272, %v3274
        %v3276 = vsel %vm3268, %v3255, %v3258
        %v3277 = vsel %vm3271, %v3264, 920167782
        %v3278 = vsel %vm3270, %v3261, %v3277
        %v3279 = vsel %vm3269, %v3276, %v3278
        %v3280 = vsel %vm3268, %v3258, %v3261
        %v3281 = vsel %vm3271, %v3267, 1326507024
        %v3282 = vsel %vm3270, %v3264, %v3281
        %v3283 = vsel %vm3269, %v3280, %v3282
        %v3284 = vshll.u32 %v3244, 8
        %v3285 = vmul.u32.u64.compose %v3284, %v3283
        %v3286 = vextract.low.u32 %v3285
        %v3287 = vextract.high.u32 %v3285
        %v3288 = vmul.u32.u64.compose %v3284, %v3279
        %v3289 = vextract.low.u32 %v3288
        %v3290 = vextract.high.u32 %v3288
        %v3291 = vmul.u32 %v3284, %v3275
        %v3292 = vadd.s32 %v3287, %v3289
        %vm3293 = vc.u32 %v3287, %v3289
        %v3294 = vadd.s32 %v3290, 1
        %v3295 = vsel %vm3293, %v3294, %v3290
        %v3296 = vadd.s32 %v3291, %v3295
        %v3297 = vadd.s32 %v3296, 536870912
        %v3298 = vshrl.u32 %v3297, 30
        %v3299 = vshll.u32 %v3298, 30
        %v3300 = vsub.s32 %v3296, %v3299
        %vm3301 = vcmp.lt.s32.totalorder %v3300, 0
        %v3302 = vsub.s32 0, %v3300
        %v3303 = vsel %vm3301, %v3302, %v3300
        %v3304 = vclz %v3303
        %v3305 = vsub.s32 %v3304, 2
        %vm3306 = vcmp.gt.s32.totalorder 0, %v3305
        %v3307 = vsel %vm3306, 0, %v3305
        %v3308 = vsub.s32 32, %v3307
        %v3309 = vshll.u32 %v3300, %v3307
        %v3310 = vshrl.u32 %v3292, %v3308
        %v3311 = vor.u32 %v3309, %v3310
        %v3312 = vsub.s32 4294967266, %v3307
        %v3313 = vadd.s32 %v3312, 127
        %v3314 = vshll.u32 %v3313, 23
        %v3315 = vor.u32 4788187, %v3314
        %v3316 = vand.u32 2147483647, %v3315
        %v3318 = vcvt.s32.f32 %v3311
        %v3319 = vmul.f32 %v3318, %v3316
        %v3320 = vxor.u32 %v3319, 2147483648
        %v3321 = vsel %vm3238, %v3320, %v3319
        %v3322 = vsub.s32 4, %v3298
        %v3323 = vsel %vm3238, %v3322, %v3298
        %v3324 = vsel %vm3237, %v418, %v3321
        %v3325 = vsel %vm3237, 0, %v3323
        %v3326 = vcosq.f32.pop %v3324
        %v3327 = vsinq.f32.pop %v3324
        %vm3328 = vweird.f32 %v418
        %v3329 = vand.u32 %v3325, 3
        %vm3330 = vcmp.lt.s32.totalorder %v3329, 2
        %vm3331 = vcmp.eq.s32.totalorder %v3329, 0
        %v3332 = vxor.u32 %v3327, 2147483648
        %v3333 = vsel %vm3331, %v3326, %v3332
        %vm3334 = vcmp.eq.s32.totalorder %v3329, 2
        %v3335 = vxor.u32 %v3326, 2147483648
        %v3336 = vsel %vm3334, %v3335, %v3327
        %v3337 = vsel %vm3330, %v3333, %v3336
        %v3338 = vsel %vm3328, nan, %v3337
        %v3339 = vand.u32 2147483647, %v419
        %vm3340 = vcmp.le.f32.partialorder %v3339, 0.7853982
        %vm3341 = vcmp.lt.s32.totalorder %v419, 0
        %v3342 = vand.u32 %v419, 2139095040
        %v3343 = vshrl.u32 %v3342, 23
        %v3344 = vsub.s32 %v3343, 127
        %v3345 = vand.u32 2147483647, %v419
        %v3346 = vand.u32 %v3345, 8388607
        %v3347 = vor.u32 %v3346, 8388608
        %v3348 = vsub.s32 0, %v3347
        %v3349 = vadd.s32 %v3344, 1
        %vm3350 = vcmp.gt.s32.totalorder %v3349, 0
        %v3351 = vsel %vm3350, %v3349, 0
        %v3352 = vshrl.u32 %v3351, 5
        %v3353 = vand.u32 %v3351, 31
        %v3354 = vsub.s32 32, %v3353
        %v3355 = vshrl.u32 683565275, %v3354
        %v3356 = vshll.u32 683565275, %v3353
        %v3357 = vshrl.u32 2475754826, %v3354
        %v3358 = vor.u32 %v3356, %v3357
        %v3359 = vshll.u32 2475754826, %v3353
        %v3360 = vshrl.u32 2131351028, %v3354
        %v3361 = vor.u32 %v3359, %v3360
        %v3362 = vshll.u32 2131351028, %v3353
        %v3363 = vshrl.u32 2102212464, %v3354
        %v3364 = vor.u32 %v3362, %v3363
        %v3365 = vshll.u32 2102212464, %v3353
        %v3366 = vshrl.u32 920167782, %v3354
        %v3367 = vor.u32 %v3365, %v3366
        %v3368 = vshll.u32 920167782, %v3353
        %v3369 = vshrl.u32 1326507024, %v3354
        %v3370 = vor.u32 %v3368, %v3369
        %vm3371 = vcmp.lt.s32.totalorder %v3352, 1
        %vm3372 = vcmp.lt.s32.totalorder %v3352, 2
        %vm3373 = vcmp.lt.s32.totalorder %v3352, 3
        %vm3374 = vcmp.lt.s32.totalorder %v3352, 4
        %v3375 = vsel %vm3371, %v3355, %v3358
        %v3376 = vsel %vm3374, %v3364, 2102212464
        %v3377 = vsel %vm3373, %v3361, %v3376
        %v3378 = vsel %vm3372, %v3375, %v3377
        %v3379 = vsel %vm3371, %v3358, %v3361
        %v3380 = vsel %vm3374, %v3367, 920167782
        %v3381 = vsel %vm3373, %v3364, %v3380
        %v3382 = vsel %vm3372, %v3379, %v3381
        %v3383 = vsel %vm3371, %v3361, %v3364
        %v3384 = vsel %vm3374, %v3370, 1326507024
        %v3385 = vsel %vm3373, %v3367, %v3384
        %v3386 = vsel %vm3372, %v3383, %v3385
        %v3387 = vshll.u32 %v3347, 8
        %v3388 = vmul.u32.u64.compose %v3387, %v3386
        %v3389 = vextract.low.u32 %v3388
        %v3390 = vextract.high.u32 %v3388
        %v3391 = vmul.u32.u64.compose %v3387, %v3382
        %v3392 = vextract.low.u32 %v3391
        %v3393 = vextract.high.u32 %v3391
        %v3394 = vmul.u32 %v3387, %v3378
        %v3395 = vadd.s32 %v3390, %v3392
        %vm3396 = vc.u32 %v3390, %v3392
        %v3397 = vadd.s32 %v3393, 1
        %v3398 = vsel %vm3396, %v3397, %v3393
        %v3399 = vadd.s32 %v3394, %v3398
        %v3400 = vadd.s32 %v3399, 536870912
        %v3401 = vshrl.u32 %v3400, 30
        %v3402 = vshll.u32 %v3401, 30
        %v3403 = vsub.s32 %v3399, %v3402
        %vm3404 = vcmp.lt.s32.totalorder %v3403, 0
        %v3405 = vsub.s32 0, %v3403
        %v3406 = vsel %vm3404, %v3405, %v3403
        %v3407 = vclz %v3406
        %v3408 = vsub.s32 %v3407, 2
        %vm3409 = vcmp.gt.s32.totalorder 0, %v3408
        %v3410 = vsel %vm3409, 0, %v3408
        %v3411 = vsub.s32 32, %v3410
        %v3412 = vshll.u32 %v3403, %v3410
        %v3413 = vshrl.u32 %v3395, %v3411
        %v3414 = vor.u32 %v3412, %v3413
        %v3415 = vsub.s32 4294967266, %v3410
        %v3416 = vadd.s32 %v3415, 127
        %v3417 = vshll.u32 %v3416, 23
        %v3418 = vor.u32 4788187, %v3417
        %v3419 = vand.u32 2147483647, %v3418
        %v3421 = vcvt.s32.f32 %v3414
        %v3422 = vmul.f32 %v3421, %v3419
        %v3423 = vxor.u32 %v3422, 2147483648
        %v3424 = vsel %vm3341, %v3423, %v3422
        %v3425 = vsub.s32 4, %v3401
        %v3426 = vsel %vm3341, %v3425, %v3401
        %v3427 = vsel %vm3340, %v419, %v3424
        %v3428 = vsel %vm3340, 0, %v3426
        %v3429 = vcosq.f32.pop %v3427
        %v3430 = vsinq.f32.pop %v3427
        %vm3431 = vweird.f32 %v419
        %v3432 = vand.u32 %v3428, 3
        %vm3433 = vcmp.lt.s32.totalorder %v3432, 2
        %vm3434 = vcmp.eq.s32.totalorder %v3432, 0
        %v3435 = vxor.u32 %v3430, 2147483648
        %v3436 = vsel %vm3434, %v3429, %v3435
        %vm3437 = vcmp.eq.s32.totalorder %v3432, 2
        %v3438 = vxor.u32 %v3429, 2147483648
        %v3439 = vsel %vm3437, %v3438, %v3430
        %v3440 = vsel %vm3433, %v3436, %v3439
        %v3441 = vsel %vm3431, nan, %v3440
        %v3442 = vand.u32 2147483647, %v420
        %vm3443 = vcmp.le.f32.partialorder %v3442, 0.7853982
        %vm3444 = vcmp.lt.s32.totalorder %v420, 0
        %v3445 = vand.u32 %v420, 2139095040
        %v3446 = vshrl.u32 %v3445, 23
        %v3447 = vsub.s32 %v3446, 127
        %v3448 = vand.u32 2147483647, %v420
        %v3449 = vand.u32 %v3448, 8388607
        %v3450 = vor.u32 %v3449, 8388608
        %v3451 = vsub.s32 0, %v3450
        %v3452 = vadd.s32 %v3447, 1
        %vm3453 = vcmp.gt.s32.totalorder %v3452, 0
        %v3454 = vsel %vm3453, %v3452, 0
        %v3455 = vshrl.u32 %v3454, 5
        %v3456 = vand.u32 %v3454, 31
        %v3457 = vsub.s32 32, %v3456
        %v3458 = vshrl.u32 683565275, %v3457
        %v3459 = vshll.u32 683565275, %v3456
        %v3460 = vshrl.u32 2475754826, %v3457
        %v3461 = vor.u32 %v3459, %v3460
        %v3462 = vshll.u32 2475754826, %v3456
        %v3463 = vshrl.u32 2131351028, %v3457
        %v3464 = vor.u32 %v3462, %v3463
        %v3465 = vshll.u32 2131351028, %v3456
        %v3466 = vshrl.u32 2102212464, %v3457
        %v3467 = vor.u32 %v3465, %v3466
        %v3468 = vshll.u32 2102212464, %v3456
        %v3469 = vshrl.u32 920167782, %v3457
        %v3470 = vor.u32 %v3468, %v3469
        %v3471 = vshll.u32 920167782, %v3456
        %v3472 = vshrl.u32 1326507024, %v3457
        %v3473 = vor.u32 %v3471, %v3472
        %vm3474 = vcmp.lt.s32.totalorder %v3455, 1
        %vm3475 = vcmp.lt.s32.totalorder %v3455, 2
        %vm3476 = vcmp.lt.s32.totalorder %v3455, 3
        %vm3477 = vcmp.lt.s32.totalorder %v3455, 4
        %v3478 = vsel %vm3474, %v3458, %v3461
        %v3479 = vsel %vm3477, %v3467, 2102212464
        %v3480 = vsel %vm3476, %v3464, %v3479
        %v3481 = vsel %vm3475, %v3478, %v3480
        %v3482 = vsel %vm3474, %v3461, %v3464
        %v3483 = vsel %vm3477, %v3470, 920167782
        %v3484 = vsel %vm3476, %v3467, %v3483
        %v3485 = vsel %vm3475, %v3482, %v3484
        %v3486 = vsel %vm3474, %v3464, %v3467
        %v3487 = vsel %vm3477, %v3473, 1326507024
        %v3488 = vsel %vm3476, %v3470, %v3487
        %v3489 = vsel %vm3475, %v3486, %v3488
        %v3490 = vshll.u32 %v3450, 8
        %v3491 = vmul.u32.u64.compose %v3490, %v3489
        %v3492 = vextract.low.u32 %v3491
        %v3493 = vextract.high.u32 %v3491
        %v3494 = vmul.u32.u64.compose %v3490, %v3485
        %v3495 = vextract.low.u32 %v3494
        %v3496 = vextract.high.u32 %v3494
        %v3497 = vmul.u32 %v3490, %v3481
        %v3498 = vadd.s32 %v3493, %v3495
        %vm3499 = vc.u32 %v3493, %v3495
        %v3500 = vadd.s32 %v3496, 1
        %v3501 = vsel %vm3499, %v3500, %v3496
        %v3502 = vadd.s32 %v3497, %v3501
        %v3503 = vadd.s32 %v3502, 536870912
        %v3504 = vshrl.u32 %v3503, 30
        %v3505 = vshll.u32 %v3504, 30
        %v3506 = vsub.s32 %v3502, %v3505
        %vm3507 = vcmp.lt.s32.totalorder %v3506, 0
        %v3508 = vsub.s32 0, %v3506
        %v3509 = vsel %vm3507, %v3508, %v3506
        %v3510 = vclz %v3509
        %v3511 = vsub.s32 %v3510, 2
        %vm3512 = vcmp.gt.s32.totalorder 0, %v3511
        %v3513 = vsel %vm3512, 0, %v3511
        %v3514 = vsub.s32 32, %v3513
        %v3515 = vshll.u32 %v3506, %v3513
        %v3516 = vshrl.u32 %v3498, %v3514
        %v3517 = vor.u32 %v3515, %v3516
        %v3518 = vsub.s32 4294967266, %v3513
        %v3519 = vadd.s32 %v3518, 127
        %v3520 = vshll.u32 %v3519, 23
        %v3521 = vor.u32 4788187, %v3520
        %v3522 = vand.u32 2147483647, %v3521
        %v3524 = vcvt.s32.f32 %v3517
        %v3525 = vmul.f32 %v3524, %v3522
        %v3526 = vxor.u32 %v3525, 2147483648
        %v3527 = vsel %vm3444, %v3526, %v3525
        %v3528 = vsub.s32 4, %v3504
        %v3529 = vsel %vm3444, %v3528, %v3504
        %v3530 = vsel %vm3443, %v420, %v3527
        %v3531 = vsel %vm3443, 0, %v3529
        %v3532 = vcosq.f32.pop %v3530
        %v3533 = vsinq.f32.pop %v3530
        %vm3534 = vweird.f32 %v420
        %v3535 = vand.u32 %v3531, 3
        %vm3536 = vcmp.lt.s32.totalorder %v3535, 2
        %vm3537 = vcmp.eq.s32.totalorder %v3535, 0
        %v3538 = vxor.u32 %v3533, 2147483648
        %v3539 = vsel %vm3537, %v3532, %v3538
        %vm3540 = vcmp.eq.s32.totalorder %v3535, 2
        %v3541 = vxor.u32 %v3532, 2147483648
        %v3542 = vsel %vm3540, %v3541, %v3533
        %v3543 = vsel %vm3536, %v3539, %v3542
        %v3544 = vsel %vm3534, nan, %v3543
        %v3545 = vand.u32 2147483647, %v421
        %vm3546 = vcmp.le.f32.partialorder %v3545, 0.7853982
        %vm3547 = vcmp.lt.s32.totalorder %v421, 0
        %v3548 = vand.u32 %v421, 2139095040
        %v3549 = vshrl.u32 %v3548, 23
        %v3550 = vsub.s32 %v3549, 127
        %v3551 = vand.u32 2147483647, %v421
        %v3552 = vand.u32 %v3551, 8388607
        %v3553 = vor.u32 %v3552, 8388608
        %v3554 = vsub.s32 0, %v3553
        %v3555 = vadd.s32 %v3550, 1
        %vm3556 = vcmp.gt.s32.totalorder %v3555, 0
        %v3557 = vsel %vm3556, %v3555, 0
        %v3558 = vshrl.u32 %v3557, 5
        %v3559 = vand.u32 %v3557, 31
        %v3560 = vsub.s32 32, %v3559
        %v3561 = vshrl.u32 683565275, %v3560
        %v3562 = vshll.u32 683565275, %v3559
        %v3563 = vshrl.u32 2475754826, %v3560
        %v3564 = vor.u32 %v3562, %v3563
        %v3565 = vshll.u32 2475754826, %v3559
        %v3566 = vshrl.u32 2131351028, %v3560
        %v3567 = vor.u32 %v3565, %v3566
        %v3568 = vshll.u32 2131351028, %v3559
        %v3569 = vshrl.u32 2102212464, %v3560
        %v3570 = vor.u32 %v3568, %v3569
        %v3571 = vshll.u32 2102212464, %v3559
        %v3572 = vshrl.u32 920167782, %v3560
        %v3573 = vor.u32 %v3571, %v3572
        %v3574 = vshll.u32 920167782, %v3559
        %v3575 = vshrl.u32 1326507024, %v3560
        %v3576 = vor.u32 %v3574, %v3575
        %vm3577 = vcmp.lt.s32.totalorder %v3558, 1
        %vm3578 = vcmp.lt.s32.totalorder %v3558, 2
        %vm3579 = vcmp.lt.s32.totalorder %v3558, 3
        %vm3580 = vcmp.lt.s32.totalorder %v3558, 4
        %v3581 = vsel %vm3577, %v3561, %v3564
        %v3582 = vsel %vm3580, %v3570, 2102212464
        %v3583 = vsel %vm3579, %v3567, %v3582
        %v3584 = vsel %vm3578, %v3581, %v3583
        %v3585 = vsel %vm3577, %v3564, %v3567
        %v3586 = vsel %vm3580, %v3573, 920167782
        %v3587 = vsel %vm3579, %v3570, %v3586
        %v3588 = vsel %vm3578, %v3585, %v3587
        %v3589 = vsel %vm3577, %v3567, %v3570
        %v3590 = vsel %vm3580, %v3576, 1326507024
        %v3591 = vsel %vm3579, %v3573, %v3590
        %v3592 = vsel %vm3578, %v3589, %v3591
        %v3593 = vshll.u32 %v3553, 8
        %v3594 = vmul.u32.u64.compose %v3593, %v3592
        %v3595 = vextract.low.u32 %v3594
        %v3596 = vextract.high.u32 %v3594
        %v3597 = vmul.u32.u64.compose %v3593, %v3588
        %v3598 = vextract.low.u32 %v3597
        %v3599 = vextract.high.u32 %v3597
        %v3600 = vmul.u32 %v3593, %v3584
        %v3601 = vadd.s32 %v3596, %v3598
        %vm3602 = vc.u32 %v3596, %v3598
        %v3603 = vadd.s32 %v3599, 1
        %v3604 = vsel %vm3602, %v3603, %v3599
        %v3605 = vadd.s32 %v3600, %v3604
        %v3606 = vadd.s32 %v3605, 536870912
        %v3607 = vshrl.u32 %v3606, 30
        %v3608 = vshll.u32 %v3607, 30
        %v3609 = vsub.s32 %v3605, %v3608
        %vm3610 = vcmp.lt.s32.totalorder %v3609, 0
        %v3611 = vsub.s32 0, %v3609
        %v3612 = vsel %vm3610, %v3611, %v3609
        %v3613 = vclz %v3612
        %v3614 = vsub.s32 %v3613, 2
        %vm3615 = vcmp.gt.s32.totalorder 0, %v3614
        %v3616 = vsel %vm3615, 0, %v3614
        %v3617 = vsub.s32 32, %v3616
        %v3618 = vshll.u32 %v3609, %v3616
        %v3619 = vshrl.u32 %v3601, %v3617
        %v3620 = vor.u32 %v3618, %v3619
        %v3621 = vsub.s32 4294967266, %v3616
        %v3622 = vadd.s32 %v3621, 127
        %v3623 = vshll.u32 %v3622, 23
        %v3624 = vor.u32 4788187, %v3623
        %v3625 = vand.u32 2147483647, %v3624
        %v3627 = vcvt.s32.f32 %v3620
        %v3628 = vmul.f32 %v3627, %v3625
        %v3629 = vxor.u32 %v3628, 2147483648
        %v3630 = vsel %vm3547, %v3629, %v3628
        %v3631 = vsub.s32 4, %v3607
        %v3632 = vsel %vm3547, %v3631, %v3607
        %v3633 = vsel %vm3546, %v421, %v3630
        %v3634 = vsel %vm3546, 0, %v3632
        %v3635 = vcosq.f32.pop %v3633
        %v3636 = vsinq.f32.pop %v3633
        %vm3637 = vweird.f32 %v421
        %v3638 = vand.u32 %v3634, 3
        %vm3639 = vcmp.lt.s32.totalorder %v3638, 2
        %vm3640 = vcmp.eq.s32.totalorder %v3638, 0
        %v3641 = vxor.u32 %v3636, 2147483648
        %v3642 = vsel %vm3640, %v3635, %v3641
        %vm3643 = vcmp.eq.s32.totalorder %v3638, 2
        %v3644 = vxor.u32 %v3635, 2147483648
        %v3645 = vsel %vm3643, %v3644, %v3636
        %v3646 = vsel %vm3639, %v3642, %v3645
        %v3647 = vsel %vm3637, nan, %v3646
        %v3648 = vand.u32 2147483647, %v422
        %vm3649 = vcmp.le.f32.partialorder %v3648, 0.7853982
        %vm3650 = vcmp.lt.s32.totalorder %v422, 0
        %v3651 = vand.u32 %v422, 2139095040
        %v3652 = vshrl.u32 %v3651, 23
        %v3653 = vsub.s32 %v3652, 127
        %v3654 = vand.u32 2147483647, %v422
        %v3655 = vand.u32 %v3654, 8388607
        %v3656 = vor.u32 %v3655, 8388608
        %v3657 = vsub.s32 0, %v3656
        %v3658 = vadd.s32 %v3653, 1
        %vm3659 = vcmp.gt.s32.totalorder %v3658, 0
        %v3660 = vsel %vm3659, %v3658, 0
        %v3661 = vshrl.u32 %v3660, 5
        %v3662 = vand.u32 %v3660, 31
        %v3663 = vsub.s32 32, %v3662
        %v3664 = vshrl.u32 683565275, %v3663
        %v3665 = vshll.u32 683565275, %v3662
        %v3666 = vshrl.u32 2475754826, %v3663
        %v3667 = vor.u32 %v3665, %v3666
        %v3668 = vshll.u32 2475754826, %v3662
        %v3669 = vshrl.u32 2131351028, %v3663
        %v3670 = vor.u32 %v3668, %v3669
        %v3671 = vshll.u32 2131351028, %v3662
        %v3672 = vshrl.u32 2102212464, %v3663
        %v3673 = vor.u32 %v3671, %v3672
        %v3674 = vshll.u32 2102212464, %v3662
        %v3675 = vshrl.u32 920167782, %v3663
        %v3676 = vor.u32 %v3674, %v3675
        %v3677 = vshll.u32 920167782, %v3662
        %v3678 = vshrl.u32 1326507024, %v3663
        %v3679 = vor.u32 %v3677, %v3678
        %vm3680 = vcmp.lt.s32.totalorder %v3661, 1
        %vm3681 = vcmp.lt.s32.totalorder %v3661, 2
        %vm3682 = vcmp.lt.s32.totalorder %v3661, 3
        %vm3683 = vcmp.lt.s32.totalorder %v3661, 4
        %v3684 = vsel %vm3680, %v3664, %v3667
        %v3685 = vsel %vm3683, %v3673, 2102212464
        %v3686 = vsel %vm3682, %v3670, %v3685
        %v3687 = vsel %vm3681, %v3684, %v3686
        %v3688 = vsel %vm3680, %v3667, %v3670
        %v3689 = vsel %vm3683, %v3676, 920167782
        %v3690 = vsel %vm3682, %v3673, %v3689
        %v3691 = vsel %vm3681, %v3688, %v3690
        %v3692 = vsel %vm3680, %v3670, %v3673
        %v3693 = vsel %vm3683, %v3679, 1326507024
        %v3694 = vsel %vm3682, %v3676, %v3693
        %v3695 = vsel %vm3681, %v3692, %v3694
        %v3696 = vshll.u32 %v3656, 8
        %v3697 = vmul.u32.u64.compose %v3696, %v3695
        %v3698 = vextract.low.u32 %v3697
        %v3699 = vextract.high.u32 %v3697
        %v3700 = vmul.u32.u64.compose %v3696, %v3691
        %v3701 = vextract.low.u32 %v3700
        %v3702 = vextract.high.u32 %v3700
        %v3703 = vmul.u32 %v3696, %v3687
        %v3704 = vadd.s32 %v3699, %v3701
        %vm3705 = vc.u32 %v3699, %v3701
        %v3706 = vadd.s32 %v3702, 1
        %v3707 = vsel %vm3705, %v3706, %v3702
        %v3708 = vadd.s32 %v3703, %v3707
        %v3709 = vadd.s32 %v3708, 536870912
        %v3710 = vshrl.u32 %v3709, 30
        %v3711 = vshll.u32 %v3710, 30
        %v3712 = vsub.s32 %v3708, %v3711
        %vm3713 = vcmp.lt.s32.totalorder %v3712, 0
        %v3714 = vsub.s32 0, %v3712
        %v3715 = vsel %vm3713, %v3714, %v3712
        %v3716 = vclz %v3715
        %v3717 = vsub.s32 %v3716, 2
        %vm3718 = vcmp.gt.s32.totalorder 0, %v3717
        %v3719 = vsel %vm3718, 0, %v3717
        %v3720 = vsub.s32 32, %v3719
        %v3721 = vshll.u32 %v3712, %v3719
        %v3722 = vshrl.u32 %v3704, %v3720
        %v3723 = vor.u32 %v3721, %v3722
        %v3724 = vsub.s32 4294967266, %v3719
        %v3725 = vadd.s32 %v3724, 127
        %v3726 = vshll.u32 %v3725, 23
        %v3727 = vor.u32 4788187, %v3726
        %v3728 = vand.u32 2147483647, %v3727
        %v3730 = vcvt.s32.f32 %v3723
        %v3731 = vmul.f32 %v3730, %v3728
        %v3732 = vxor.u32 %v3731, 2147483648
        %v3733 = vsel %vm3650, %v3732, %v3731
        %v3734 = vsub.s32 4, %v3710
        %v3735 = vsel %vm3650, %v3734, %v3710
        %v3736 = vsel %vm3649, %v422, %v3733
        %v3737 = vsel %vm3649, 0, %v3735
        %v3738 = vcosq.f32.pop %v3736
        %v3739 = vsinq.f32.pop %v3736
        %vm3740 = vweird.f32 %v422
        %v3741 = vand.u32 %v3737, 3
        %vm3742 = vcmp.lt.s32.totalorder %v3741, 2
        %vm3743 = vcmp.eq.s32.totalorder %v3741, 0
        %v3744 = vxor.u32 %v3739, 2147483648
        %v3745 = vsel %vm3743, %v3738, %v3744
        %vm3746 = vcmp.eq.s32.totalorder %v3741, 2
        %v3747 = vxor.u32 %v3738, 2147483648
        %v3748 = vsel %vm3746, %v3747, %v3739
        %v3749 = vsel %vm3742, %v3745, %v3748
        %v3750 = vsel %vm3740, nan, %v3749
        %v3751 = vpack.c.bf16 %v2308, %v2205
        %v3752 = vpack.c.bf16 %v2514, %v2411
        %v3753 = vpack.c.bf16 %v2720, %v2617
        %v3754 = vpack.c.bf16 %v2926, %v2823
        %v3755 = vpack.c.bf16 %v3132, %v3029
        %v3756 = vpack.c.bf16 %v3338, %v3235
        %v3757 = vpack.c.bf16 %v3544, %v3441
        %v3758 = vpack.c.bf16 %v3750, %v3647
        %3759 = vst [vmem:[#allocation2 + $0x8] sm:$0xff] %v3751
        %3760 = vst [vmem:[#allocation2 + $0x18] sm:$0xff] %v3752
        %3761 = vst [vmem:[#allocation2 + $0x28] sm:$0xff] %v3753
        %3762 = vst [vmem:[#allocation2 + $0x38] sm:$0xff] %v3754
        %3763 = vst [vmem:[#allocation2 + $0x48] sm:$0xff] %v3755
        %3764 = vst [vmem:[#allocation2 + $0x58] sm:$0xff] %v3756
        %3765 = vst [vmem:[#allocation2 + $0x68] sm:$0xff] %v3757
        %3766 = vst [vmem:[#allocation2 + $0x78] sm:$0xff] %v3758
        %v3767 = vld [vmem:[#allocation2] sm:$0xff]
        %v3768 = vld [vmem:[#allocation2 + $0x8] sm:$0xff]
        %v3769 = vld [vmem:[#allocation2 + $0x10] sm:$0xff]
        %v3770 = vld [vmem:[#allocation2 + $0x18] sm:$0xff]
        %v3771 = vld [vmem:[#allocation2 + $0x20] sm:$0xff]
        %v3772 = vld [vmem:[#allocation2 + $0x28] sm:$0xff]
        %v3773 = vld [vmem:[#allocation2 + $0x30] sm:$0xff]
        %v3774 = vld [vmem:[#allocation2 + $0x38] sm:$0xff]
        %v3775 = vld [vmem:[#allocation2 + $0x40] sm:$0xff]
        %v3776 = vld [vmem:[#allocation2 + $0x48] sm:$0xff]
        %v3777 = vld [vmem:[#allocation2 + $0x50] sm:$0xff]
        %v3778 = vld [vmem:[#allocation2 + $0x58] sm:$0xff]
        %v3779 = vld [vmem:[#allocation2 + $0x60] sm:$0xff]
        %v3780 = vld [vmem:[#allocation2 + $0x68] sm:$0xff]
        %v3781 = vld [vmem:[#allocation2 + $0x70] sm:$0xff]
        %v3782 = vld [vmem:[#allocation2 + $0x78] sm:$0xff]
        %v3783 = vld [vmem:[%s3] sm:$0xf]
        %v3784 = vld [vmem:[%s3 + $0x4] sm:$0xf]
        %v3785 = vld [vmem:[%s3 + $0x8] sm:$0xf]
        %v3786 = vld [vmem:[%s3 + $0xc] sm:$0xf]
        %v3787 = vld [vmem:[%s3 + $0x10] sm:$0xf]
        %v3788 = vld [vmem:[%s3 + $0x14] sm:$0xf]
        %v3789 = vld [vmem:[%s3 + $0x18] sm:$0xf]
        %v3790 = vld [vmem:[%s3 + $0x1c] sm:$0xf]
        %v3791 = vld [vmem:[%s3 + $0x20] sm:$0xf]
        %v3792 = vld [vmem:[%s3 + $0x24] sm:$0xf]
        %v3793 = vld [vmem:[%s3 + $0x28] sm:$0xf]
        %v3794 = vld [vmem:[%s3 + $0x2c] sm:$0xf]
        %v3795 = vld [vmem:[%s3 + $0x30] sm:$0xf]
        %v3796 = vld [vmem:[%s3 + $0x34] sm:$0xf]
        %v3797 = vld [vmem:[%s3 + $0x38] sm:$0xf]
        %v3798 = vld [vmem:[%s3 + $0x3c] sm:$0xf]
        %v3799 = vld [vmem:[%s3 + $0x40] sm:$0xf]
        %v3800 = vld [vmem:[%s3 + $0x44] sm:$0xf]
        %v3801 = vld [vmem:[%s3 + $0x48] sm:$0xf]
        %v3802 = vld [vmem:[%s3 + $0x4c] sm:$0xf]
        %v3803 = vld [vmem:[%s3 + $0x50] sm:$0xf]
        %v3804 = vld [vmem:[%s3 + $0x54] sm:$0xf]
        %v3805 = vld [vmem:[%s3 + $0x58] sm:$0xf]
        %v3806 = vld [vmem:[%s3 + $0x5c] sm:$0xf]
        %v3807 = vld [vmem:[%s3 + $0x60] sm:$0xf]
        %v3808 = vld [vmem:[%s3 + $0x64] sm:$0xf]
        %v3809 = vld [vmem:[%s3 + $0x68] sm:$0xf]
        %v3810 = vld [vmem:[%s3 + $0x6c] sm:$0xf]
        %v3811 = vld [vmem:[%s3 + $0x70] sm:$0xf]
        %v3812 = vld [vmem:[%s3 + $0x74] sm:$0xf]
        %v3813 = vld [vmem:[%s3 + $0x78] sm:$0xf]
        %v3814 = vld [vmem:[%s3 + $0x7c] sm:$0xf]
        %v3815 = vld [vmem:[%s4] sm:$0x1]
        %v3817 = vlaneseq
        %v3818 = vshrl.u32 %v3817, 7
        %v3819 = vsub.s32 0, %v3818
        %v3820 = vrot.slane %v3815, %v3819
        %v3854 = vunpack.c.l.b16 %v3783
        %v3855 = vunpack.c.l.b16 %v3784
        %v3856 = vunpack.c.l.b16 %v3785
        %v3857 = vunpack.c.l.b16 %v3786
        %v3858 = vunpack.c.l.b16 %v3787
        %v3859 = vunpack.c.l.b16 %v3788
        %v3860 = vunpack.c.l.b16 %v3789
        %v3861 = vunpack.c.l.b16 %v3790
        %v3862 = vunpack.c.l.b16 %v3791
        %v3863 = vunpack.c.l.b16 %v3792
        %v3864 = vunpack.c.l.b16 %v3793
        %v3865 = vunpack.c.l.b16 %v3794
        %v3866 = vunpack.c.l.b16 %v3795
        %v3867 = vunpack.c.l.b16 %v3796
        %v3868 = vunpack.c.l.b16 %v3797
        %v3869 = vunpack.c.l.b16 %v3798
        %v3870 = vunpack.c.l.b16 %v3799
        %v3871 = vunpack.c.l.b16 %v3800
        %v3872 = vunpack.c.l.b16 %v3801
        %v3873 = vunpack.c.l.b16 %v3802
        %v3874 = vunpack.c.l.b16 %v3803
        %v3875 = vunpack.c.l.b16 %v3804
        %v3876 = vunpack.c.l.b16 %v3805
        %v3877 = vunpack.c.l.b16 %v3806
        %v3878 = vunpack.c.l.b16 %v3807
        %v3879 = vunpack.c.l.b16 %v3808
        %v3880 = vunpack.c.l.b16 %v3809
        %v3881 = vunpack.c.l.b16 %v3810
        %v3882 = vunpack.c.l.b16 %v3811
        %v3883 = vunpack.c.l.b16 %v3812
        %v3884 = vunpack.c.l.b16 %v3813
        %v3885 = vunpack.c.l.b16 %v3814
        %v3886 = vpack.c.b16 %v3855, %v3854
        %v3887 = vpack.c.b16 %v3857, %v3856
        %v3888 = vpack.c.b16 %v3859, %v3858
        %v3889 = vpack.c.b16 %v3861, %v3860
        %v3890 = vpack.c.b16 %v3863, %v3862
        %v3891 = vpack.c.b16 %v3865, %v3864
        %v3892 = vpack.c.b16 %v3867, %v3866
        %v3893 = vpack.c.b16 %v3869, %v3868
        %v3894 = vpack.c.b16 %v3871, %v3870
        %v3895 = vpack.c.b16 %v3873, %v3872
        %v3896 = vpack.c.b16 %v3875, %v3874
        %v3897 = vpack.c.b16 %v3877, %v3876
        %v3898 = vpack.c.b16 %v3879, %v3878
        %v3899 = vpack.c.b16 %v3881, %v3880
        %v3900 = vpack.c.b16 %v3883, %v3882
        %v3901 = vpack.c.b16 %v3885, %v3884
        %3918 = vmatprep.subr.bf16.mxu0 0
        %3919 = vmatpush1.bf16.msra.mxu0 %v3886
        %3920 = vmatprep.subr.bf16.mxu0 0
        %3921 = vmatpush1.bf16.msra.mxu0 %v3887
        %3922 = vmatprep.subr.bf16.mxu0 0
        %3923 = vmatpush1.bf16.msra.mxu0 %v3888
        %3924 = vmatprep.subr.bf16.mxu0 0
        %3925 = vmatpush1.bf16.msra.mxu0 %v3889
        %3926 = vmatprep.subr.bf16.mxu0 0
        %3927 = vmatpush1.bf16.msra.mxu0 %v3890
        %3928 = vmatprep.subr.bf16.mxu0 0
        %3929 = vmatpush1.bf16.msra.mxu0 %v3891
        %3930 = vmatprep.subr.bf16.mxu0 0
        %3931 = vmatpush1.bf16.msra.mxu0 %v3892
        %3932 = vmatprep.subr.bf16.mxu0 0
        %3933 = vmatpush1.bf16.msra.mxu0 %v3893
        %3934 = vmatprep.subr.bf16.mxu0 0
        %3935 = vmatpush1.bf16.msra.mxu0 %v3894
        %3936 = vmatprep.subr.bf16.mxu0 0
        %3937 = vmatpush1.bf16.msra.mxu0 %v3895
        %3938 = vmatprep.subr.bf16.mxu0 0
        %3939 = vmatpush1.bf16.msra.mxu0 %v3896
        %3940 = vmatprep.subr.bf16.mxu0 0
        %3941 = vmatpush1.bf16.msra.mxu0 %v3897
        %3942 = vmatprep.subr.bf16.mxu0 0
        %3943 = vmatpush1.bf16.msra.mxu0 %v3898
        %3944 = vmatprep.subr.bf16.mxu0 0
        %3945 = vmatpush1.bf16.msra.mxu0 %v3899
        %3946 = vmatprep.subr.bf16.mxu0 0
        %3947 = vmatpush1.bf16.msra.mxu0 %v3900
        %3948 = vmatprep.subr.bf16.mxu0 0
        %3949 = vmatpush1.bf16.msra.mxu0 %v3901
        %3950 = vmatprep.mubr.bf16.mxu0 %v3768
        %3951 = vmatmul.mubr.bf16.gmra.mrb[0].mxu0 %v3767
        %v3952 = vpop.f32.mrb[0].mxu0
        %v3953 = vadd.f32 %v3820, %v3952
        %v3954 = vpop.f32.mrb[0].mxu0
        %v3955 = vpop.f32.mrb[0].mxu0
        %v3956 = vadd.f32 %v3820, %v3955
        %v3957 = vpop.f32.mrb[0].mxu0
        %3958 = vmatprep.mubr.bf16.mxu0 %v3770
        %3959 = vmatmul.mubr.bf16.gmra.mrb[0].mxu0 %v3769
        %v3960 = vpop.f32.mrb[0].mxu0
        %v3961 = vadd.f32 %v3820, %v3960
        %v3962 = vpop.f32.mrb[0].mxu0
        %v3963 = vpop.f32.mrb[0].mxu0
        %v3964 = vadd.f32 %v3820, %v3963
        %v3965 = vpop.f32.mrb[0].mxu0
        %3966 = vmatprep.mubr.bf16.mxu0 %v3772
        %3967 = vmatmul.mubr.bf16.gmra.mrb[0].mxu0 %v3771
        %v3968 = vpop.f32.mrb[0].mxu0
        %v3969 = vadd.f32 %v3820, %v3968
        %v3970 = vpop.f32.mrb[0].mxu0
        %v3971 = vpop.f32.mrb[0].mxu0
        %v3972 = vadd.f32 %v3820, %v3971
        %v3973 = vpop.f32.mrb[0].mxu0
        %3974 = vmatprep.mubr.bf16.mxu0 %v3774
        %3975 = vmatmul.mubr.bf16.gmra.mrb[0].mxu0 %v3773
        %v3976 = vpop.f32.mrb[0].mxu0
        %v3977 = vadd.f32 %v3820, %v3976
        %v3978 = vpop.f32.mrb[0].mxu0
        %v3979 = vpop.f32.mrb[0].mxu0
        %v3980 = vadd.f32 %v3820, %v3979
        %v3981 = vpop.f32.mrb[0].mxu0
        %3982 = vmatprep.mubr.bf16.mxu0 %v3776
        %3983 = vmatmul.mubr.bf16.gmra.mrb[0].mxu0 %v3775
        %v3984 = vpop.f32.mrb[0].mxu0
        %v3985 = vadd.f32 %v3820, %v3984
        %v3986 = vpop.f32.mrb[0].mxu0
        %v3987 = vpop.f32.mrb[0].mxu0
        %v3988 = vadd.f32 %v3820, %v3987
        %v3989 = vpop.f32.mrb[0].mxu0
        %3990 = vmatprep.mubr.bf16.mxu0 %v3778
        %3991 = vmatmul.mubr.bf16.gmra.mrb[0].mxu0 %v3777
        %v3992 = vpop.f32.mrb[0].mxu0
        %v3993 = vadd.f32 %v3820, %v3992
        %v3994 = vpop.f32.mrb[0].mxu0
        %v3995 = vpop.f32.mrb[0].mxu0
        %v3996 = vadd.f32 %v3820, %v3995
        %v3997 = vpop.f32.mrb[0].mxu0
        %3998 = vmatprep.mubr.bf16.mxu0 %v3780
        %3999 = vmatmul.mubr.bf16.gmra.mrb[0].mxu0 %v3779
        %v4000 = vpop.f32.mrb[0].mxu0
        %v4001 = vadd.f32 %v3820, %v4000
        %v4002 = vpop.f32.mrb[0].mxu0
        %v4003 = vpop.f32.mrb[0].mxu0
        %v4004 = vadd.f32 %v3820, %v4003
        %v4005 = vpop.f32.mrb[0].mxu0
        %4006 = vmatprep.mubr.bf16.mxu0 %v3782
        %4007 = vmatmul.mubr.bf16.gmra.mrb[0].mxu0 %v3781
        %v4008 = vpop.f32.mrb[0].mxu0
        %v4009 = vadd.f32 %v3820, %v4008
        %v4010 = vpop.f32.mrb[0].mxu0
        %v4011 = vpop.f32.mrb[0].mxu0
        %v4012 = vadd.f32 %v3820, %v4011
        %v4013 = vpop.f32.mrb[0].mxu0
        %4014 = vdwg.mxu0
        %v4015 = vmul.f32 %v3953, 0.5
        %v4016 = vmul.f32 %v3956, 0.5
        %v4017 = vmul.f32 %v3961, 0.5
        %v4018 = vmul.f32 %v3964, 0.5
        %v4019 = vmul.f32 %v3969, 0.5
        %v4020 = vmul.f32 %v3972, 0.5
        %v4021 = vmul.f32 %v3977, 0.5
        %v4022 = vmul.f32 %v3980, 0.5
        %v4023 = vmul.f32 %v3985, 0.5
        %v4024 = vmul.f32 %v3988, 0.5
        %v4025 = vmul.f32 %v3993, 0.5
        %v4026 = vmul.f32 %v3996, 0.5
        %v4027 = vmul.f32 %v4001, 0.5
        %v4028 = vmul.f32 %v4004, 0.5
        %v4029 = vmul.f32 %v4009, 0.5
        %v4030 = vmul.f32 %v4012, 0.5
        %v4031 = vmul.f32 %v3953, 0.044715
        %v4032 = vmul.f32 %v3956, 0.044715
        %v4033 = vmul.f32 %v3961, 0.044715
        %v4034 = vmul.f32 %v3964, 0.044715
        %v4035 = vmul.f32 %v3969, 0.044715
        %v4036 = vmul.f32 %v3972, 0.044715
        %v4037 = vmul.f32 %v3977, 0.044715
        %v4038 = vmul.f32 %v3980, 0.044715
        %v4039 = vmul.f32 %v3985, 0.044715
        %v4040 = vmul.f32 %v3988, 0.044715
        %v4041 = vmul.f32 %v3993, 0.044715
        %v4042 = vmul.f32 %v3996, 0.044715
        %v4043 = vmul.f32 %v4001, 0.044715
        %v4044 = vmul.f32 %v4004, 0.044715
        %v4045 = vmul.f32 %v4009, 0.044715
        %v4046 = vmul.f32 %v4012, 0.044715
        %v4047 = vmul.f32 %v4031, %v3953
        %v4048 = vmul.f32 %v4032, %v3956
        %v4049 = vmul.f32 %v4033, %v3961
        %v4050 = vmul.f32 %v4034, %v3964
        %v4051 = vmul.f32 %v4035, %v3969
        %v4052 = vmul.f32 %v4036, %v3972
        %v4053 = vmul.f32 %v4037, %v3977
        %v4054 = vmul.f32 %v4038, %v3980
        %v4055 = vmul.f32 %v4039, %v3985
        %v4056 = vmul.f32 %v4040, %v3988
        %v4057 = vmul.f32 %v4041, %v3993
        %v4058 = vmul.f32 %v4042, %v3996
        %v4059 = vmul.f32 %v4043, %v4001
        %v4060 = vmul.f32 %v4044, %v4004
        %v4061 = vmul.f32 %v4045, %v4009
        %v4062 = vmul.f32 %v4046, %v4012
        %v4063 = vmul.f32 %v4047, %v3953
        %v4064 = vmul.f32 %v4048, %v3956
        %v4065 = vmul.f32 %v4049, %v3961
        %v4066 = vmul.f32 %v4050, %v3964
        %v4067 = vmul.f32 %v4051, %v3969
        %v4068 = vmul.f32 %v4052, %v3972
        %v4069 = vmul.f32 %v4053, %v3977
        %v4070 = vmul.f32 %v4054, %v3980
        %v4071 = vmul.f32 %v4055, %v3985
        %v4072 = vmul.f32 %v4056, %v3988
        %v4073 = vmul.f32 %v4057, %v3993
        %v4074 = vmul.f32 %v4058, %v3996
        %v4075 = vmul.f32 %v4059, %v4001
        %v4076 = vmul.f32 %v4060, %v4004
        %v4077 = vmul.f32 %v4061, %v4009
        %v4078 = vmul.f32 %v4062, %v4012
        %v4079 = vadd.f32 %v3953, %v4063
        %v4080 = vadd.f32 %v3956, %v4064
        %v4081 = vadd.f32 %v3961, %v4065
        %v4082 = vadd.f32 %v3964, %v4066
        %v4083 = vadd.f32 %v3969, %v4067
        %v4084 = vadd.f32 %v3972, %v4068
        %v4085 = vadd.f32 %v3977, %v4069
        %v4086 = vadd.f32 %v3980, %v4070
        %v4087 = vadd.f32 %v3985, %v4071
        %v4088 = vadd.f32 %v3988, %v4072
        %v4089 = vadd.f32 %v3993, %v4073
        %v4090 = vadd.f32 %v3996, %v4074
        %v4091 = vadd.f32 %v4001, %v4075
        %v4092 = vadd.f32 %v4004, %v4076
        %v4093 = vadd.f32 %v4009, %v4077
        %v4094 = vadd.f32 %v4012, %v4078
        %v4095 = vmul.f32 %v4079, 0.7978846
        %v4096 = vmul.f32 %v4080, 0.7978846
        %v4097 = vmul.f32 %v4081, 0.7978846
        %v4098 = vmul.f32 %v4082, 0.7978846
        %v4099 = vmul.f32 %v4083, 0.7978846
        %v4100 = vmul.f32 %v4084, 0.7978846
        %v4101 = vmul.f32 %v4085, 0.7978846
        %v4102 = vmul.f32 %v4086, 0.7978846
        %v4103 = vmul.f32 %v4087, 0.7978846
        %v4104 = vmul.f32 %v4088, 0.7978846
        %v4105 = vmul.f32 %v4089, 0.7978846
        %v4106 = vmul.f32 %v4090, 0.7978846
        %v4107 = vmul.f32 %v4091, 0.7978846
        %v4108 = vmul.f32 %v4092, 0.7978846
        %v4109 = vmul.f32 %v4093, 0.7978846
        %v4110 = vmul.f32 %v4094, 0.7978846
        %v4111 = vtanh.pop %v4095
        %v4112 = vtanh.pop %v4096
        %v4113 = vtanh.pop %v4097
        %v4114 = vtanh.pop %v4098
        %v4115 = vtanh.pop %v4099
        %v4116 = vtanh.pop %v4100
        %v4117 = vtanh.pop %v4101
        %v4118 = vtanh.pop %v4102
        %v4119 = vtanh.pop %v4103
        %v4120 = vtanh.pop %v4104
        %v4121 = vtanh.pop %v4105
        %v4122 = vtanh.pop %v4106
        %v4123 = vtanh.pop %v4107
        %v4124 = vtanh.pop %v4108
        %v4125 = vtanh.pop %v4109
        %v4126 = vtanh.pop %v4110
        %v4127 = vadd.f32 %v4111, 1.0
        %v4128 = vadd.f32 %v4112, 1.0
        %v4129 = vadd.f32 %v4113, 1.0
        %v4130 = vadd.f32 %v4114, 1.0
        %v4131 = vadd.f32 %v4115, 1.0
        %v4132 = vadd.f32 %v4116, 1.0
        %v4133 = vadd.f32 %v4117, 1.0
        %v4134 = vadd.f32 %v4118, 1.0
        %v4135 = vadd.f32 %v4119, 1.0
        %v4136 = vadd.f32 %v4120, 1.0
        %v4137 = vadd.f32 %v4121, 1.0
        %v4138 = vadd.f32 %v4122, 1.0
        %v4139 = vadd.f32 %v4123, 1.0
        %v4140 = vadd.f32 %v4124, 1.0
        %v4141 = vadd.f32 %v4125, 1.0
        %v4142 = vadd.f32 %v4126, 1.0
        %v4143 = vmul.f32 %v4015, %v4127
        %v4144 = vmul.f32 %v4016, %v4128
        %v4145 = vmul.f32 %v4017, %v4129
        %v4146 = vmul.f32 %v4018, %v4130
        %v4147 = vmul.f32 %v4019, %v4131
        %v4148 = vmul.f32 %v4020, %v4132
        %v4149 = vmul.f32 %v4021, %v4133
        %v4150 = vmul.f32 %v4022, %v4134
        %v4151 = vmul.f32 %v4023, %v4135
        %v4152 = vmul.f32 %v4024, %v4136
        %v4153 = vmul.f32 %v4025, %v4137
        %v4154 = vmul.f32 %v4026, %v4138
        %v4155 = vmul.f32 %v4027, %v4139
        %v4156 = vmul.f32 %v4028, %v4140
        %v4157 = vmul.f32 %v4029, %v4141
        %v4158 = vmul.f32 %v4030, %v4142
        %v4159 = vpack.c.bf16 %v4144, %v4143
        %v4160 = vpack.c.bf16 %v4146, %v4145
        %v4161 = vpack.c.bf16 %v4148, %v4147
        %v4162 = vpack.c.bf16 %v4150, %v4149
        %v4163 = vpack.c.bf16 %v4152, %v4151
        %v4164 = vpack.c.bf16 %v4154, %v4153
        %v4165 = vpack.c.bf16 %v4156, %v4155
        %v4166 = vpack.c.bf16 %v4158, %v4157
        %v4167 = vld [vmem:[%s5] sm:$0xf]
        %v4168 = vld [vmem:[%s5 + $0x4] sm:$0xf]
        %v4169 = vld [vmem:[%s5 + $0x8] sm:$0xf]
        %v4170 = vld [vmem:[%s5 + $0xc] sm:$0xf]
        %v4171 = vld [vmem:[%s5 + $0x10] sm:$0xf]
        %v4172 = vld [vmem:[%s5 + $0x14] sm:$0xf]
        %v4173 = vld [vmem:[%s5 + $0x18] sm:$0xf]
        %v4174 = vld [vmem:[%s5 + $0x1c] sm:$0xf]
        %v4175 = vld [vmem:[%s5 + $0x20] sm:$0xf]
        %v4176 = vld [vmem:[%s5 + $0x24] sm:$0xf]
        %v4177 = vld [vmem:[%s5 + $0x28] sm:$0xf]
        %v4178 = vld [vmem:[%s5 + $0x2c] sm:$0xf]
        %v4179 = vld [vmem:[%s5 + $0x30] sm:$0xf]
        %v4180 = vld [vmem:[%s5 + $0x34] sm:$0xf]
        %v4181 = vld [vmem:[%s5 + $0x38] sm:$0xf]
        %v4182 = vld [vmem:[%s5 + $0x3c] sm:$0xf]
        %v4183 = vld [vmem:[%s6] sm:$0x1]
        %v4185 = vlaneseq
        %v4186 = vshrl.u32 %v4185, 7
        %v4187 = vsub.s32 0, %v4186
        %v4188 = vrot.slane %v4183, %v4187
        %v4206 = vunpack.c.l.b16 %v4167
        %v4207 = vunpack.c.l.b16 %v4168
        %v4208 = vunpack.c.l.b16 %v4169
        %v4209 = vunpack.c.l.b16 %v4170
        %v4210 = vunpack.c.l.b16 %v4171
        %v4211 = vunpack.c.l.b16 %v4172
        %v4212 = vunpack.c.l.b16 %v4173
        %v4213 = vunpack.c.l.b16 %v4174
        %v4214 = vunpack.c.l.b16 %v4175
        %v4215 = vunpack.c.l.b16 %v4176
        %v4216 = vunpack.c.l.b16 %v4177
        %v4217 = vunpack.c.l.b16 %v4178
        %v4218 = vunpack.c.l.b16 %v4179
        %v4219 = vunpack.c.l.b16 %v4180
        %v4220 = vunpack.c.l.b16 %v4181
        %v4221 = vunpack.c.l.b16 %v4182
        %v4222 = vpack.c.b16 %v4207, %v4206
        %v4223 = vpack.c.b16 %v4209, %v4208
        %v4224 = vpack.c.b16 %v4211, %v4210
        %v4225 = vpack.c.b16 %v4213, %v4212
        %v4226 = vpack.c.b16 %v4215, %v4214
        %v4227 = vpack.c.b16 %v4217, %v4216
        %v4228 = vpack.c.b16 %v4219, %v4218
        %v4229 = vpack.c.b16 %v4221, %v4220
        %4238 = vmatprep.subr.bf16.mxu0 0
        %4239 = vmatpush1.bf16.msra.mxu0 %v4222
        %4240 = vmatprep.subr.bf16.mxu0 0
        %4241 = vmatpush1.bf16.msra.mxu0 %v4223
        %4242 = vmatprep.subr.bf16.mxu0 0
        %4243 = vmatpush1.bf16.msra.mxu0 %v4224
        %4244 = vmatprep.subr.bf16.mxu0 0
        %4245 = vmatpush1.bf16.msra.mxu0 %v4225
        %4246 = vmatprep.subr.bf16.mxu0 0
        %4247 = vmatpush1.bf16.msra.mxu0 %v4226
        %4248 = vmatprep.subr.bf16.mxu0 0
        %4249 = vmatpush1.bf16.msra.mxu0 %v4227
        %4250 = vmatprep.subr.bf16.mxu0 0
        %4251 = vmatpush1.bf16.msra.mxu0 %v4228
        %4252 = vmatprep.subr.bf16.mxu0 0
        %4253 = vmatpush1.bf16.msra.mxu0 %v4229
        %4254 = vmatprep.subr.bf16.mxu0 0
        %4255 = vmatpush1.bf16.msra.mxu0 0
        %4256 = vmatprep.subr.bf16.mxu0 0
        %4257 = vmatpush1.bf16.msra.mxu0 0
        %4258 = vmatprep.subr.bf16.mxu0 0
        %4259 = vmatpush1.bf16.msra.mxu0 0
        %4260 = vmatprep.subr.bf16.mxu0 0
        %4261 = vmatpush1.bf16.msra.mxu0 0
        %4262 = vmatprep.subr.bf16.mxu0 0
        %4263 = vmatpush1.bf16.msra.mxu0 0
        %4264 = vmatprep.subr.bf16.mxu0 0
        %4265 = vmatpush1.bf16.msra.mxu0 0
        %4266 = vmatprep.subr.bf16.mxu0 0
        %4267 = vmatpush1.bf16.msra.mxu0 0
        %4268 = vmatprep.subr.bf16.mxu0 0
        %4269 = vmatpush1.bf16.msra.mxu0 0
        %4270 = vmatprep.mubr.bf16.mxu0 0
        %4271 = vmatmul.mubr.bf16.gmra.mrb[0].mxu0 %v4159
        %v4272 = vpop.f32.mrb[0].mxu0
        %v4273 = vadd.f32 %v4188, %v4272
        %v4274 = vpop.f32.mrb[0].mxu0
        %v4275 = vpop.f32.mrb[0].mxu0
        %v4276 = vadd.f32 %v4188, %v4275
        %v4277 = vpop.f32.mrb[0].mxu0
        %4278 = vmatprep.mubr.bf16.mxu0 0
        %4279 = vmatmul.mubr.bf16.gmra.mrb[0].mxu0 %v4160
        %v4280 = vpop.f32.mrb[0].mxu0
        %v4281 = vadd.f32 %v4188, %v4280
        %v4282 = vpop.f32.mrb[0].mxu0
        %v4283 = vpop.f32.mrb[0].mxu0
        %v4284 = vadd.f32 %v4188, %v4283
        %v4285 = vpop.f32.mrb[0].mxu0
        %4286 = vmatprep.mubr.bf16.mxu0 0
        %4287 = vmatmul.mubr.bf16.gmra.mrb[0].mxu0 %v4161
        %v4288 = vpop.f32.mrb[0].mxu0
        %v4289 = vadd.f32 %v4188, %v4288
        %v4290 = vpop.f32.mrb[0].mxu0
        %v4291 = vpop.f32.mrb[0].mxu0
        %v4292 = vadd.f32 %v4188, %v4291
        %v4293 = vpop.f32.mrb[0].mxu0
        %4294 = vmatprep.mubr.bf16.mxu0 0
        %4295 = vmatmul.mubr.bf16.gmra.mrb[0].mxu0 %v4162
        %v4296 = vpop.f32.mrb[0].mxu0
        %v4297 = vadd.f32 %v4188, %v4296
        %v4298 = vpop.f32.mrb[0].mxu0
        %v4299 = vpop.f32.mrb[0].mxu0
        %v4300 = vadd.f32 %v4188, %v4299
        %v4301 = vpop.f32.mrb[0].mxu0
        %4302 = vmatprep.mubr.bf16.mxu0 0
        %4303 = vmatmul.mubr.bf16.gmra.mrb[0].mxu0 %v4163
        %v4304 = vpop.f32.mrb[0].mxu0
        %v4305 = vadd.f32 %v4188, %v4304
        %v4306 = vpop.f32.mrb[0].mxu0
        %v4307 = vpop.f32.mrb[0].mxu0
        %v4308 = vadd.f32 %v4188, %v4307
        %v4309 = vpop.f32.mrb[0].mxu0
        %4310 = vmatprep.mubr.bf16.mxu0 0
        %4311 = vmatmul.mubr.bf16.gmra.mrb[0].mxu0 %v4164
        %v4312 = vpop.f32.mrb[0].mxu0
        %v4313 = vadd.f32 %v4188, %v4312
        %v4314 = vpop.f32.mrb[0].mxu0
        %v4315 = vpop.f32.mrb[0].mxu0
        %v4316 = vadd.f32 %v4188, %v4315
        %v4317 = vpop.f32.mrb[0].mxu0
        %4318 = vmatprep.mubr.bf16.mxu0 0
        %4319 = vmatmul.mubr.bf16.gmra.mrb[0].mxu0 %v4165
        %v4320 = vpop.f32.mrb[0].mxu0
        %v4321 = vadd.f32 %v4188, %v4320
        %v4322 = vpop.f32.mrb[0].mxu0
        %v4323 = vpop.f32.mrb[0].mxu0
        %v4324 = vadd.f32 %v4188, %v4323
        %v4325 = vpop.f32.mrb[0].mxu0
        %4326 = vmatprep.mubr.bf16.mxu0 0
        %4327 = vmatmul.mubr.bf16.gmra.mrb[0].mxu0 %v4166
        %v4328 = vpop.f32.mrb[0].mxu0
        %v4329 = vadd.f32 %v4188, %v4328
        %v4330 = vpop.f32.mrb[0].mxu0
        %v4331 = vpop.f32.mrb[0].mxu0
        %v4332 = vadd.f32 %v4188, %v4331
        %v4333 = vpop.f32.mrb[0].mxu0
        %4334 = vdwg.mxu0
        %4335 = vst [vmem:[%s272] sm:$0xff] %v4273
        %4336 = vst [vmem:[%s272 + $0x8] sm:$0xff] %v4276
        %4337 = vst [vmem:[%s272 + $0x10] sm:$0xff] %v4281
        %4338 = vst [vmem:[%s272 + $0x18] sm:$0xff] %v4284
        %4339 = vst [vmem:[%s272 + $0x20] sm:$0xff] %v4289
        %4340 = vst [vmem:[%s272 + $0x28] sm:$0xff] %v4292
        %4341 = vst [vmem:[%s272 + $0x30] sm:$0xff] %v4297
        %4342 = vst [vmem:[%s272 + $0x38] sm:$0xff] %v4300
        %4343 = vst [vmem:[%s272 + $0x40] sm:$0xff] %v4305
        %4344 = vst [vmem:[%s272 + $0x48] sm:$0xff] %v4308
        %4345 = vst [vmem:[%s272 + $0x50] sm:$0xff] %v4313
        %4346 = vst [vmem:[%s272 + $0x58] sm:$0xff] %v4316
        %4347 = vst [vmem:[%s272 + $0x60] sm:$0xff] %v4321
        %4348 = vst [vmem:[%s272 + $0x68] sm:$0xff] %v4324
        %4349 = vst [vmem:[%s272 + $0x70] sm:$0xff] %v4329
        %4350 = vst [vmem:[%s272 + $0x78] sm:$0xff] %v4332
        %s4351 = sand.u32 %s181, 1
        %s4352 = scalar_lea.sflag [#allocation4], %s4351
        %s4353 = sand.u32 %s181, 1
        %s4354 = smul.addr %s4353, 128
        %s4355 = scalar_lea.vmem [#allocation3], %s4354
        // Predicated region
        $region49: #{tpu_custom_call.1} parent=47 // pred_check
          %p4356 = pneg %p191
        $region50: #{tpu_custom_call.1} parent=47 // pred_check_branch
          %4358 = sbr.rel (%p4356) target = $region52
        $region51: #{tpu_custom_call.1} parent=47 // pred_region
          %s4359 = smul.u32 16, %s21
          %s4361 = ssub.s32 2048, 2048
          %4362 = vsyncadd %s4352, %s4361
          %s4363 = smul.addr %s4359, 128
          %s4364 = scalar_lea.hbm %s7, %s4363
          %s4365 = sshll.u32 %s4355, 4
          %s4366 = int_to_ptr.vmem [resolvable:$true] %s4365
          %4371 = dma.vmem_to_hbm [thread:$0]  %s4366, 2048, %s4364, %s4352, 128, 128, 8
        $region52: #{tpu_custom_call.1} parent=47 // pred_fallthru
          _
      $region48: #{tpu_custom_call.1} parent=5 // pred_fallthru
        _
      %p4372 = scmp.le.s32.totalorder 2, %s16
      // Predicated region
      $region53: #{tpu_custom_call.1} parent=5 // pred_check
        %p4373 = pneg %p4372
      $region54: #{tpu_custom_call.1} parent=5 // pred_check_branch
        %4375 = sbr.rel (%p4373) target = $region56
      $region55: #{tpu_custom_call.1} parent=5 // pred_region
        %s4376 = ssub.s32 %s16, 2
        // Predicated region
        $region57: #{tpu_custom_call.1} parent=55 // pred_check
          %p4377 = pneg %p197
        $region58: #{tpu_custom_call.1} parent=55 // pred_check_branch
          %4379 = sbr.rel (%p4377) target = $region60
        $region59: #{tpu_custom_call.1} parent=55 // pred_region
          %s4380 = sand.u32 %s182, 1
          %s4381 = scalar_lea.sflag [#allocation4], %s4380
          %s4382 = sand.u32 %s182, 1
          %s4383 = smul.addr %s4382, 128
          %s4384 = scalar_lea.vmem [#allocation3], %s4383
          %4385 = dma.done %s4381, 2048
        $region60: #{tpu_custom_call.1} parent=55 // pred_fallthru
          _
      $region56: #{tpu_custom_call.1} parent=5 // pred_fallthru
        _
    $region6: #{tpu_custom_call.1} parent=1 // loop_footer
      %s20 = sadd.s32 1, %s16
    $region7: #{tpu_custom_call.1} parent=1 // loop_footer_branch
      %15 = sbr.rel target = $region3
    $region8: #{tpu_custom_call.1} parent=1 // loop_exit
      _
    %4386 = vsyncpa [#allocation4], 1
    %s4387 = scalar_lea.sflag [#allocation4], 1
    %4388 = vsyncpa %s4387, 1

</llo_original>
